<compile_context>
chip_gen: v7x
topology: tpu7x:2x2x1
jax: 0.10.0
libtpu: 0.0.40
codegen_flags: <defaults>
</compile_context>

<pallas_src>
import math

import jax
import jax.numpy as jnp
from jax.experimental import pallas as pl
from jax.experimental.pallas import tpu as pltpu

LANE = 128
SUBLANE = 8
OUT_DIM = 64  # true output width of the final nn.Linear(128, 64)


def _layer_dims(H):
    return [(H, 1024), (1024, 1024), (1024, 512), (512, 256), (256, 128), (128, OUT_DIM)]


def _round_up(x, m):
    return ((x + m - 1) // m) * m


def _mlp_kernel(x_ref, w0, w1, w2, w3, w4, w5, b_ref, out_ref):
    """One batch tile through the whole fused MLP (6x Linear+ReLU)."""
    h = x_ref[...]                      # (TB, H) f32
    biases = b_ref[...]                 # (8, 1024) f32, row l = bias of layer l
    for l, w_ref in enumerate((w0, w1, w2, w3, w4, w5)):
        out_dim = w_ref.shape[1]        # lane-padded (multiple of 128)
        # MXU: bf16 x bf16 -> f32 accumulate.
        y = jnp.dot(h.astype(jnp.bfloat16), w_ref[...],
                    preferred_element_type=jnp.float32)
        # VPU (f32): bias add + ReLU.
        y = y + biases[l:l + 1, :out_dim]
        h = jnp.maximum(y, 0.0)
    out_ref[...] = h.astype(out_ref.dtype)


def mlps_forward(x, weights, bias_packed):
    """x: (B, H) f32; weights: 6 bf16 (in, out_padded); bias_packed: (8, 1024) f32."""
    B, H = x.shape
    out_pad = weights[-1].shape[1]      # 128 (lane-padded final width)

    # Batch tile: whole (sublane-padded) batch when tiny, 256-row tiles otherwise.
    tile_b = min(_round_up(B, SUBLANE), 256)
    b_pad = _round_up(B, tile_b)
    if b_pad != B:
        x = jnp.pad(x, ((0, b_pad - B), (0, 0)))
    nb = b_pad // tile_b

    w_specs = [pl.BlockSpec(w.shape, lambda i: (0, 0)) for w in weights]

    out = pl.pallas_call(
        _mlp_kernel,
        grid=(nb,),
        in_specs=[pl.BlockSpec((tile_b, H), lambda i: (i, 0))]
                 + w_specs
                 + [pl.BlockSpec(bias_packed.shape, lambda i: (0, 0))],
        out_specs=pl.BlockSpec((tile_b, out_pad), lambda i: (i, 0)),
        out_shape=jax.ShapeDtypeStruct((b_pad, out_pad), jnp.float32),
        compiler_params=pltpu.CompilerParams(
            dimension_semantics=("parallel",),
            vmem_limit_bytes=24 << 20,
        ),
    )(x, *weights, bias_packed)

    # Drop batch padding and the 64->128 lane padding of the last layer.
    return out[:B, :OUT_DIM]


def init_params(key, H):
    """PyTorch nn.Linear default init (uniform +-1/sqrt(fan_in)), f32 master copies."""
    ws, bs = [], []
    for fan_in, fan_out in _layer_dims(H):
        key, kw, kb = jax.random.split(key, 3)
        bound = 1.0 / math.sqrt(fan_in)
        ws.append(jax.random.uniform(kw, (fan_in, fan_out), jnp.float32, -bound, bound))
        bs.append(jax.random.uniform(kb, (fan_out,), jnp.float32, -bound, bound))
    return ws, bs


def pack_params(ws, bs):
    """Lane-pad the final layer, cast weights to bf16, pack biases into (8, 1024)."""
    padded_ws = []
    for w in ws:
        out_p = _round_up(w.shape[1], LANE)
        if out_p != w.shape[1]:
            w = jnp.pad(w, ((0, 0), (0, out_p - w.shape[1])))
        padded_ws.append(w.astype(jnp.bfloat16))
    max_out = max(w.shape[1] for w in padded_ws)     # 1024
    bias_packed = jnp.zeros((SUBLANE, max_out), jnp.float32)
    for l, b in enumerate(bs):
        bias_packed = bias_packed.at[l, :b.shape[0]].set(b)
    return padded_ws, bias_packed


def reference_forward(x, ws, bs):
    """Plain-JAX reference; mirrors the kernel's bf16 matmul operands."""
    h = x
    for w, b in zip(ws, bs):
        hb = h.astype(jnp.bfloat16).astype(jnp.float32)
        wb = w.astype(jnp.bfloat16).astype(jnp.float32)
        h = jnp.maximum(hb @ wb + b, 0.0)
    return h


if __name__ == "__main__":
    key = jax.random.PRNGKey(0)
    H = 32       # bert hidden size used for this synthetic test
    B = 2        # batch of bert tensors

    k_x, k_p = jax.random.split(key)
    x = jax.random.normal(k_x, (B, H), jnp.float32)
    ws, bs = init_params(k_p, H)
    weights, bias_packed = pack_params(ws, bs)

    out = mlps_forward(x, weights, bias_packed)
    out = jax.block_until_ready(out)

    ref = reference_forward(x, ws, bs)
    assert out.shape == (B, OUT_DIM), out.shape
    assert jnp.allclose(out, ref, atol=1e-3, rtol=1e-3), float(jnp.max(jnp.abs(out - ref)))

    print("KERNEL_OK")
</pallas_src>

<mosaic_0001>
module attributes {stable_mosaic.version = 11 : i64} {
  func.func @_mlp_kernel(%arg0: i32, %arg1: memref<8x32xf32, #tpu.memory_space<vmem>>, %arg2: memref<32x1024xbf16, #tpu.memory_space<vmem>>, %arg3: memref<1024x1024xbf16, #tpu.memory_space<vmem>>, %arg4: memref<1024x512xbf16, #tpu.memory_space<vmem>>, %arg5: memref<512x256xbf16, #tpu.memory_space<vmem>>, %arg6: memref<256x128xbf16, #tpu.memory_space<vmem>>, %arg7: memref<128x128xbf16, #tpu.memory_space<vmem>>, %arg8: memref<8x1024xf32, #tpu.memory_space<vmem>>, %arg9: memref<8x128xf32, #tpu.memory_space<vmem>>) attributes {dimension_semantics = [#tpu.dimension_semantics<parallel>], iteration_bounds = array<i64: 1>, scalar_prefetch = 0 : i64, scratch_operands = 0 : i64, tpu.core_type = #tpu.core_type<tc>, window_params = [{transform_indices = @transform_0, window_bounds = array<i64: 8, 32>}, {pipeline_mode = #tpu.pipeline_mode<synchronous>, transform_indices = @transform_1, window_bounds = array<i64: 32, 1024>}, {pipeline_mode = #tpu.pipeline_mode<synchronous>, transform_indices = @transform_2, window_bounds = array<i64: 1024, 1024>}, {pipeline_mode = #tpu.pipeline_mode<synchronous>, transform_indices = @transform_3, window_bounds = array<i64: 1024, 512>}, {pipeline_mode = #tpu.pipeline_mode<synchronous>, transform_indices = @transform_4, window_bounds = array<i64: 512, 256>}, {pipeline_mode = #tpu.pipeline_mode<synchronous>, transform_indices = @transform_5, window_bounds = array<i64: 256, 128>}, {pipeline_mode = #tpu.pipeline_mode<synchronous>, transform_indices = @transform_6, window_bounds = array<i64: 128, 128>}, {pipeline_mode = #tpu.pipeline_mode<synchronous>, transform_indices = @transform_7, window_bounds = array<i64: 8, 1024>}, {transform_indices = @transform_8, window_bounds = array<i64: 8, 128>}]} {
    %c0 = arith.constant 0 : index
    %c0_0 = arith.constant 0 : index
    %0 = vector.load %arg1[%c0, %c0_0] : memref<8x32xf32, #tpu.memory_space<vmem>>, vector<8x32xf32>
    %c0_1 = arith.constant 0 : index
    %c0_2 = arith.constant 0 : index
    %1 = vector.load %arg8[%c0_1, %c0_2] : memref<8x1024xf32, #tpu.memory_space<vmem>>, vector<8x1024xf32>
    %2 = arith.truncf %0 : vector<8x32xf32> to vector<8x32xbf16>
    %c0_3 = arith.constant 0 : index
    %c0_4 = arith.constant 0 : index
    %3 = vector.load %arg2[%c0_3, %c0_4] : memref<32x1024xbf16, #tpu.memory_space<vmem>>, vector<32x1024xbf16>
    %cst = arith.constant dense<0.000000e+00> : vector<8x1024xf32>
    %4 = tpu.matmul %2, %3, %cst {dimension_numbers = #tpu.dot_dimension_numbers<[1], [0], [0], [1], [0, 0, 1, 1], [], []>} : vector<8x32xbf16>, vector<32x1024xbf16>, vector<8x1024xf32> -> vector<8x1024xf32>
    %5 = vector.extract_strided_slice %1 {offsets = [0, 0], sizes = [1, 1024], strides = [1, 1]} : vector<8x1024xf32> to vector<1x1024xf32>
    %6 = vector.broadcast %5 : vector<1x1024xf32> to vector<8x1024xf32>
    %7 = arith.addf %4, %6 : vector<8x1024xf32>
    %cst_5 = arith.constant 0.000000e+00 : f32
    %8 = vector.broadcast %cst_5 : f32 to vector<8x1024xf32>
    %9 = arith.maximumf %7, %8 : vector<8x1024xf32>
    %10 = arith.truncf %9 : vector<8x1024xf32> to vector<8x1024xbf16>
    %c0_6 = arith.constant 0 : index
    %c0_7 = arith.constant 0 : index
    %11 = vector.load %arg3[%c0_6, %c0_7] : memref<1024x1024xbf16, #tpu.memory_space<vmem>>, vector<1024x1024xbf16>
    %cst_8 = arith.constant dense<0.000000e+00> : vector<8x1024xf32>
    %12 = tpu.matmul %10, %11, %cst_8 {dimension_numbers = #tpu.dot_dimension_numbers<[1], [0], [0], [1], [0, 0, 1, 1], [], []>} : vector<8x1024xbf16>, vector<1024x1024xbf16>, vector<8x1024xf32> -> vector<8x1024xf32>
    %13 = vector.extract_strided_slice %1 {offsets = [1, 0], sizes = [1, 1024], strides = [1, 1]} : vector<8x1024xf32> to vector<1x1024xf32>
    %14 = vector.broadcast %13 : vector<1x1024xf32> to vector<8x1024xf32>
    %15 = arith.addf %12, %14 : vector<8x1024xf32>
    %cst_9 = arith.constant 0.000000e+00 : f32
    %16 = vector.broadcast %cst_9 : f32 to vector<8x1024xf32>
    %17 = arith.maximumf %15, %16 : vector<8x1024xf32>
    %18 = arith.truncf %17 : vector<8x1024xf32> to vector<8x1024xbf16>
    %c0_10 = arith.constant 0 : index
    %c0_11 = arith.constant 0 : index
    %19 = vector.load %arg4[%c0_10, %c0_11] : memref<1024x512xbf16, #tpu.memory_space<vmem>>, vector<1024x512xbf16>
    %cst_12 = arith.constant dense<0.000000e+00> : vector<8x512xf32>
    %20 = tpu.matmul %18, %19, %cst_12 {dimension_numbers = #tpu.dot_dimension_numbers<[1], [0], [0], [1], [0, 0, 1, 1], [], []>} : vector<8x1024xbf16>, vector<1024x512xbf16>, vector<8x512xf32> -> vector<8x512xf32>
    %21 = vector.extract_strided_slice %1 {offsets = [2, 0], sizes = [1, 512], strides = [1, 1]} : vector<8x1024xf32> to vector<1x512xf32>
    %22 = vector.broadcast %21 : vector<1x512xf32> to vector<8x512xf32>
    %23 = arith.addf %20, %22 : vector<8x512xf32>
    %cst_13 = arith.constant 0.000000e+00 : f32
    %24 = vector.broadcast %cst_13 : f32 to vector<8x512xf32>
    %25 = arith.maximumf %23, %24 : vector<8x512xf32>
    %26 = arith.truncf %25 : vector<8x512xf32> to vector<8x512xbf16>
    %c0_14 = arith.constant 0 : index
    %c0_15 = arith.constant 0 : index
    %27 = vector.load %arg5[%c0_14, %c0_15] : memref<512x256xbf16, #tpu.memory_space<vmem>>, vector<512x256xbf16>
    %cst_16 = arith.constant dense<0.000000e+00> : vector<8x256xf32>
    %28 = tpu.matmul %26, %27, %cst_16 {dimension_numbers = #tpu.dot_dimension_numbers<[1], [0], [0], [1], [0, 0, 1, 1], [], []>} : vector<8x512xbf16>, vector<512x256xbf16>, vector<8x256xf32> -> vector<8x256xf32>
    %29 = vector.extract_strided_slice %1 {offsets = [3, 0], sizes = [1, 256], strides = [1, 1]} : vector<8x1024xf32> to vector<1x256xf32>
    %30 = vector.broadcast %29 : vector<1x256xf32> to vector<8x256xf32>
    %31 = arith.addf %28, %30 : vector<8x256xf32>
    %cst_17 = arith.constant 0.000000e+00 : f32
    %32 = vector.broadcast %cst_17 : f32 to vector<8x256xf32>
    %33 = arith.maximumf %31, %32 : vector<8x256xf32>
    %34 = arith.truncf %33 : vector<8x256xf32> to vector<8x256xbf16>
    %c0_18 = arith.constant 0 : index
    %c0_19 = arith.constant 0 : index
    %35 = vector.load %arg6[%c0_18, %c0_19] : memref<256x128xbf16, #tpu.memory_space<vmem>>, vector<256x128xbf16>
    %cst_20 = arith.constant dense<0.000000e+00> : vector<8x128xf32>
    %36 = tpu.matmul %34, %35, %cst_20 {dimension_numbers = #tpu.dot_dimension_numbers<[1], [0], [0], [1], [0, 0, 1, 1], [], []>} : vector<8x256xbf16>, vector<256x128xbf16>, vector<8x128xf32> -> vector<8x128xf32>
    %37 = vector.extract_strided_slice %1 {offsets = [4, 0], sizes = [1, 128], strides = [1, 1]} : vector<8x1024xf32> to vector<1x128xf32>
    %38 = vector.broadcast %37 : vector<1x128xf32> to vector<8x128xf32>
    %39 = arith.addf %36, %38 : vector<8x128xf32>
    %cst_21 = arith.constant 0.000000e+00 : f32
    %40 = vector.broadcast %cst_21 : f32 to vector<8x128xf32>
    %41 = arith.maximumf %39, %40 : vector<8x128xf32>
    %42 = arith.truncf %41 : vector<8x128xf32> to vector<8x128xbf16>
    %c0_22 = arith.constant 0 : index
    %c0_23 = arith.constant 0 : index
    %43 = vector.load %arg7[%c0_22, %c0_23] : memref<128x128xbf16, #tpu.memory_space<vmem>>, vector<128x128xbf16>
    %cst_24 = arith.constant dense<0.000000e+00> : vector<8x128xf32>
    %44 = tpu.matmul %42, %43, %cst_24 {dimension_numbers = #tpu.dot_dimension_numbers<[1], [0], [0], [1], [0, 0, 1, 1], [], []>} : vector<8x128xbf16>, vector<128x128xbf16>, vector<8x128xf32> -> vector<8x128xf32>
    %45 = vector.extract_strided_slice %1 {offsets = [5, 0], sizes = [1, 128], strides = [1, 1]} : vector<8x1024xf32> to vector<1x128xf32>
    %46 = vector.broadcast %45 : vector<1x128xf32> to vector<8x128xf32>
    %47 = arith.addf %44, %46 : vector<8x128xf32>
    %cst_25 = arith.constant 0.000000e+00 : f32
    %48 = vector.broadcast %cst_25 : f32 to vector<8x128xf32>
    %49 = arith.maximumf %47, %48 : vector<8x128xf32>
    %c0_26 = arith.constant 0 : index
    %c0_27 = arith.constant 0 : index
    %50 = vector.load %arg9[%c0_26, %c0_27] : memref<8x128xf32, #tpu.memory_space<vmem>>, vector<8x128xf32>
    tpu.vector_store %arg9[%c0_26, %c0_27], %49 {strides = array<i32>} : memref<8x128xf32, #tpu.memory_space<vmem>>, vector<8x128xf32>,
    return
  }
  func.func @transform_0(%arg0: i32) -> (i32, i32) {
    %c0_i32 = arith.constant 0 : i32
    %c0_i32_0 = arith.constant 0 : i32
    return %arg0, %c0_i32 : i32, i32
  }
  func.func @transform_1(%arg0: i32) -> (i32, i32) {
    %c0_i32 = arith.constant 0 : i32
    %c0_i32_0 = arith.constant 0 : i32
    %c0_i32_1 = arith.constant 0 : i32
    return %c0_i32, %c0_i32_0 : i32, i32
  }
  func.func @transform_2(%arg0: i32) -> (i32, i32) {
    %c0_i32 = arith.constant 0 : i32
    %c0_i32_0 = arith.constant 0 : i32
    %c0_i32_1 = arith.constant 0 : i32
    return %c0_i32, %c0_i32_0 : i32, i32
  }
  func.func @transform_3(%arg0: i32) -> (i32, i32) {
    %c0_i32 = arith.constant 0 : i32
    %c0_i32_0 = arith.constant 0 : i32
    %c0_i32_1 = arith.constant 0 : i32
    return %c0_i32, %c0_i32_0 : i32, i32
  }
  func.func @transform_4(%arg0: i32) -> (i32, i32) {
    %c0_i32 = arith.constant 0 : i32
    %c0_i32_0 = arith.constant 0 : i32
    %c0_i32_1 = arith.constant 0 : i32
    return %c0_i32, %c0_i32_0 : i32, i32
  }
  func.func @transform_5(%arg0: i32) -> (i32, i32) {
    %c0_i32 = arith.constant 0 : i32
    %c0_i32_0 = arith.constant 0 : i32
    %c0_i32_1 = arith.constant 0 : i32
    return %c0_i32, %c0_i32_0 : i32, i32
  }
  func.func @transform_6(%arg0: i32) -> (i32, i32) {
    %c0_i32 = arith.constant 0 : i32
    %c0_i32_0 = arith.constant 0 : i32
    %c0_i32_1 = arith.constant 0 : i32
    return %c0_i32, %c0_i32_0 : i32, i32
  }
  func.func @transform_7(%arg0: i32) -> (i32, i32) {
    %c0_i32 = arith.constant 0 : i32
    %c0_i32_0 = arith.constant 0 : i32
    %c0_i32_1 = arith.constant 0 : i32
    return %c0_i32, %c0_i32_0 : i32, i32
  }
  func.func @transform_8(%arg0: i32) -> (i32, i32) {
    %c0_i32 = arith.constant 0 : i32
    %c0_i32_0 = arith.constant 0 : i32
    return %arg0, %c0_i32 : i32, i32
  }
}

</mosaic_0001>

<llo_original>
// kernel: tpu_custom_call.1
$region0: #{tpu_custom_call.1}
  #allocation0 [shape = 'u32[]', space=smem, size = 0x4, offset = 0x4, fixed_abs, tag = 'smem constant byte address 0x4 - core index']
  #allocation1 [shape = 'u32[144,128]{1,0:T(1,128)}', space=vmem, size = 0x12000, scoped, tag = 'internal scratch']
  %s0 = inlined_call_operand.hbm [shape: f32[8,32], index: 0, kind: input, shape index: {}]
  %s1 = inlined_call_operand.hbm [shape: bf16[32,1024], index: 1, kind: input, shape index: {}]
  %s2 = inlined_call_operand.hbm [shape: bf16[1024,1024], index: 2, kind: input, shape index: {}]
  %s3 = inlined_call_operand.hbm [shape: bf16[1024,512], index: 3, kind: input, shape index: {}]
  %s4 = inlined_call_operand.hbm [shape: bf16[512,256], index: 4, kind: input, shape index: {}]
  %s5 = inlined_call_operand.hbm [shape: bf16[256,128], index: 5, kind: input, shape index: {}]
  %s6 = inlined_call_operand.hbm [shape: bf16[128,128], index: 6, kind: input, shape index: {}]
  %s7 = inlined_call_operand.hbm [shape: f32[8,1024], index: 7, kind: input, shape index: {}]
  %s8 = inlined_call_operand.hbm [shape: f32[8,128], index: 8, kind: output, shape index: {}]
  %s9 = sld [smem:[#allocation0]]
  $region74: #{tpu_custom_call.1} parent=0
    _
  %s11 = ssub.s32 1, %s9
  %s12 = scalar_select 0, %s11, %s9
  $region1: #{tpu_custom_call.1} parent=0
    #allocation2 [shape = 'u8[4096]{0}', space=vmem, size = 0x1000, scoped, tag = 'input window, operand 0, single buffered']
    #allocation3 [shape = 's32[1]{0}', space=sflag, size = 0x4, scoped, tag = 'scoped memory for tpu_custom_call.1']
    #allocation4 [shape = 's32[1]{0}', space=sflag, size = 0x4, scoped, tag = 'scoped memory for tpu_custom_call.1']
    #allocation5 [shape = 'u8[65536]{0}', space=vmem, size = 0x10000, scoped, tag = 'input window, operand 1, single buffered']
    #allocation6 [shape = 's32[1]{0}', space=sflag, size = 0x4, scoped, tag = 'scoped memory for tpu_custom_call.1']
    #allocation7 [shape = 'u8[2097152]{0}', space=vmem, size = 0x200000, scoped, tag = 'input window, operand 2, single buffered']
    #allocation8 [shape = 'u8[1048576]{0}', space=vmem, size = 0x100000, scoped, tag = 'input window, operand 3, single buffered']
    #allocation9 [shape = 's32[1]{0}', space=sflag, size = 0x4, scoped, tag = 'scoped memory for tpu_custom_call.1']
    #allocation10 [shape = 'u8[262144]{0}', space=vmem, size = 0x40000, scoped, tag = 'input window, operand 4, single buffered']
    #allocation11 [shape = 'u8[65536]{0}', space=vmem, size = 0x10000, scoped, tag = 'input window, operand 5, single buffered']
    #allocation12 [shape = 's32[1]{0}', space=sflag, size = 0x4, scoped, tag = 'scoped memory for tpu_custom_call.1']
    #allocation13 [shape = 'u8[32768]{0}', space=vmem, size = 0x8000, scoped, tag = 'input window, operand 6, single buffered']
    #allocation14 [shape = 'u8[32768]{0}', space=vmem, size = 0x8000, scoped, tag = 'input window, operand 7, single buffered']
    #allocation15 [shape = 's32[1]{0}', space=sflag, size = 0x4, scoped, tag = 'scoped memory for tpu_custom_call.1']
    #allocation16 [shape = 'u8[4096]{0}', space=vmem, size = 0x1000, scoped, tag = 'output window, operand 0, single buffered']
    %13 = vsyncpa [#allocation3], 0
    %14 = vsyncpa [#allocation6], 0
    %15 = vsyncpa [#allocation9], 0
    %16 = vsyncpa [#allocation12], 0
    %17 = vsyncpa [#allocation15], 0
    %18 = vsyncpa [#allocation4], 0
    // Predicated region
    $region2: #{tpu_custom_call.1} parent=1 // pred_check
      _
    $region3: #{tpu_custom_call.1} parent=1 // pred_check_branch
      %20 = sbr.rel (0) target = $region5
    $region4: #{tpu_custom_call.1} parent=1 // pred_region
      %s22 = ssub.s32 128, 128
      %23 = vsyncadd [#allocation3], %s22
      %s25 = sshll.u32 [#allocation2], 4
      %s26 = int_to_ptr.vmem [resolvable:$true] %s25
      %28 = dma.hbm_to_vmem [thread:$0]  %s0, 128, %s26, [#allocation3]
    $region5: #{tpu_custom_call.1} parent=1 // pred_fallthru
      _
    // Predicated region
    $region6: #{tpu_custom_call.1} parent=1 // pred_check
      _
    $region7: #{tpu_custom_call.1} parent=1 // pred_check_branch
      %30 = sbr.rel (0) target = $region9
    $region8: #{tpu_custom_call.1} parent=1 // pred_region
      %s32 = ssub.s32 2048, 2048
      %33 = vsyncadd [#allocation6], %s32
      %s34 = sshll.u32 [#allocation5], 4
      %s35 = int_to_ptr.vmem [resolvable:$true] %s34
      %40 = dma.hbm_to_vmem [thread:$0]  %s1, 2048, %s35, [#allocation6], 512, 512, 32
    $region9: #{tpu_custom_call.1} parent=1 // pred_fallthru
      _
    // Predicated region
    $region10: #{tpu_custom_call.1} parent=1 // pred_check
      _
    $region11: #{tpu_custom_call.1} parent=1 // pred_check_branch
      %42 = sbr.rel (0) target = $region13
    $region12: #{tpu_custom_call.1} parent=1 // pred_region
      %s44 = ssub.s32 65536, 65536
      %45 = vsyncadd [#allocation6], %s44
      %s46 = sshll.u32 [#allocation7], 4
      %s47 = int_to_ptr.vmem [resolvable:$true] %s46
      %52 = dma.hbm_to_vmem [thread:$0]  %s2, 65536, %s47, [#allocation6], 512, 512, 32
    $region13: #{tpu_custom_call.1} parent=1 // pred_fallthru
      _
    // Predicated region
    $region14: #{tpu_custom_call.1} parent=1 // pred_check
      _
    $region15: #{tpu_custom_call.1} parent=1 // pred_check_branch
      %54 = sbr.rel (0) target = $region17
    $region16: #{tpu_custom_call.1} parent=1 // pred_region
      %s56 = ssub.s32 32768, 32768
      %57 = vsyncadd [#allocation9], %s56
      %s58 = sshll.u32 [#allocation8], 4
      %s59 = int_to_ptr.vmem [resolvable:$true] %s58
      %64 = dma.hbm_to_vmem [thread:$0]  %s3, 32768, %s59, [#allocation9], 256, 256, 16
    $region17: #{tpu_custom_call.1} parent=1 // pred_fallthru
      _
    // Predicated region
    $region18: #{tpu_custom_call.1} parent=1 // pred_check
      _
    $region19: #{tpu_custom_call.1} parent=1 // pred_check_branch
      %66 = sbr.rel (0) target = $region21
    $region20: #{tpu_custom_call.1} parent=1 // pred_region
      %s68 = ssub.s32 8192, 8192
      %69 = vsyncadd [#allocation9], %s68
      %s70 = sshll.u32 [#allocation10], 4
      %s71 = int_to_ptr.vmem [resolvable:$true] %s70
      %76 = dma.hbm_to_vmem [thread:$0]  %s4, 8192, %s71, [#allocation9], 128, 128, 8
    $region21: #{tpu_custom_call.1} parent=1 // pred_fallthru
      _
    // Predicated region
    $region22: #{tpu_custom_call.1} parent=1 // pred_check
      _
    $region23: #{tpu_custom_call.1} parent=1 // pred_check_branch
      %78 = sbr.rel (0) target = $region25
    $region24: #{tpu_custom_call.1} parent=1 // pred_region
      %s80 = ssub.s32 2048, 2048
      %81 = vsyncadd [#allocation12], %s80
      %s82 = sshll.u32 [#allocation11], 4
      %s83 = int_to_ptr.vmem [resolvable:$true] %s82
      %88 = dma.hbm_to_vmem [thread:$0]  %s5, 2048, %s83, [#allocation12], 64, 64, 4
    $region25: #{tpu_custom_call.1} parent=1 // pred_fallthru
      _
    // Predicated region
    $region26: #{tpu_custom_call.1} parent=1 // pred_check
      _
    $region27: #{tpu_custom_call.1} parent=1 // pred_check_branch
      %90 = sbr.rel (0) target = $region29
    $region28: #{tpu_custom_call.1} parent=1 // pred_region
      %s92 = ssub.s32 1024, 1024
      %93 = vsyncadd [#allocation12], %s92
      %s94 = sshll.u32 [#allocation13], 4
      %s95 = int_to_ptr.vmem [resolvable:$true] %s94
      %100 = dma.hbm_to_vmem [thread:$0]  %s6, 1024, %s95, [#allocation12], 64, 64, 4
    $region29: #{tpu_custom_call.1} parent=1 // pred_fallthru
      _
    // Predicated region
    $region30: #{tpu_custom_call.1} parent=1 // pred_check
      _
    $region31: #{tpu_custom_call.1} parent=1 // pred_check_branch
      %102 = sbr.rel (0) target = $region33
    $region32: #{tpu_custom_call.1} parent=1 // pred_region
      %s104 = ssub.s32 1024, 1024
      %105 = vsyncadd [#allocation15], %s104
      %s107 = sshll.u32 [#allocation14], 4
      %s108 = int_to_ptr.vmem [resolvable:$true] %s107
      %110 = dma.hbm_to_vmem [thread:$0]  %s7, 1024, %s108, [#allocation15]
    $region33: #{tpu_custom_call.1} parent=1 // pred_fallthru
      _
    // Predicated region
    $region34: #{tpu_custom_call.1} parent=1 // pred_check
      _
    $region35: #{tpu_custom_call.1} parent=1 // pred_check_branch
      %112 = sbr.rel (0) target = $region37
    $region36: #{tpu_custom_call.1} parent=1 // pred_region
      %113 = dma.done [#allocation3], 128
    $region37: #{tpu_custom_call.1} parent=1 // pred_fallthru
      _
    // Predicated region
    $region38: #{tpu_custom_call.1} parent=1 // pred_check
      _
    $region39: #{tpu_custom_call.1} parent=1 // pred_check_branch
      %115 = sbr.rel (0) target = $region41
    $region40: #{tpu_custom_call.1} parent=1 // pred_region
      %116 = dma.done [#allocation6], 2048
    $region41: #{tpu_custom_call.1} parent=1 // pred_fallthru
      _
    // Predicated region
    $region42: #{tpu_custom_call.1} parent=1 // pred_check
      _
    $region43: #{tpu_custom_call.1} parent=1 // pred_check_branch
      %118 = sbr.rel (0) target = $region45
    $region44: #{tpu_custom_call.1} parent=1 // pred_region
      %119 = dma.done [#allocation6], 65536
    $region45: #{tpu_custom_call.1} parent=1 // pred_fallthru
      _
    // Predicated region
    $region46: #{tpu_custom_call.1} parent=1 // pred_check
      _
    $region47: #{tpu_custom_call.1} parent=1 // pred_check_branch
      %121 = sbr.rel (0) target = $region49
    $region48: #{tpu_custom_call.1} parent=1 // pred_region
      %122 = dma.done [#allocation9], 32768
    $region49: #{tpu_custom_call.1} parent=1 // pred_fallthru
      _
    // Predicated region
    $region50: #{tpu_custom_call.1} parent=1 // pred_check
      _
    $region51: #{tpu_custom_call.1} parent=1 // pred_check_branch
      %124 = sbr.rel (0) target = $region53
    $region52: #{tpu_custom_call.1} parent=1 // pred_region
      %125 = dma.done [#allocation9], 8192
    $region53: #{tpu_custom_call.1} parent=1 // pred_fallthru
      _
    // Predicated region
    $region54: #{tpu_custom_call.1} parent=1 // pred_check
      _
    $region55: #{tpu_custom_call.1} parent=1 // pred_check_branch
      %127 = sbr.rel (0) target = $region57
    $region56: #{tpu_custom_call.1} parent=1 // pred_region
      %128 = dma.done [#allocation12], 2048
    $region57: #{tpu_custom_call.1} parent=1 // pred_fallthru
      _
    // Predicated region
    $region58: #{tpu_custom_call.1} parent=1 // pred_check
      _
    $region59: #{tpu_custom_call.1} parent=1 // pred_check_branch
      %130 = sbr.rel (0) target = $region61
    $region60: #{tpu_custom_call.1} parent=1 // pred_region
      %131 = dma.done [#allocation12], 1024
    $region61: #{tpu_custom_call.1} parent=1 // pred_fallthru
      _
    // Predicated region
    $region62: #{tpu_custom_call.1} parent=1 // pred_check
      _
    $region63: #{tpu_custom_call.1} parent=1 // pred_check_branch
      %133 = sbr.rel (0) target = $region65
    $region64: #{tpu_custom_call.1} parent=1 // pred_region
      %134 = dma.done [#allocation15], 1024
    $region65: #{tpu_custom_call.1} parent=1 // pred_fallthru
      _
    %v136 = vld [vmem:[#allocation2] sm:$0xff]
    %v137 = vld [vmem:[#allocation14] sm:$0xff]
    %v138 = vld [vmem:[#allocation14 + $0x8] sm:$0xff]
    %v139 = vld [vmem:[#allocation14 + $0x10] sm:$0xff]
    %v140 = vld [vmem:[#allocation14 + $0x18] sm:$0xff]
    %v141 = vld [vmem:[#allocation14 + $0x20] sm:$0xff]
    %v142 = vld [vmem:[#allocation14 + $0x28] sm:$0xff]
    %v143 = vld [vmem:[#allocation14 + $0x30] sm:$0xff]
    %v144 = vld [vmem:[#allocation14 + $0x38] sm:$0xff]
    %v145 = vpack.c.bf16 %v136, %v136
    %v146 = vld [vmem:[#allocation5] sm:$0xff]
    %v147 = vld [vmem:[#allocation5 + $0x8] sm:$0xff]
    %v148 = vld [vmem:[#allocation5 + $0x10] sm:$0xff]
    %v149 = vld [vmem:[#allocation5 + $0x18] sm:$0xff]
    %v150 = vld [vmem:[#allocation5 + $0x20] sm:$0xff]
    %v151 = vld [vmem:[#allocation5 + $0x28] sm:$0xff]
    %v152 = vld [vmem:[#allocation5 + $0x30] sm:$0xff]
    %v153 = vld [vmem:[#allocation5 + $0x38] sm:$0xff]
    %v154 = vld [vmem:[#allocation5 + $0x40] sm:$0xff]
    %v155 = vld [vmem:[#allocation5 + $0x48] sm:$0xff]
    %v156 = vld [vmem:[#allocation5 + $0x50] sm:$0xff]
    %v157 = vld [vmem:[#allocation5 + $0x58] sm:$0xff]
    %v158 = vld [vmem:[#allocation5 + $0x60] sm:$0xff]
    %v159 = vld [vmem:[#allocation5 + $0x68] sm:$0xff]
    %v160 = vld [vmem:[#allocation5 + $0x70] sm:$0xff]
    %v161 = vld [vmem:[#allocation5 + $0x78] sm:$0xff]
    %v162 = vlaneseq
    %v163 = vshrl.u32 %v162, 7
    %v164 = vsub.s32 0, %v163
    %v165 = vrot.slane %v137, %v164
    %v166 = vlaneseq
    %v167 = vshrl.u32 %v166, 7
    %v168 = vsub.s32 0, %v167
    %v169 = vrot.slane %v138, %v168
    %v170 = vlaneseq
    %v171 = vshrl.u32 %v170, 7
    %v172 = vsub.s32 0, %v171
    %v173 = vrot.slane %v139, %v172
    %v174 = vlaneseq
    %v175 = vshrl.u32 %v174, 7
    %v176 = vsub.s32 0, %v175
    %v177 = vrot.slane %v140, %v176
    %v178 = vlaneseq
    %v179 = vshrl.u32 %v178, 7
    %v180 = vsub.s32 0, %v179
    %v181 = vrot.slane %v141, %v180
    %v182 = vlaneseq
    %v183 = vshrl.u32 %v182, 7
    %v184 = vsub.s32 0, %v183
    %v185 = vrot.slane %v142, %v184
    %v186 = vlaneseq
    %v187 = vshrl.u32 %v186, 7
    %v188 = vsub.s32 0, %v187
    %v189 = vrot.slane %v143, %v188
    %v190 = vlaneseq
    %v191 = vshrl.u32 %v190, 7
    %v192 = vsub.s32 0, %v191
    %v193 = vrot.slane %v144, %v192
    %v210 = vunpack.c.l.b16 %v146
    %v211 = vunpack.c.h.b16 %v146
    %v212 = vunpack.c.l.b16 %v147
    %v213 = vunpack.c.h.b16 %v147
    %v214 = vunpack.c.l.b16 %v148
    %v215 = vunpack.c.h.b16 %v148
    %v216 = vunpack.c.l.b16 %v149
    %v217 = vunpack.c.h.b16 %v149
    %v218 = vunpack.c.l.b16 %v150
    %v219 = vunpack.c.h.b16 %v150
    %v220 = vunpack.c.l.b16 %v151
    %v221 = vunpack.c.h.b16 %v151
    %v222 = vunpack.c.l.b16 %v152
    %v223 = vunpack.c.h.b16 %v152
    %v224 = vunpack.c.l.b16 %v153
    %v225 = vunpack.c.h.b16 %v153
    %v226 = vunpack.c.l.b16 %v154
    %v227 = vunpack.c.h.b16 %v154
    %v228 = vunpack.c.l.b16 %v155
    %v229 = vunpack.c.h.b16 %v155
    %v230 = vunpack.c.l.b16 %v156
    %v231 = vunpack.c.h.b16 %v156
    %v232 = vunpack.c.l.b16 %v157
    %v233 = vunpack.c.h.b16 %v157
    %v234 = vunpack.c.l.b16 %v158
    %v235 = vunpack.c.h.b16 %v158
    %v236 = vunpack.c.l.b16 %v159
    %v237 = vunpack.c.h.b16 %v159
    %v238 = vunpack.c.l.b16 %v160
    %v239 = vunpack.c.h.b16 %v160
    %v240 = vunpack.c.l.b16 %v161
    %v241 = vunpack.c.h.b16 %v161
    %v242 = vpack.c.b16 %v218, %v210
    %v243 = vpack.c.b16 %v219, %v211
    %v244 = vpack.c.b16 %v220, %v212
    %v245 = vpack.c.b16 %v221, %v213
    %v246 = vpack.c.b16 %v222, %v214
    %v247 = vpack.c.b16 %v223, %v215
    %v248 = vpack.c.b16 %v224, %v216
    %v249 = vpack.c.b16 %v225, %v217
    %v250 = vpack.c.b16 %v234, %v226
    %v251 = vpack.c.b16 %v235, %v227
    %v252 = vpack.c.b16 %v236, %v228
    %v253 = vpack.c.b16 %v237, %v229
    %v254 = vpack.c.b16 %v238, %v230
    %v255 = vpack.c.b16 %v239, %v231
    %v256 = vpack.c.b16 %v240, %v232
    %v257 = vpack.c.b16 %v241, %v233
    %vm274 = vcmask 261120
    %v276 = vsel %vm274, %v145, 0
    %278 = vmatprep.subr.bf16.mxu0 %v243
    %279 = vmatpush1.bf16.msra.mxu0 %v242
    %280 = vmatprep.subr.bf16.mxu0 %v251
    %281 = vmatpush1.bf16.msra.mxu0 %v250
    %282 = vmatprep.subr.bf16.mxu0 0
    %283 = vmatpush1.bf16.msra.mxu0 0
    %284 = vmatprep.subr.bf16.mxu0 0
    %285 = vmatpush1.bf16.msra.mxu0 0
    %286 = vmatprep.subr.bf16.mxu0 0
    %287 = vmatpush1.bf16.msra.mxu0 0
    %288 = vmatprep.subr.bf16.mxu0 0
    %289 = vmatpush1.bf16.msra.mxu0 0
    %290 = vmatprep.subr.bf16.mxu0 0
    %291 = vmatpush1.bf16.msra.mxu0 0
    %292 = vmatprep.subr.bf16.mxu0 0
    %293 = vmatpush1.bf16.msra.mxu0 0
    %294 = vmatprep.subr.bf16.mxu0 0
    %295 = vmatpush1.bf16.msra.mxu0 0
    %296 = vmatprep.subr.bf16.mxu0 0
    %297 = vmatpush1.bf16.msra.mxu0 0
    %298 = vmatprep.subr.bf16.mxu0 0
    %299 = vmatpush1.bf16.msra.mxu0 0
    %300 = vmatprep.subr.bf16.mxu0 0
    %301 = vmatpush1.bf16.msra.mxu0 0
    %302 = vmatprep.subr.bf16.mxu0 0
    %303 = vmatpush1.bf16.msra.mxu0 0
    %304 = vmatprep.subr.bf16.mxu0 0
    %305 = vmatpush1.bf16.msra.mxu0 0
    %306 = vmatprep.subr.bf16.mxu0 0
    %307 = vmatpush1.bf16.msra.mxu0 0
    %308 = vmatprep.subr.bf16.mxu0 0
    %309 = vmatpush1.bf16.msra.mxu0 0
    %310 = vmatprep.mubr.bf16.mxu0 0
    %311 = vmatmul.mubr.bf16.gmra.mrb[0].mxu0 %v276
    %v312 = vpop.f32.mrb[0].mxu0
    %v313 = vadd.f32 %v165, %v312
    %v314 = vpop.f32.mrb[0].mxu0
    %v315 = vadd.f32 %v169, %v314
    %v316 = vpop.f32.mrb[0].mxu0
    %v317 = vpop.f32.mrb[0].mxu0
    %318 = vdwg.mxu0
    %319 = vmatprep.subr.bf16.mxu0 %v245
    %320 = vmatpush1.bf16.msra.mxu0 %v244
    %321 = vmatprep.subr.bf16.mxu0 %v253
    %322 = vmatpush1.bf16.msra.mxu0 %v252
    %323 = vmatprep.subr.bf16.mxu0 0
    %324 = vmatpush1.bf16.msra.mxu0 0
    %325 = vmatprep.subr.bf16.mxu0 0
    %326 = vmatpush1.bf16.msra.mxu0 0
    %327 = vmatprep.subr.bf16.mxu0 0
    %328 = vmatpush1.bf16.msra.mxu0 0
    %329 = vmatprep.subr.bf16.mxu0 0
    %330 = vmatpush1.bf16.msra.mxu0 0
    %331 = vmatprep.subr.bf16.mxu0 0
    %332 = vmatpush1.bf16.msra.mxu0 0
    %333 = vmatprep.subr.bf16.mxu0 0
    %334 = vmatpush1.bf16.msra.mxu0 0
    %335 = vmatprep.subr.bf16.mxu0 0
    %336 = vmatpush1.bf16.msra.mxu0 0
    %337 = vmatprep.subr.bf16.mxu0 0
    %338 = vmatpush1.bf16.msra.mxu0 0
    %339 = vmatprep.subr.bf16.mxu0 0
    %340 = vmatpush1.bf16.msra.mxu0 0
    %341 = vmatprep.subr.bf16.mxu0 0
    %342 = vmatpush1.bf16.msra.mxu0 0
    %343 = vmatprep.subr.bf16.mxu0 0
    %344 = vmatpush1.bf16.msra.mxu0 0
    %345 = vmatprep.subr.bf16.mxu0 0
    %346 = vmatpush1.bf16.msra.mxu0 0
    %347 = vmatprep.subr.bf16.mxu0 0
    %348 = vmatpush1.bf16.msra.mxu0 0
    %349 = vmatprep.subr.bf16.mxu0 0
    %350 = vmatpush1.bf16.msra.mxu0 0
    %351 = vmatprep.mubr.bf16.mxu0 0
    %352 = vmatmul.mubr.bf16.gmra.mrb[0].mxu0 %v276
    %v353 = vpop.f32.mrb[0].mxu0
    %v354 = vadd.f32 %v173, %v353
    %v355 = vpop.f32.mrb[0].mxu0
    %v356 = vadd.f32 %v177, %v355
    %v357 = vpop.f32.mrb[0].mxu0
    %v358 = vpop.f32.mrb[0].mxu0
    %359 = vdwg.mxu0
    %360 = vmatprep.subr.bf16.mxu0 %v247
    %361 = vmatpush1.bf16.msra.mxu0 %v246
    %362 = vmatprep.subr.bf16.mxu0 %v255
    %363 = vmatpush1.bf16.msra.mxu0 %v254
    %364 = vmatprep.subr.bf16.mxu0 0
    %365 = vmatpush1.bf16.msra.mxu0 0
    %366 = vmatprep.subr.bf16.mxu0 0
    %367 = vmatpush1.bf16.msra.mxu0 0
    %368 = vmatprep.subr.bf16.mxu0 0
    %369 = vmatpush1.bf16.msra.mxu0 0
    %370 = vmatprep.subr.bf16.mxu0 0
    %371 = vmatpush1.bf16.msra.mxu0 0
    %372 = vmatprep.subr.bf16.mxu0 0
    %373 = vmatpush1.bf16.msra.mxu0 0
    %374 = vmatprep.subr.bf16.mxu0 0
    %375 = vmatpush1.bf16.msra.mxu0 0
    %376 = vmatprep.subr.bf16.mxu0 0
    %377 = vmatpush1.bf16.msra.mxu0 0
    %378 = vmatprep.subr.bf16.mxu0 0
    %379 = vmatpush1.bf16.msra.mxu0 0
    %380 = vmatprep.subr.bf16.mxu0 0
    %381 = vmatpush1.bf16.msra.mxu0 0
    %382 = vmatprep.subr.bf16.mxu0 0
    %383 = vmatpush1.bf16.msra.mxu0 0
    %384 = vmatprep.subr.bf16.mxu0 0
    %385 = vmatpush1.bf16.msra.mxu0 0
    %386 = vmatprep.subr.bf16.mxu0 0
    %387 = vmatpush1.bf16.msra.mxu0 0
    %388 = vmatprep.subr.bf16.mxu0 0
    %389 = vmatpush1.bf16.msra.mxu0 0
    %390 = vmatprep.subr.bf16.mxu0 0
    %391 = vmatpush1.bf16.msra.mxu0 0
    %392 = vmatprep.mubr.bf16.mxu0 0
    %393 = vmatmul.mubr.bf16.gmra.mrb[0].mxu0 %v276
    %v394 = vpop.f32.mrb[0].mxu0
    %v395 = vadd.f32 %v181, %v394
    %v396 = vpop.f32.mrb[0].mxu0
    %v397 = vadd.f32 %v185, %v396
    %v398 = vpop.f32.mrb[0].mxu0
    %v399 = vpop.f32.mrb[0].mxu0
    %400 = vdwg.mxu0
    %401 = vmatprep.subr.bf16.mxu0 %v249
    %402 = vmatpush1.bf16.msra.mxu0 %v248
    %403 = vmatprep.subr.bf16.mxu0 %v257
    %404 = vmatpush1.bf16.msra.mxu0 %v256
    %405 = vmatprep.subr.bf16.mxu0 0
    %406 = vmatpush1.bf16.msra.mxu0 0
    %407 = vmatprep.subr.bf16.mxu0 0
    %408 = vmatpush1.bf16.msra.mxu0 0
    %409 = vmatprep.subr.bf16.mxu0 0
    %410 = vmatpush1.bf16.msra.mxu0 0
    %411 = vmatprep.subr.bf16.mxu0 0
    %412 = vmatpush1.bf16.msra.mxu0 0
    %413 = vmatprep.subr.bf16.mxu0 0
    %414 = vmatpush1.bf16.msra.mxu0 0
    %415 = vmatprep.subr.bf16.mxu0 0
    %416 = vmatpush1.bf16.msra.mxu0 0
    %417 = vmatprep.subr.bf16.mxu0 0
    %418 = vmatpush1.bf16.msra.mxu0 0
    %419 = vmatprep.subr.bf16.mxu0 0
    %420 = vmatpush1.bf16.msra.mxu0 0
    %421 = vmatprep.subr.bf16.mxu0 0
    %422 = vmatpush1.bf16.msra.mxu0 0
    %423 = vmatprep.subr.bf16.mxu0 0
    %424 = vmatpush1.bf16.msra.mxu0 0
    %425 = vmatprep.subr.bf16.mxu0 0
    %426 = vmatpush1.bf16.msra.mxu0 0
    %427 = vmatprep.subr.bf16.mxu0 0
    %428 = vmatpush1.bf16.msra.mxu0 0
    %429 = vmatprep.subr.bf16.mxu0 0
    %430 = vmatpush1.bf16.msra.mxu0 0
    %431 = vmatprep.subr.bf16.mxu0 0
    %432 = vmatpush1.bf16.msra.mxu0 0
    %433 = vmatprep.mubr.bf16.mxu0 0
    %434 = vmatmul.mubr.bf16.gmra.mrb[0].mxu0 %v276
    %v435 = vpop.f32.mrb[0].mxu0
    %v436 = vadd.f32 %v189, %v435
    %v437 = vpop.f32.mrb[0].mxu0
    %v438 = vadd.f32 %v193, %v437
    %v439 = vpop.f32.mrb[0].mxu0
    %v440 = vpop.f32.mrb[0].mxu0
    %441 = vdwg.mxu0
    %v442 = vmax.f32 %v313, 0.0
    %v443 = vmax.f32 %v315, 0.0
    %v444 = vmax.f32 %v354, 0.0
    %v445 = vmax.f32 %v356, 0.0
    %v446 = vmax.f32 %v395, 0.0
    %v447 = vmax.f32 %v397, 0.0
    %v448 = vmax.f32 %v436, 0.0
    %v449 = vmax.f32 %v438, 0.0
    %v450 = vpack.c.bf16 %v442, %v442
    %v451 = vpack.c.bf16 %v443, %v443
    %v452 = vpack.c.bf16 %v444, %v444
    %v453 = vpack.c.bf16 %v445, %v445
    %v454 = vpack.c.bf16 %v446, %v446
    %v455 = vpack.c.bf16 %v447, %v447
    %v456 = vpack.c.bf16 %v448, %v448
    %v457 = vpack.c.bf16 %v449, %v449
    %v458 = vld [vmem:[#allocation7] sm:$0xff]
    %v459 = vld [vmem:[#allocation7 + $0x8] sm:$0xff]
    %v460 = vld [vmem:[#allocation7 + $0x10] sm:$0xff]
    %v461 = vld [vmem:[#allocation7 + $0x18] sm:$0xff]
    %v462 = vld [vmem:[#allocation7 + $0x20] sm:$0xff]
    %v463 = vld [vmem:[#allocation7 + $0x28] sm:$0xff]
    %v464 = vld [vmem:[#allocation7 + $0x30] sm:$0xff]
    %v465 = vld [vmem:[#allocation7 + $0x38] sm:$0xff]
    %v466 = vld [vmem:[#allocation7 + $0x40] sm:$0xff]
    %v467 = vld [vmem:[#allocation7 + $0x48] sm:$0xff]
    %v468 = vld [vmem:[#allocation7 + $0x50] sm:$0xff]
    %v469 = vld [vmem:[#allocation7 + $0x58] sm:$0xff]
    %v470 = vld [vmem:[#allocation7 + $0x60] sm:$0xff]
    %v471 = vld [vmem:[#allocation7 + $0x68] sm:$0xff]
    %v472 = vld [vmem:[#allocation7 + $0x70] sm:$0xff]
    %v473 = vld [vmem:[#allocation7 + $0x78] sm:$0xff]
    %v474 = vld [vmem:[#allocation7 + $0x80] sm:$0xff]
    %v475 = vld [vmem:[#allocation7 + $0x88] sm:$0xff]
    %v476 = vld [vmem:[#allocation7 + $0x90] sm:$0xff]
    %v477 = vld [vmem:[#allocation7 + $0x98] sm:$0xff]
    %v478 = vld [vmem:[#allocation7 + $0xa0] sm:$0xff]
    %v479 = vld [vmem:[#allocation7 + $0xa8] sm:$0xff]
    %v480 = vld [vmem:[#allocation7 + $0xb0] sm:$0xff]
    %v481 = vld [vmem:[#allocation7 + $0xb8] sm:$0xff]
    %v482 = vld [vmem:[#allocation7 + $0xc0] sm:$0xff]
    %v483 = vld [vmem:[#allocation7 + $0xc8] sm:$0xff]
    %v484 = vld [vmem:[#allocation7 + $0xd0] sm:$0xff]
    %v485 = vld [vmem:[#allocation7 + $0xd8] sm:$0xff]
    %v486 = vld [vmem:[#allocation7 + $0xe0] sm:$0xff]
    %v487 = vld [vmem:[#allocation7 + $0xe8] sm:$0xff]
    %v488 = vld [vmem:[#allocation7 + $0xf0] sm:$0xff]
    %v489 = vld [vmem:[#allocation7 + $0xf8] sm:$0xff]
    %v490 = vld [vmem:[#allocation7 + $0x100] sm:$0xff]
    %v491 = vld [vmem:[#allocation7 + $0x108] sm:$0xff]
    %v492 = vld [vmem:[#allocation7 + $0x110] sm:$0xff]
    %v493 = vld [vmem:[#allocation7 + $0x118] sm:$0xff]
    %v494 = vld [vmem:[#allocation7 + $0x120] sm:$0xff]
    %v495 = vld [vmem:[#allocation7 + $0x128] sm:$0xff]
    %v496 = vld [vmem:[#allocation7 + $0x130] sm:$0xff]
    %v497 = vld [vmem:[#allocation7 + $0x138] sm:$0xff]
    %v498 = vld [vmem:[#allocation7 + $0x140] sm:$0xff]
    %v499 = vld [vmem:[#allocation7 + $0x148] sm:$0xff]
    %v500 = vld [vmem:[#allocation7 + $0x150] sm:$0xff]
    %v501 = vld [vmem:[#allocation7 + $0x158] sm:$0xff]
    %v502 = vld [vmem:[#allocation7 + $0x160] sm:$0xff]
    %v503 = vld [vmem:[#allocation7 + $0x168] sm:$0xff]
    %v504 = vld [vmem:[#allocation7 + $0x170] sm:$0xff]
    %v505 = vld [vmem:[#allocation7 + $0x178] sm:$0xff]
    %v506 = vld [vmem:[#allocation7 + $0x180] sm:$0xff]
    %v507 = vld [vmem:[#allocation7 + $0x188] sm:$0xff]
    %v508 = vld [vmem:[#allocation7 + $0x190] sm:$0xff]
    %v509 = vld [vmem:[#allocation7 + $0x198] sm:$0xff]
    %v510 = vld [vmem:[#allocation7 + $0x1a0] sm:$0xff]
    %v511 = vld [vmem:[#allocation7 + $0x1a8] sm:$0xff]
    %v512 = vld [vmem:[#allocation7 + $0x1b0] sm:$0xff]
    %v513 = vld [vmem:[#allocation7 + $0x1b8] sm:$0xff]
    %v514 = vld [vmem:[#allocation7 + $0x1c0] sm:$0xff]
    %v515 = vld [vmem:[#allocation7 + $0x1c8] sm:$0xff]
    %v516 = vld [vmem:[#allocation7 + $0x1d0] sm:$0xff]
    %v517 = vld [vmem:[#allocation7 + $0x1d8] sm:$0xff]
    %v518 = vld [vmem:[#allocation7 + $0x1e0] sm:$0xff]
    %v519 = vld [vmem:[#allocation7 + $0x1e8] sm:$0xff]
    %v520 = vld [vmem:[#allocation7 + $0x1f0] sm:$0xff]
    %v521 = vld [vmem:[#allocation7 + $0x1f8] sm:$0xff]
    %v522 = vld [vmem:[#allocation7 + $0x200] sm:$0xff]
    %v523 = vld [vmem:[#allocation7 + $0x208] sm:$0xff]
    %v524 = vld [vmem:[#allocation7 + $0x210] sm:$0xff]
    %v525 = vld [vmem:[#allocation7 + $0x218] sm:$0xff]
    %v526 = vld [vmem:[#allocation7 + $0x220] sm:$0xff]
    %v527 = vld [vmem:[#allocation7 + $0x228] sm:$0xff]
    %v528 = vld [vmem:[#allocation7 + $0x230] sm:$0xff]
    %v529 = vld [vmem:[#allocation7 + $0x238] sm:$0xff]
    %v530 = vld [vmem:[#allocation7 + $0x240] sm:$0xff]
    %v531 = vld [vmem:[#allocation7 + $0x248] sm:$0xff]
    %v532 = vld [vmem:[#allocation7 + $0x250] sm:$0xff]
    %v533 = vld [vmem:[#allocation7 + $0x258] sm:$0xff]
    %v534 = vld [vmem:[#allocation7 + $0x260] sm:$0xff]
    %v535 = vld [vmem:[#allocation7 + $0x268] sm:$0xff]
    %v536 = vld [vmem:[#allocation7 + $0x270] sm:$0xff]
    %v537 = vld [vmem:[#allocation7 + $0x278] sm:$0xff]
    %v538 = vld [vmem:[#allocation7 + $0x280] sm:$0xff]
    %v539 = vld [vmem:[#allocation7 + $0x288] sm:$0xff]
    %v540 = vld [vmem:[#allocation7 + $0x290] sm:$0xff]
    %v541 = vld [vmem:[#allocation7 + $0x298] sm:$0xff]
    %v542 = vld [vmem:[#allocation7 + $0x2a0] sm:$0xff]
    %v543 = vld [vmem:[#allocation7 + $0x2a8] sm:$0xff]
    %v544 = vld [vmem:[#allocation7 + $0x2b0] sm:$0xff]
    %v545 = vld [vmem:[#allocation7 + $0x2b8] sm:$0xff]
    %v546 = vld [vmem:[#allocation7 + $0x2c0] sm:$0xff]
    %v547 = vld [vmem:[#allocation7 + $0x2c8] sm:$0xff]
    %v548 = vld [vmem:[#allocation7 + $0x2d0] sm:$0xff]
    %v549 = vld [vmem:[#allocation7 + $0x2d8] sm:$0xff]
    %v550 = vld [vmem:[#allocation7 + $0x2e0] sm:$0xff]
    %v551 = vld [vmem:[#allocation7 + $0x2e8] sm:$0xff]
    %v552 = vld [vmem:[#allocation7 + $0x2f0] sm:$0xff]
    %v553 = vld [vmem:[#allocation7 + $0x2f8] sm:$0xff]
    %v554 = vld [vmem:[#allocation7 + $0x300] sm:$0xff]
    %v555 = vld [vmem:[#allocation7 + $0x308] sm:$0xff]
    %v556 = vld [vmem:[#allocation7 + $0x310] sm:$0xff]
    %v557 = vld [vmem:[#allocation7 + $0x318] sm:$0xff]
    %v558 = vld [vmem:[#allocation7 + $0x320] sm:$0xff]
    %v559 = vld [vmem:[#allocation7 + $0x328] sm:$0xff]
    %v560 = vld [vmem:[#allocation7 + $0x330] sm:$0xff]
    %v561 = vld [vmem:[#allocation7 + $0x338] sm:$0xff]
    %v562 = vld [vmem:[#allocation7 + $0x340] sm:$0xff]
    %v563 = vld [vmem:[#allocation7 + $0x348] sm:$0xff]
    %v564 = vld [vmem:[#allocation7 + $0x350] sm:$0xff]
    %v565 = vld [vmem:[#allocation7 + $0x358] sm:$0xff]
    %v566 = vld [vmem:[#allocation7 + $0x360] sm:$0xff]
    %v567 = vld [vmem:[#allocation7 + $0x368] sm:$0xff]
    %v568 = vld [vmem:[#allocation7 + $0x370] sm:$0xff]
    %v569 = vld [vmem:[#allocation7 + $0x378] sm:$0xff]
    %v570 = vld [vmem:[#allocation7 + $0x380] sm:$0xff]
    %v571 = vld [vmem:[#allocation7 + $0x388] sm:$0xff]
    %v572 = vld [vmem:[#allocation7 + $0x390] sm:$0xff]
    %v573 = vld [vmem:[#allocation7 + $0x398] sm:$0xff]
    %v574 = vld [vmem:[#allocation7 + $0x3a0] sm:$0xff]
    %v575 = vld [vmem:[#allocation7 + $0x3a8] sm:$0xff]
    %v576 = vld [vmem:[#allocation7 + $0x3b0] sm:$0xff]
    %v577 = vld [vmem:[#allocation7 + $0x3b8] sm:$0xff]
    %v578 = vld [vmem:[#allocation7 + $0x3c0] sm:$0xff]
    %v579 = vld [vmem:[#allocation7 + $0x3c8] sm:$0xff]
    %v580 = vld [vmem:[#allocation7 + $0x3d0] sm:$0xff]
    %v581 = vld [vmem:[#allocation7 + $0x3d8] sm:$0xff]
    %v582 = vld [vmem:[#allocation7 + $0x3e0] sm:$0xff]
    %v583 = vld [vmem:[#allocation7 + $0x3e8] sm:$0xff]
    %v584 = vld [vmem:[#allocation7 + $0x3f0] sm:$0xff]
    %v585 = vld [vmem:[#allocation7 + $0x3f8] sm:$0xff]
    %v586 = vld [vmem:[#allocation7 + $0x400] sm:$0xff]
    %v587 = vld [vmem:[#allocation7 + $0x408] sm:$0xff]
    %v588 = vld [vmem:[#allocation7 + $0x410] sm:$0xff]
    %v589 = vld [vmem:[#allocation7 + $0x418] sm:$0xff]
    %v590 = vld [vmem:[#allocation7 + $0x420] sm:$0xff]
    %v591 = vld [vmem:[#allocation7 + $0x428] sm:$0xff]
    %v592 = vld [vmem:[#allocation7 + $0x430] sm:$0xff]
    %v593 = vld [vmem:[#allocation7 + $0x438] sm:$0xff]
    %v594 = vld [vmem:[#allocation7 + $0x440] sm:$0xff]
    %v595 = vld [vmem:[#allocation7 + $0x448] sm:$0xff]
    %v596 = vld [vmem:[#allocation7 + $0x450] sm:$0xff]
    %v597 = vld [vmem:[#allocation7 + $0x458] sm:$0xff]
    %v598 = vld [vmem:[#allocation7 + $0x460] sm:$0xff]
    %v599 = vld [vmem:[#allocation7 + $0x468] sm:$0xff]
    %v600 = vld [vmem:[#allocation7 + $0x470] sm:$0xff]
    %v601 = vld [vmem:[#allocation7 + $0x478] sm:$0xff]
    %v602 = vld [vmem:[#allocation7 + $0x480] sm:$0xff]
    %v603 = vld [vmem:[#allocation7 + $0x488] sm:$0xff]
    %v604 = vld [vmem:[#allocation7 + $0x490] sm:$0xff]
    %v605 = vld [vmem:[#allocation7 + $0x498] sm:$0xff]
    %v606 = vld [vmem:[#allocation7 + $0x4a0] sm:$0xff]
    %v607 = vld [vmem:[#allocation7 + $0x4a8] sm:$0xff]
    %v608 = vld [vmem:[#allocation7 + $0x4b0] sm:$0xff]
    %v609 = vld [vmem:[#allocation7 + $0x4b8] sm:$0xff]
    %v610 = vld [vmem:[#allocation7 + $0x4c0] sm:$0xff]
    %v611 = vld [vmem:[#allocation7 + $0x4c8] sm:$0xff]
    %v612 = vld [vmem:[#allocation7 + $0x4d0] sm:$0xff]
    %v613 = vld [vmem:[#allocation7 + $0x4d8] sm:$0xff]
    %v614 = vld [vmem:[#allocation7 + $0x4e0] sm:$0xff]
    %v615 = vld [vmem:[#allocation7 + $0x4e8] sm:$0xff]
    %v616 = vld [vmem:[#allocation7 + $0x4f0] sm:$0xff]
    %v617 = vld [vmem:[#allocation7 + $0x4f8] sm:$0xff]
    %v618 = vld [vmem:[#allocation7 + $0x500] sm:$0xff]
    %v619 = vld [vmem:[#allocation7 + $0x508] sm:$0xff]
    %v620 = vld [vmem:[#allocation7 + $0x510] sm:$0xff]
    %v621 = vld [vmem:[#allocation7 + $0x518] sm:$0xff]
    %v622 = vld [vmem:[#allocation7 + $0x520] sm:$0xff]
    %v623 = vld [vmem:[#allocation7 + $0x528] sm:$0xff]
    %v624 = vld [vmem:[#allocation7 + $0x530] sm:$0xff]
    %v625 = vld [vmem:[#allocation7 + $0x538] sm:$0xff]
    %v626 = vld [vmem:[#allocation7 + $0x540] sm:$0xff]
    %v627 = vld [vmem:[#allocation7 + $0x548] sm:$0xff]
    %v628 = vld [vmem:[#allocation7 + $0x550] sm:$0xff]
    %v629 = vld [vmem:[#allocation7 + $0x558] sm:$0xff]
    %v630 = vld [vmem:[#allocation7 + $0x560] sm:$0xff]
    %v631 = vld [vmem:[#allocation7 + $0x568] sm:$0xff]
    %v632 = vld [vmem:[#allocation7 + $0x570] sm:$0xff]
    %v633 = vld [vmem:[#allocation7 + $0x578] sm:$0xff]
    %v634 = vld [vmem:[#allocation7 + $0x580] sm:$0xff]
    %v635 = vld [vmem:[#allocation7 + $0x588] sm:$0xff]
    %v636 = vld [vmem:[#allocation7 + $0x590] sm:$0xff]
    %v637 = vld [vmem:[#allocation7 + $0x598] sm:$0xff]
    %v638 = vld [vmem:[#allocation7 + $0x5a0] sm:$0xff]
    %v639 = vld [vmem:[#allocation7 + $0x5a8] sm:$0xff]
    %v640 = vld [vmem:[#allocation7 + $0x5b0] sm:$0xff]
    %v641 = vld [vmem:[#allocation7 + $0x5b8] sm:$0xff]
    %v642 = vld [vmem:[#allocation7 + $0x5c0] sm:$0xff]
    %v643 = vld [vmem:[#allocation7 + $0x5c8] sm:$0xff]
    %v644 = vld [vmem:[#allocation7 + $0x5d0] sm:$0xff]
    %v645 = vld [vmem:[#allocation7 + $0x5d8] sm:$0xff]
    %v646 = vld [vmem:[#allocation7 + $0x5e0] sm:$0xff]
    %v647 = vld [vmem:[#allocation7 + $0x5e8] sm:$0xff]
    %v648 = vld [vmem:[#allocation7 + $0x5f0] sm:$0xff]
    %v649 = vld [vmem:[#allocation7 + $0x5f8] sm:$0xff]
    %v650 = vld [vmem:[#allocation7 + $0x600] sm:$0xff]
    %v651 = vld [vmem:[#allocation7 + $0x608] sm:$0xff]
    %v652 = vld [vmem:[#allocation7 + $0x610] sm:$0xff]
    %v653 = vld [vmem:[#allocation7 + $0x618] sm:$0xff]
    %v654 = vld [vmem:[#allocation7 + $0x620] sm:$0xff]
    %v655 = vld [vmem:[#allocation7 + $0x628] sm:$0xff]
    %v656 = vld [vmem:[#allocation7 + $0x630] sm:$0xff]
    %v657 = vld [vmem:[#allocation7 + $0x638] sm:$0xff]
    %v658 = vld [vmem:[#allocation7 + $0x640] sm:$0xff]
    %v659 = vld [vmem:[#allocation7 + $0x648] sm:$0xff]
    %v660 = vld [vmem:[#allocation7 + $0x650] sm:$0xff]
    %v661 = vld [vmem:[#allocation7 + $0x658] sm:$0xff]
    %v662 = vld [vmem:[#allocation7 + $0x660] sm:$0xff]
    %v663 = vld [vmem:[#allocation7 + $0x668] sm:$0xff]
    %v664 = vld [vmem:[#allocation7 + $0x670] sm:$0xff]
    %v665 = vld [vmem:[#allocation7 + $0x678] sm:$0xff]
    %v666 = vld [vmem:[#allocation7 + $0x680] sm:$0xff]
    %v667 = vld [vmem:[#allocation7 + $0x688] sm:$0xff]
    %v668 = vld [vmem:[#allocation7 + $0x690] sm:$0xff]
    %v669 = vld [vmem:[#allocation7 + $0x698] sm:$0xff]
    %v670 = vld [vmem:[#allocation7 + $0x6a0] sm:$0xff]
    %v671 = vld [vmem:[#allocation7 + $0x6a8] sm:$0xff]
    %v672 = vld [vmem:[#allocation7 + $0x6b0] sm:$0xff]
    %v673 = vld [vmem:[#allocation7 + $0x6b8] sm:$0xff]
    %v674 = vld [vmem:[#allocation7 + $0x6c0] sm:$0xff]
    %v675 = vld [vmem:[#allocation7 + $0x6c8] sm:$0xff]
    %v676 = vld [vmem:[#allocation7 + $0x6d0] sm:$0xff]
    %v677 = vld [vmem:[#allocation7 + $0x6d8] sm:$0xff]
    %v678 = vld [vmem:[#allocation7 + $0x6e0] sm:$0xff]
    %v679 = vld [vmem:[#allocation7 + $0x6e8] sm:$0xff]
    %v680 = vld [vmem:[#allocation7 + $0x6f0] sm:$0xff]
    %v681 = vld [vmem:[#allocation7 + $0x6f8] sm:$0xff]
    %v682 = vld [vmem:[#allocation7 + $0x700] sm:$0xff]
    %v683 = vld [vmem:[#allocation7 + $0x708] sm:$0xff]
    %v684 = vld [vmem:[#allocation7 + $0x710] sm:$0xff]
    %v685 = vld [vmem:[#allocation7 + $0x718] sm:$0xff]
    %v686 = vld [vmem:[#allocation7 + $0x720] sm:$0xff]
    %v687 = vld [vmem:[#allocation7 + $0x728] sm:$0xff]
    %v688 = vld [vmem:[#allocation7 + $0x730] sm:$0xff]
    %v689 = vld [vmem:[#allocation7 + $0x738] sm:$0xff]
    %v690 = vld [vmem:[#allocation7 + $0x740] sm:$0xff]
    %v691 = vld [vmem:[#allocation7 + $0x748] sm:$0xff]
    %v692 = vld [vmem:[#allocation7 + $0x750] sm:$0xff]
    %v693 = vld [vmem:[#allocation7 + $0x758] sm:$0xff]
    %v694 = vld [vmem:[#allocation7 + $0x760] sm:$0xff]
    %v695 = vld [vmem:[#allocation7 + $0x768] sm:$0xff]
    %v696 = vld [vmem:[#allocation7 + $0x770] sm:$0xff]
    %v697 = vld [vmem:[#allocation7 + $0x778] sm:$0xff]
    %v698 = vld [vmem:[#allocation7 + $0x780] sm:$0xff]
    %v699 = vld [vmem:[#allocation7 + $0x788] sm:$0xff]
    %v700 = vld [vmem:[#allocation7 + $0x790] sm:$0xff]
    %v701 = vld [vmem:[#allocation7 + $0x798] sm:$0xff]
    %v702 = vld [vmem:[#allocation7 + $0x7a0] sm:$0xff]
    %v703 = vld [vmem:[#allocation7 + $0x7a8] sm:$0xff]
    %v704 = vld [vmem:[#allocation7 + $0x7b0] sm:$0xff]
    %v705 = vld [vmem:[#allocation7 + $0x7b8] sm:$0xff]
    %v706 = vld [vmem:[#allocation7 + $0x7c0] sm:$0xff]
    %v707 = vld [vmem:[#allocation7 + $0x7c8] sm:$0xff]
    %v708 = vld [vmem:[#allocation7 + $0x7d0] sm:$0xff]
    %v709 = vld [vmem:[#allocation7 + $0x7d8] sm:$0xff]
    %v710 = vld [vmem:[#allocation7 + $0x7e0] sm:$0xff]
    %v711 = vld [vmem:[#allocation7 + $0x7e8] sm:$0xff]
    %v712 = vld [vmem:[#allocation7 + $0x7f0] sm:$0xff]
    %v713 = vld [vmem:[#allocation7 + $0x7f8] sm:$0xff]
    %v714 = vld [vmem:[#allocation7 + $0x800] sm:$0xff]
    %v715 = vld [vmem:[#allocation7 + $0x808] sm:$0xff]
    %v716 = vld [vmem:[#allocation7 + $0x810] sm:$0xff]
    %v717 = vld [vmem:[#allocation7 + $0x818] sm:$0xff]
    %v718 = vld [vmem:[#allocation7 + $0x820] sm:$0xff]
    %v719 = vld [vmem:[#allocation7 + $0x828] sm:$0xff]
    %v720 = vld [vmem:[#allocation7 + $0x830] sm:$0xff]
    %v721 = vld [vmem:[#allocation7 + $0x838] sm:$0xff]
    %v722 = vld [vmem:[#allocation7 + $0x840] sm:$0xff]
    %v723 = vld [vmem:[#allocation7 + $0x848] sm:$0xff]
    %v724 = vld [vmem:[#allocation7 + $0x850] sm:$0xff]
    %v725 = vld [vmem:[#allocation7 + $0x858] sm:$0xff]
    %v726 = vld [vmem:[#allocation7 + $0x860] sm:$0xff]
    %v727 = vld [vmem:[#allocation7 + $0x868] sm:$0xff]
    %v728 = vld [vmem:[#allocation7 + $0x870] sm:$0xff]
    %v729 = vld [vmem:[#allocation7 + $0x878] sm:$0xff]
    %v730 = vld [vmem:[#allocation7 + $0x880] sm:$0xff]
    %v731 = vld [vmem:[#allocation7 + $0x888] sm:$0xff]
    %v732 = vld [vmem:[#allocation7 + $0x890] sm:$0xff]
    %v733 = vld [vmem:[#allocation7 + $0x898] sm:$0xff]
    %v734 = vld [vmem:[#allocation7 + $0x8a0] sm:$0xff]
    %v735 = vld [vmem:[#allocation7 + $0x8a8] sm:$0xff]
    %v736 = vld [vmem:[#allocation7 + $0x8b0] sm:$0xff]
    %v737 = vld [vmem:[#allocation7 + $0x8b8] sm:$0xff]
    %v738 = vld [vmem:[#allocation7 + $0x8c0] sm:$0xff]
    %v739 = vld [vmem:[#allocation7 + $0x8c8] sm:$0xff]
    %v740 = vld [vmem:[#allocation7 + $0x8d0] sm:$0xff]
    %v741 = vld [vmem:[#allocation7 + $0x8d8] sm:$0xff]
    %v742 = vld [vmem:[#allocation7 + $0x8e0] sm:$0xff]
    %v743 = vld [vmem:[#allocation7 + $0x8e8] sm:$0xff]
    %v744 = vld [vmem:[#allocation7 + $0x8f0] sm:$0xff]
    %v745 = vld [vmem:[#allocation7 + $0x8f8] sm:$0xff]
    %v746 = vld [vmem:[#allocation7 + $0x900] sm:$0xff]
    %v747 = vld [vmem:[#allocation7 + $0x908] sm:$0xff]
    %v748 = vld [vmem:[#allocation7 + $0x910] sm:$0xff]
    %v749 = vld [vmem:[#allocation7 + $0x918] sm:$0xff]
    %v750 = vld [vmem:[#allocation7 + $0x920] sm:$0xff]
    %v751 = vld [vmem:[#allocation7 + $0x928] sm:$0xff]
    %v752 = vld [vmem:[#allocation7 + $0x930] sm:$0xff]
    %v753 = vld [vmem:[#allocation7 + $0x938] sm:$0xff]
    %v754 = vld [vmem:[#allocation7 + $0x940] sm:$0xff]
    %v755 = vld [vmem:[#allocation7 + $0x948] sm:$0xff]
    %v756 = vld [vmem:[#allocation7 + $0x950] sm:$0xff]
    %v757 = vld [vmem:[#allocation7 + $0x958] sm:$0xff]
    %v758 = vld [vmem:[#allocation7 + $0x960] sm:$0xff]
    %v759 = vld [vmem:[#allocation7 + $0x968] sm:$0xff]
    %v760 = vld [vmem:[#allocation7 + $0x970] sm:$0xff]
    %v761 = vld [vmem:[#allocation7 + $0x978] sm:$0xff]
    %v762 = vld [vmem:[#allocation7 + $0x980] sm:$0xff]
    %v763 = vld [vmem:[#allocation7 + $0x988] sm:$0xff]
    %v764 = vld [vmem:[#allocation7 + $0x990] sm:$0xff]
    %v765 = vld [vmem:[#allocation7 + $0x998] sm:$0xff]
    %v766 = vld [vmem:[#allocation7 + $0x9a0] sm:$0xff]
    %v767 = vld [vmem:[#allocation7 + $0x9a8] sm:$0xff]
    %v768 = vld [vmem:[#allocation7 + $0x9b0] sm:$0xff]
    %v769 = vld [vmem:[#allocation7 + $0x9b8] sm:$0xff]
    %v770 = vld [vmem:[#allocation7 + $0x9c0] sm:$0xff]
    %v771 = vld [vmem:[#allocation7 + $0x9c8] sm:$0xff]
    %v772 = vld [vmem:[#allocation7 + $0x9d0] sm:$0xff]
    %v773 = vld [vmem:[#allocation7 + $0x9d8] sm:$0xff]
    %v774 = vld [vmem:[#allocation7 + $0x9e0] sm:$0xff]
    %v775 = vld [vmem:[#allocation7 + $0x9e8] sm:$0xff]
    %v776 = vld [vmem:[#allocation7 + $0x9f0] sm:$0xff]
    %v777 = vld [vmem:[#allocation7 + $0x9f8] sm:$0xff]
    %v778 = vld [vmem:[#allocation7 + $0xa00] sm:$0xff]
    %v779 = vld [vmem:[#allocation7 + $0xa08] sm:$0xff]
    %v780 = vld [vmem:[#allocation7 + $0xa10] sm:$0xff]
    %v781 = vld [vmem:[#allocation7 + $0xa18] sm:$0xff]
    %v782 = vld [vmem:[#allocation7 + $0xa20] sm:$0xff]
    %v783 = vld [vmem:[#allocation7 + $0xa28] sm:$0xff]
    %v784 = vld [vmem:[#allocation7 + $0xa30] sm:$0xff]
    %v785 = vld [vmem:[#allocation7 + $0xa38] sm:$0xff]
    %v786 = vld [vmem:[#allocation7 + $0xa40] sm:$0xff]
    %v787 = vld [vmem:[#allocation7 + $0xa48] sm:$0xff]
    %v788 = vld [vmem:[#allocation7 + $0xa50] sm:$0xff]
    %v789 = vld [vmem:[#allocation7 + $0xa58] sm:$0xff]
    %v790 = vld [vmem:[#allocation7 + $0xa60] sm:$0xff]
    %v791 = vld [vmem:[#allocation7 + $0xa68] sm:$0xff]
    %v792 = vld [vmem:[#allocation7 + $0xa70] sm:$0xff]
    %v793 = vld [vmem:[#allocation7 + $0xa78] sm:$0xff]
    %v794 = vld [vmem:[#allocation7 + $0xa80] sm:$0xff]
    %v795 = vld [vmem:[#allocation7 + $0xa88] sm:$0xff]
    %v796 = vld [vmem:[#allocation7 + $0xa90] sm:$0xff]
    %v797 = vld [vmem:[#allocation7 + $0xa98] sm:$0xff]
    %v798 = vld [vmem:[#allocation7 + $0xaa0] sm:$0xff]
    %v799 = vld [vmem:[#allocation7 + $0xaa8] sm:$0xff]
    %v800 = vld [vmem:[#allocation7 + $0xab0] sm:$0xff]
    %v801 = vld [vmem:[#allocation7 + $0xab8] sm:$0xff]
    %v802 = vld [vmem:[#allocation7 + $0xac0] sm:$0xff]
    %v803 = vld [vmem:[#allocation7 + $0xac8] sm:$0xff]
    %v804 = vld [vmem:[#allocation7 + $0xad0] sm:$0xff]
    %v805 = vld [vmem:[#allocation7 + $0xad8] sm:$0xff]
    %v806 = vld [vmem:[#allocation7 + $0xae0] sm:$0xff]
    %v807 = vld [vmem:[#allocation7 + $0xae8] sm:$0xff]
    %v808 = vld [vmem:[#allocation7 + $0xaf0] sm:$0xff]
    %v809 = vld [vmem:[#allocation7 + $0xaf8] sm:$0xff]
    %v810 = vld [vmem:[#allocation7 + $0xb00] sm:$0xff]
    %v811 = vld [vmem:[#allocation7 + $0xb08] sm:$0xff]
    %v812 = vld [vmem:[#allocation7 + $0xb10] sm:$0xff]
    %v813 = vld [vmem:[#allocation7 + $0xb18] sm:$0xff]
    %v814 = vld [vmem:[#allocation7 + $0xb20] sm:$0xff]
    %v815 = vld [vmem:[#allocation7 + $0xb28] sm:$0xff]
    %v816 = vld [vmem:[#allocation7 + $0xb30] sm:$0xff]
    %v817 = vld [vmem:[#allocation7 + $0xb38] sm:$0xff]
    %v818 = vld [vmem:[#allocation7 + $0xb40] sm:$0xff]
    %v819 = vld [vmem:[#allocation7 + $0xb48] sm:$0xff]
    %v820 = vld [vmem:[#allocation7 + $0xb50] sm:$0xff]
    %v821 = vld [vmem:[#allocation7 + $0xb58] sm:$0xff]
    %v822 = vld [vmem:[#allocation7 + $0xb60] sm:$0xff]
    %v823 = vld [vmem:[#allocation7 + $0xb68] sm:$0xff]
    %v824 = vld [vmem:[#allocation7 + $0xb70] sm:$0xff]
    %v825 = vld [vmem:[#allocation7 + $0xb78] sm:$0xff]
    %v826 = vld [vmem:[#allocation7 + $0xb80] sm:$0xff]
    %v827 = vld [vmem:[#allocation7 + $0xb88] sm:$0xff]
    %v828 = vld [vmem:[#allocation7 + $0xb90] sm:$0xff]
    %v829 = vld [vmem:[#allocation7 + $0xb98] sm:$0xff]
    %v830 = vld [vmem:[#allocation7 + $0xba0] sm:$0xff]
    %v831 = vld [vmem:[#allocation7 + $0xba8] sm:$0xff]
    %v832 = vld [vmem:[#allocation7 + $0xbb0] sm:$0xff]
    %v833 = vld [vmem:[#allocation7 + $0xbb8] sm:$0xff]
    %v834 = vld [vmem:[#allocation7 + $0xbc0] sm:$0xff]
    %v835 = vld [vmem:[#allocation7 + $0xbc8] sm:$0xff]
    %v836 = vld [vmem:[#allocation7 + $0xbd0] sm:$0xff]
    %v837 = vld [vmem:[#allocation7 + $0xbd8] sm:$0xff]
    %v838 = vld [vmem:[#allocation7 + $0xbe0] sm:$0xff]
    %v839 = vld [vmem:[#allocation7 + $0xbe8] sm:$0xff]
    %v840 = vld [vmem:[#allocation7 + $0xbf0] sm:$0xff]
    %v841 = vld [vmem:[#allocation7 + $0xbf8] sm:$0xff]
    %v842 = vld [vmem:[#allocation7 + $0xc00] sm:$0xff]
    %v843 = vld [vmem:[#allocation7 + $0xc08] sm:$0xff]
    %v844 = vld [vmem:[#allocation7 + $0xc10] sm:$0xff]
    %v845 = vld [vmem:[#allocation7 + $0xc18] sm:$0xff]
    %v846 = vld [vmem:[#allocation7 + $0xc20] sm:$0xff]
    %v847 = vld [vmem:[#allocation7 + $0xc28] sm:$0xff]
    %v848 = vld [vmem:[#allocation7 + $0xc30] sm:$0xff]
    %v849 = vld [vmem:[#allocation7 + $0xc38] sm:$0xff]
    %v850 = vld [vmem:[#allocation7 + $0xc40] sm:$0xff]
    %v851 = vld [vmem:[#allocation7 + $0xc48] sm:$0xff]
    %v852 = vld [vmem:[#allocation7 + $0xc50] sm:$0xff]
    %v853 = vld [vmem:[#allocation7 + $0xc58] sm:$0xff]
    %v854 = vld [vmem:[#allocation7 + $0xc60] sm:$0xff]
    %v855 = vld [vmem:[#allocation7 + $0xc68] sm:$0xff]
    %v856 = vld [vmem:[#allocation7 + $0xc70] sm:$0xff]
    %v857 = vld [vmem:[#allocation7 + $0xc78] sm:$0xff]
    %v858 = vld [vmem:[#allocation7 + $0xc80] sm:$0xff]
    %v859 = vld [vmem:[#allocation7 + $0xc88] sm:$0xff]
    %v860 = vld [vmem:[#allocation7 + $0xc90] sm:$0xff]
    %v861 = vld [vmem:[#allocation7 + $0xc98] sm:$0xff]
    %v862 = vld [vmem:[#allocation7 + $0xca0] sm:$0xff]
    %v863 = vld [vmem:[#allocation7 + $0xca8] sm:$0xff]
    %v864 = vld [vmem:[#allocation7 + $0xcb0] sm:$0xff]
    %v865 = vld [vmem:[#allocation7 + $0xcb8] sm:$0xff]
    %v866 = vld [vmem:[#allocation7 + $0xcc0] sm:$0xff]
    %v867 = vld [vmem:[#allocation7 + $0xcc8] sm:$0xff]
    %v868 = vld [vmem:[#allocation7 + $0xcd0] sm:$0xff]
    %v869 = vld [vmem:[#allocation7 + $0xcd8] sm:$0xff]
    %v870 = vld [vmem:[#allocation7 + $0xce0] sm:$0xff]
    %v871 = vld [vmem:[#allocation7 + $0xce8] sm:$0xff]
    %v872 = vld [vmem:[#allocation7 + $0xcf0] sm:$0xff]
    %v873 = vld [vmem:[#allocation7 + $0xcf8] sm:$0xff]
    %v874 = vld [vmem:[#allocation7 + $0xd00] sm:$0xff]
    %v875 = vld [vmem:[#allocation7 + $0xd08] sm:$0xff]
    %v876 = vld [vmem:[#allocation7 + $0xd10] sm:$0xff]
    %v877 = vld [vmem:[#allocation7 + $0xd18] sm:$0xff]
    %v878 = vld [vmem:[#allocation7 + $0xd20] sm:$0xff]
    %v879 = vld [vmem:[#allocation7 + $0xd28] sm:$0xff]
    %v880 = vld [vmem:[#allocation7 + $0xd30] sm:$0xff]
    %v881 = vld [vmem:[#allocation7 + $0xd38] sm:$0xff]
    %v882 = vld [vmem:[#allocation7 + $0xd40] sm:$0xff]
    %v883 = vld [vmem:[#allocation7 + $0xd48] sm:$0xff]
    %v884 = vld [vmem:[#allocation7 + $0xd50] sm:$0xff]
    %v885 = vld [vmem:[#allocation7 + $0xd58] sm:$0xff]
    %v886 = vld [vmem:[#allocation7 + $0xd60] sm:$0xff]
    %v887 = vld [vmem:[#allocation7 + $0xd68] sm:$0xff]
    %v888 = vld [vmem:[#allocation7 + $0xd70] sm:$0xff]
    %v889 = vld [vmem:[#allocation7 + $0xd78] sm:$0xff]
    %v890 = vld [vmem:[#allocation7 + $0xd80] sm:$0xff]
    %v891 = vld [vmem:[#allocation7 + $0xd88] sm:$0xff]
    %v892 = vld [vmem:[#allocation7 + $0xd90] sm:$0xff]
    %v893 = vld [vmem:[#allocation7 + $0xd98] sm:$0xff]
    %v894 = vld [vmem:[#allocation7 + $0xda0] sm:$0xff]
    %v895 = vld [vmem:[#allocation7 + $0xda8] sm:$0xff]
    %v896 = vld [vmem:[#allocation7 + $0xdb0] sm:$0xff]
    %v897 = vld [vmem:[#allocation7 + $0xdb8] sm:$0xff]
    %v898 = vld [vmem:[#allocation7 + $0xdc0] sm:$0xff]
    %v899 = vld [vmem:[#allocation7 + $0xdc8] sm:$0xff]
    %v900 = vld [vmem:[#allocation7 + $0xdd0] sm:$0xff]
    %v901 = vld [vmem:[#allocation7 + $0xdd8] sm:$0xff]
    %v902 = vld [vmem:[#allocation7 + $0xde0] sm:$0xff]
    %v903 = vld [vmem:[#allocation7 + $0xde8] sm:$0xff]
    %v904 = vld [vmem:[#allocation7 + $0xdf0] sm:$0xff]
    %v905 = vld [vmem:[#allocation7 + $0xdf8] sm:$0xff]
    %v906 = vld [vmem:[#allocation7 + $0xe00] sm:$0xff]
    %v907 = vld [vmem:[#allocation7 + $0xe08] sm:$0xff]
    %v908 = vld [vmem:[#allocation7 + $0xe10] sm:$0xff]
    %v909 = vld [vmem:[#allocation7 + $0xe18] sm:$0xff]
    %v910 = vld [vmem:[#allocation7 + $0xe20] sm:$0xff]
    %v911 = vld [vmem:[#allocation7 + $0xe28] sm:$0xff]
    %v912 = vld [vmem:[#allocation7 + $0xe30] sm:$0xff]
    %v913 = vld [vmem:[#allocation7 + $0xe38] sm:$0xff]
    %v914 = vld [vmem:[#allocation7 + $0xe40] sm:$0xff]
    %v915 = vld [vmem:[#allocation7 + $0xe48] sm:$0xff]
    %v916 = vld [vmem:[#allocation7 + $0xe50] sm:$0xff]
    %v917 = vld [vmem:[#allocation7 + $0xe58] sm:$0xff]
    %v918 = vld [vmem:[#allocation7 + $0xe60] sm:$0xff]
    %v919 = vld [vmem:[#allocation7 + $0xe68] sm:$0xff]
    %v920 = vld [vmem:[#allocation7 + $0xe70] sm:$0xff]
    %v921 = vld [vmem:[#allocation7 + $0xe78] sm:$0xff]
    %v922 = vld [vmem:[#allocation7 + $0xe80] sm:$0xff]
    %v923 = vld [vmem:[#allocation7 + $0xe88] sm:$0xff]
    %v924 = vld [vmem:[#allocation7 + $0xe90] sm:$0xff]
    %v925 = vld [vmem:[#allocation7 + $0xe98] sm:$0xff]
    %v926 = vld [vmem:[#allocation7 + $0xea0] sm:$0xff]
    %v927 = vld [vmem:[#allocation7 + $0xea8] sm:$0xff]
    %v928 = vld [vmem:[#allocation7 + $0xeb0] sm:$0xff]
    %v929 = vld [vmem:[#allocation7 + $0xeb8] sm:$0xff]
    %v930 = vld [vmem:[#allocation7 + $0xec0] sm:$0xff]
    %v931 = vld [vmem:[#allocation7 + $0xec8] sm:$0xff]
    %v932 = vld [vmem:[#allocation7 + $0xed0] sm:$0xff]
    %v933 = vld [vmem:[#allocation7 + $0xed8] sm:$0xff]
    %v934 = vld [vmem:[#allocation7 + $0xee0] sm:$0xff]
    %v935 = vld [vmem:[#allocation7 + $0xee8] sm:$0xff]
    %v936 = vld [vmem:[#allocation7 + $0xef0] sm:$0xff]
    %v937 = vld [vmem:[#allocation7 + $0xef8] sm:$0xff]
    %v938 = vld [vmem:[#allocation7 + $0xf00] sm:$0xff]
    %v939 = vld [vmem:[#allocation7 + $0xf08] sm:$0xff]
    %v940 = vld [vmem:[#allocation7 + $0xf10] sm:$0xff]
    %v941 = vld [vmem:[#allocation7 + $0xf18] sm:$0xff]
    %v942 = vld [vmem:[#allocation7 + $0xf20] sm:$0xff]
    %v943 = vld [vmem:[#allocation7 + $0xf28] sm:$0xff]
    %v944 = vld [vmem:[#allocation7 + $0xf30] sm:$0xff]
    %v945 = vld [vmem:[#allocation7 + $0xf38] sm:$0xff]
    %v946 = vld [vmem:[#allocation7 + $0xf40] sm:$0xff]
    %v947 = vld [vmem:[#allocation7 + $0xf48] sm:$0xff]
    %v948 = vld [vmem:[#allocation7 + $0xf50] sm:$0xff]
    %v949 = vld [vmem:[#allocation7 + $0xf58] sm:$0xff]
    %v950 = vld [vmem:[#allocation7 + $0xf60] sm:$0xff]
    %v951 = vld [vmem:[#allocation7 + $0xf68] sm:$0xff]
    %v952 = vld [vmem:[#allocation7 + $0xf70] sm:$0xff]
    %v953 = vld [vmem:[#allocation7 + $0xf78] sm:$0xff]
    %v954 = vld [vmem:[#allocation7 + $0xf80] sm:$0xff]
    %v955 = vld [vmem:[#allocation7 + $0xf88] sm:$0xff]
    %v956 = vld [vmem:[#allocation7 + $0xf90] sm:$0xff]
    %v957 = vld [vmem:[#allocation7 + $0xf98] sm:$0xff]
    %v958 = vld [vmem:[#allocation7 + $0xfa0] sm:$0xff]
    %v959 = vld [vmem:[#allocation7 + $0xfa8] sm:$0xff]
    %v960 = vld [vmem:[#allocation7 + $0xfb0] sm:$0xff]
    %v961 = vld [vmem:[#allocation7 + $0xfb8] sm:$0xff]
    %v962 = vld [vmem:[#allocation7 + $0xfc0] sm:$0xff]
    %v963 = vld [vmem:[#allocation7 + $0xfc8] sm:$0xff]
    %v964 = vld [vmem:[#allocation7 + $0xfd0] sm:$0xff]
    %v965 = vld [vmem:[#allocation7 + $0xfd8] sm:$0xff]
    %v966 = vld [vmem:[#allocation7 + $0xfe0] sm:$0xff]
    %v967 = vld [vmem:[#allocation7 + $0xfe8] sm:$0xff]
    %v968 = vld [vmem:[#allocation7 + $0xff0] sm:$0xff]
    %v969 = vld [vmem:[#allocation7 + $0xff8] sm:$0xff]
    %v970 = vlaneseq
    %v971 = vshrl.u32 %v970, 7
    %v972 = vsub.s32 1, %v971
    %v973 = vrot.slane %v137, %v972
    %v974 = vlaneseq
    %v975 = vshrl.u32 %v974, 7
    %v976 = vsub.s32 1, %v975
    %v977 = vrot.slane %v138, %v976
    %v978 = vlaneseq
    %v979 = vshrl.u32 %v978, 7
    %v980 = vsub.s32 1, %v979
    %v981 = vrot.slane %v139, %v980
    %v982 = vlaneseq
    %v983 = vshrl.u32 %v982, 7
    %v984 = vsub.s32 1, %v983
    %v985 = vrot.slane %v140, %v984
    %v986 = vlaneseq
    %v987 = vshrl.u32 %v986, 7
    %v988 = vsub.s32 1, %v987
    %v989 = vrot.slane %v141, %v988
    %v990 = vlaneseq
    %v991 = vshrl.u32 %v990, 7
    %v992 = vsub.s32 1, %v991
    %v993 = vrot.slane %v142, %v992
    %v994 = vlaneseq
    %v995 = vshrl.u32 %v994, 7
    %v996 = vsub.s32 1, %v995
    %v997 = vrot.slane %v143, %v996
    %v998 = vlaneseq
    %v999 = vshrl.u32 %v998, 7
    %v1000 = vsub.s32 1, %v999
    %v1001 = vrot.slane %v144, %v1000
    %v1514 = vunpack.c.l.b16 %v458
    %v1515 = vunpack.c.h.b16 %v458
    %v1516 = vunpack.c.l.b16 %v459
    %v1517 = vunpack.c.h.b16 %v459
    %v1518 = vunpack.c.l.b16 %v460
    %v1519 = vunpack.c.h.b16 %v460
    %v1520 = vunpack.c.l.b16 %v461
    %v1521 = vunpack.c.h.b16 %v461
    %v1522 = vunpack.c.l.b16 %v462
    %v1523 = vunpack.c.h.b16 %v462
    %v1524 = vunpack.c.l.b16 %v463
    %v1525 = vunpack.c.h.b16 %v463
    %v1526 = vunpack.c.l.b16 %v464
    %v1527 = vunpack.c.h.b16 %v464
    %v1528 = vunpack.c.l.b16 %v465
    %v1529 = vunpack.c.h.b16 %v465
    %v1530 = vunpack.c.l.b16 %v466
    %v1531 = vunpack.c.h.b16 %v466
    %v1532 = vunpack.c.l.b16 %v467
    %v1533 = vunpack.c.h.b16 %v467
    %v1534 = vunpack.c.l.b16 %v468
    %v1535 = vunpack.c.h.b16 %v468
    %v1536 = vunpack.c.l.b16 %v469
    %v1537 = vunpack.c.h.b16 %v469
    %v1538 = vunpack.c.l.b16 %v470
    %v1539 = vunpack.c.h.b16 %v470
    %v1540 = vunpack.c.l.b16 %v471
    %v1541 = vunpack.c.h.b16 %v471
    %v1542 = vunpack.c.l.b16 %v472
    %v1543 = vunpack.c.h.b16 %v472
    %v1544 = vunpack.c.l.b16 %v473
    %v1545 = vunpack.c.h.b16 %v473
    %v1546 = vunpack.c.l.b16 %v474
    %v1547 = vunpack.c.h.b16 %v474
    %v1548 = vunpack.c.l.b16 %v475
    %v1549 = vunpack.c.h.b16 %v475
    %v1550 = vunpack.c.l.b16 %v476
    %v1551 = vunpack.c.h.b16 %v476
    %v1552 = vunpack.c.l.b16 %v477
    %v1553 = vunpack.c.h.b16 %v477
    %v1554 = vunpack.c.l.b16 %v478
    %v1555 = vunpack.c.h.b16 %v478
    %v1556 = vunpack.c.l.b16 %v479
    %v1557 = vunpack.c.h.b16 %v479
    %v1558 = vunpack.c.l.b16 %v480
    %v1559 = vunpack.c.h.b16 %v480
    %v1560 = vunpack.c.l.b16 %v481
    %v1561 = vunpack.c.h.b16 %v481
    %v1562 = vunpack.c.l.b16 %v482
    %v1563 = vunpack.c.h.b16 %v482
    %v1564 = vunpack.c.l.b16 %v483
    %v1565 = vunpack.c.h.b16 %v483
    %v1566 = vunpack.c.l.b16 %v484
    %v1567 = vunpack.c.h.b16 %v484
    %v1568 = vunpack.c.l.b16 %v485
    %v1569 = vunpack.c.h.b16 %v485
    %v1570 = vunpack.c.l.b16 %v486
    %v1571 = vunpack.c.h.b16 %v486
    %v1572 = vunpack.c.l.b16 %v487
    %v1573 = vunpack.c.h.b16 %v487
    %v1574 = vunpack.c.l.b16 %v488
    %v1575 = vunpack.c.h.b16 %v488
    %v1576 = vunpack.c.l.b16 %v489
    %v1577 = vunpack.c.h.b16 %v489
    %v1578 = vunpack.c.l.b16 %v490
    %v1579 = vunpack.c.h.b16 %v490
    %v1580 = vunpack.c.l.b16 %v491
    %v1581 = vunpack.c.h.b16 %v491
    %v1582 = vunpack.c.l.b16 %v492
    %v1583 = vunpack.c.h.b16 %v492
    %v1584 = vunpack.c.l.b16 %v493
    %v1585 = vunpack.c.h.b16 %v493
    %v1586 = vunpack.c.l.b16 %v494
    %v1587 = vunpack.c.h.b16 %v494
    %v1588 = vunpack.c.l.b16 %v495
    %v1589 = vunpack.c.h.b16 %v495
    %v1590 = vunpack.c.l.b16 %v496
    %v1591 = vunpack.c.h.b16 %v496
    %v1592 = vunpack.c.l.b16 %v497
    %v1593 = vunpack.c.h.b16 %v497
    %v1594 = vunpack.c.l.b16 %v498
    %v1595 = vunpack.c.h.b16 %v498
    %v1596 = vunpack.c.l.b16 %v499
    %v1597 = vunpack.c.h.b16 %v499
    %v1598 = vunpack.c.l.b16 %v500
    %v1599 = vunpack.c.h.b16 %v500
    %v1600 = vunpack.c.l.b16 %v501
    %v1601 = vunpack.c.h.b16 %v501
    %v1602 = vunpack.c.l.b16 %v502
    %v1603 = vunpack.c.h.b16 %v502
    %v1604 = vunpack.c.l.b16 %v503
    %v1605 = vunpack.c.h.b16 %v503
    %v1606 = vunpack.c.l.b16 %v504
    %v1607 = vunpack.c.h.b16 %v504
    %v1608 = vunpack.c.l.b16 %v505
    %v1609 = vunpack.c.h.b16 %v505
    %v1610 = vunpack.c.l.b16 %v506
    %v1611 = vunpack.c.h.b16 %v506
    %v1612 = vunpack.c.l.b16 %v507
    %v1613 = vunpack.c.h.b16 %v507
    %v1614 = vunpack.c.l.b16 %v508
    %v1615 = vunpack.c.h.b16 %v508
    %v1616 = vunpack.c.l.b16 %v509
    %v1617 = vunpack.c.h.b16 %v509
    %v1618 = vunpack.c.l.b16 %v510
    %v1619 = vunpack.c.h.b16 %v510
    %v1620 = vunpack.c.l.b16 %v511
    %v1621 = vunpack.c.h.b16 %v511
    %v1622 = vunpack.c.l.b16 %v512
    %v1623 = vunpack.c.h.b16 %v512
    %v1624 = vunpack.c.l.b16 %v513
    %v1625 = vunpack.c.h.b16 %v513
    %v1626 = vunpack.c.l.b16 %v514
    %v1627 = vunpack.c.h.b16 %v514
    %v1628 = vunpack.c.l.b16 %v515
    %v1629 = vunpack.c.h.b16 %v515
    %v1630 = vunpack.c.l.b16 %v516
    %v1631 = vunpack.c.h.b16 %v516
    %v1632 = vunpack.c.l.b16 %v517
    %v1633 = vunpack.c.h.b16 %v517
    %v1634 = vunpack.c.l.b16 %v518
    %v1635 = vunpack.c.h.b16 %v518
    %v1636 = vunpack.c.l.b16 %v519
    %v1637 = vunpack.c.h.b16 %v519
    %v1638 = vunpack.c.l.b16 %v520
    %v1639 = vunpack.c.h.b16 %v520
    %v1640 = vunpack.c.l.b16 %v521
    %v1641 = vunpack.c.h.b16 %v521
    %v1642 = vunpack.c.l.b16 %v522
    %v1643 = vunpack.c.h.b16 %v522
    %v1644 = vunpack.c.l.b16 %v523
    %v1645 = vunpack.c.h.b16 %v523
    %v1646 = vunpack.c.l.b16 %v524
    %v1647 = vunpack.c.h.b16 %v524
    %v1648 = vunpack.c.l.b16 %v525
    %v1649 = vunpack.c.h.b16 %v525
    %v1650 = vunpack.c.l.b16 %v526
    %v1651 = vunpack.c.h.b16 %v526
    %v1652 = vunpack.c.l.b16 %v527
    %v1653 = vunpack.c.h.b16 %v527
    %v1654 = vunpack.c.l.b16 %v528
    %v1655 = vunpack.c.h.b16 %v528
    %v1656 = vunpack.c.l.b16 %v529
    %v1657 = vunpack.c.h.b16 %v529
    %v1658 = vunpack.c.l.b16 %v530
    %v1659 = vunpack.c.h.b16 %v530
    %v1660 = vunpack.c.l.b16 %v531
    %v1661 = vunpack.c.h.b16 %v531
    %v1662 = vunpack.c.l.b16 %v532
    %v1663 = vunpack.c.h.b16 %v532
    %v1664 = vunpack.c.l.b16 %v533
    %v1665 = vunpack.c.h.b16 %v533
    %v1666 = vunpack.c.l.b16 %v534
    %v1667 = vunpack.c.h.b16 %v534
    %v1668 = vunpack.c.l.b16 %v535
    %v1669 = vunpack.c.h.b16 %v535
    %v1670 = vunpack.c.l.b16 %v536
    %v1671 = vunpack.c.h.b16 %v536
    %v1672 = vunpack.c.l.b16 %v537
    %v1673 = vunpack.c.h.b16 %v537
    %v1674 = vunpack.c.l.b16 %v538
    %v1675 = vunpack.c.h.b16 %v538
    %v1676 = vunpack.c.l.b16 %v539
    %v1677 = vunpack.c.h.b16 %v539
    %v1678 = vunpack.c.l.b16 %v540
    %v1679 = vunpack.c.h.b16 %v540
    %v1680 = vunpack.c.l.b16 %v541
    %v1681 = vunpack.c.h.b16 %v541
    %v1682 = vunpack.c.l.b16 %v542
    %v1683 = vunpack.c.h.b16 %v542
    %v1684 = vunpack.c.l.b16 %v543
    %v1685 = vunpack.c.h.b16 %v543
    %v1686 = vunpack.c.l.b16 %v544
    %v1687 = vunpack.c.h.b16 %v544
    %v1688 = vunpack.c.l.b16 %v545
    %v1689 = vunpack.c.h.b16 %v545
    %v1690 = vunpack.c.l.b16 %v546
    %v1691 = vunpack.c.h.b16 %v546
    %v1692 = vunpack.c.l.b16 %v547
    %v1693 = vunpack.c.h.b16 %v547
    %v1694 = vunpack.c.l.b16 %v548
    %v1695 = vunpack.c.h.b16 %v548
    %v1696 = vunpack.c.l.b16 %v549
    %v1697 = vunpack.c.h.b16 %v549
    %v1698 = vunpack.c.l.b16 %v550
    %v1699 = vunpack.c.h.b16 %v550
    %v1700 = vunpack.c.l.b16 %v551
    %v1701 = vunpack.c.h.b16 %v551
    %v1702 = vunpack.c.l.b16 %v552
    %v1703 = vunpack.c.h.b16 %v552
    %v1704 = vunpack.c.l.b16 %v553
    %v1705 = vunpack.c.h.b16 %v553
    %v1706 = vunpack.c.l.b16 %v554
    %v1707 = vunpack.c.h.b16 %v554
    %v1708 = vunpack.c.l.b16 %v555
    %v1709 = vunpack.c.h.b16 %v555
    %v1710 = vunpack.c.l.b16 %v556
    %v1711 = vunpack.c.h.b16 %v556
    %v1712 = vunpack.c.l.b16 %v557
    %v1713 = vunpack.c.h.b16 %v557
    %v1714 = vunpack.c.l.b16 %v558
    %v1715 = vunpack.c.h.b16 %v558
    %v1716 = vunpack.c.l.b16 %v559
    %v1717 = vunpack.c.h.b16 %v559
    %v1718 = vunpack.c.l.b16 %v560
    %v1719 = vunpack.c.h.b16 %v560
    %v1720 = vunpack.c.l.b16 %v561
    %v1721 = vunpack.c.h.b16 %v561
    %v1722 = vunpack.c.l.b16 %v562
    %v1723 = vunpack.c.h.b16 %v562
    %v1724 = vunpack.c.l.b16 %v563
    %v1725 = vunpack.c.h.b16 %v563
    %v1726 = vunpack.c.l.b16 %v564
    %v1727 = vunpack.c.h.b16 %v564
    %v1728 = vunpack.c.l.b16 %v565
    %v1729 = vunpack.c.h.b16 %v565
    %v1730 = vunpack.c.l.b16 %v566
    %v1731 = vunpack.c.h.b16 %v566
    %v1732 = vunpack.c.l.b16 %v567
    %v1733 = vunpack.c.h.b16 %v567
    %v1734 = vunpack.c.l.b16 %v568
    %v1735 = vunpack.c.h.b16 %v568
    %v1736 = vunpack.c.l.b16 %v569
    %v1737 = vunpack.c.h.b16 %v569
    %v1738 = vunpack.c.l.b16 %v570
    %v1739 = vunpack.c.h.b16 %v570
    %v1740 = vunpack.c.l.b16 %v571
    %v1741 = vunpack.c.h.b16 %v571
    %v1742 = vunpack.c.l.b16 %v572
    %v1743 = vunpack.c.h.b16 %v572
    %v1744 = vunpack.c.l.b16 %v573
    %v1745 = vunpack.c.h.b16 %v573
    %v1746 = vunpack.c.l.b16 %v574
    %v1747 = vunpack.c.h.b16 %v574
    %v1748 = vunpack.c.l.b16 %v575
    %v1749 = vunpack.c.h.b16 %v575
    %v1750 = vunpack.c.l.b16 %v576
    %v1751 = vunpack.c.h.b16 %v576
    %v1752 = vunpack.c.l.b16 %v577
    %v1753 = vunpack.c.h.b16 %v577
    %v1754 = vunpack.c.l.b16 %v578
    %v1755 = vunpack.c.h.b16 %v578
    %v1756 = vunpack.c.l.b16 %v579
    %v1757 = vunpack.c.h.b16 %v579
    %v1758 = vunpack.c.l.b16 %v580
    %v1759 = vunpack.c.h.b16 %v580
    %v1760 = vunpack.c.l.b16 %v581
    %v1761 = vunpack.c.h.b16 %v581
    %v1762 = vunpack.c.l.b16 %v582
    %v1763 = vunpack.c.h.b16 %v582
    %v1764 = vunpack.c.l.b16 %v583
    %v1765 = vunpack.c.h.b16 %v583
    %v1766 = vunpack.c.l.b16 %v584
    %v1767 = vunpack.c.h.b16 %v584
    %v1768 = vunpack.c.l.b16 %v585
    %v1769 = vunpack.c.h.b16 %v585
    %v1770 = vunpack.c.l.b16 %v586
    %v1771 = vunpack.c.h.b16 %v586
    %v1772 = vunpack.c.l.b16 %v587
    %v1773 = vunpack.c.h.b16 %v587
    %v1774 = vunpack.c.l.b16 %v588
    %v1775 = vunpack.c.h.b16 %v588
    %v1776 = vunpack.c.l.b16 %v589
    %v1777 = vunpack.c.h.b16 %v589
    %v1778 = vunpack.c.l.b16 %v590
    %v1779 = vunpack.c.h.b16 %v590
    %v1780 = vunpack.c.l.b16 %v591
    %v1781 = vunpack.c.h.b16 %v591
    %v1782 = vunpack.c.l.b16 %v592
    %v1783 = vunpack.c.h.b16 %v592
    %v1784 = vunpack.c.l.b16 %v593
    %v1785 = vunpack.c.h.b16 %v593
    %v1786 = vunpack.c.l.b16 %v594
    %v1787 = vunpack.c.h.b16 %v594
    %v1788 = vunpack.c.l.b16 %v595
    %v1789 = vunpack.c.h.b16 %v595
    %v1790 = vunpack.c.l.b16 %v596
    %v1791 = vunpack.c.h.b16 %v596
    %v1792 = vunpack.c.l.b16 %v597
    %v1793 = vunpack.c.h.b16 %v597
    %v1794 = vunpack.c.l.b16 %v598
    %v1795 = vunpack.c.h.b16 %v598
    %v1796 = vunpack.c.l.b16 %v599
    %v1797 = vunpack.c.h.b16 %v599
    %v1798 = vunpack.c.l.b16 %v600
    %v1799 = vunpack.c.h.b16 %v600
    %v1800 = vunpack.c.l.b16 %v601
    %v1801 = vunpack.c.h.b16 %v601
    %v1802 = vunpack.c.l.b16 %v602
    %v1803 = vunpack.c.h.b16 %v602
    %v1804 = vunpack.c.l.b16 %v603
    %v1805 = vunpack.c.h.b16 %v603
    %v1806 = vunpack.c.l.b16 %v604
    %v1807 = vunpack.c.h.b16 %v604
    %v1808 = vunpack.c.l.b16 %v605
    %v1809 = vunpack.c.h.b16 %v605
    %v1810 = vunpack.c.l.b16 %v606
    %v1811 = vunpack.c.h.b16 %v606
    %v1812 = vunpack.c.l.b16 %v607
    %v1813 = vunpack.c.h.b16 %v607
    %v1814 = vunpack.c.l.b16 %v608
    %v1815 = vunpack.c.h.b16 %v608
    %v1816 = vunpack.c.l.b16 %v609
    %v1817 = vunpack.c.h.b16 %v609
    %v1818 = vunpack.c.l.b16 %v610
    %v1819 = vunpack.c.h.b16 %v610
    %v1820 = vunpack.c.l.b16 %v611
    %v1821 = vunpack.c.h.b16 %v611
    %v1822 = vunpack.c.l.b16 %v612
    %v1823 = vunpack.c.h.b16 %v612
    %v1824 = vunpack.c.l.b16 %v613
    %v1825 = vunpack.c.h.b16 %v613
    %v1826 = vunpack.c.l.b16 %v614
    %v1827 = vunpack.c.h.b16 %v614
    %v1828 = vunpack.c.l.b16 %v615
    %v1829 = vunpack.c.h.b16 %v615
    %v1830 = vunpack.c.l.b16 %v616
    %v1831 = vunpack.c.h.b16 %v616
    %v1832 = vunpack.c.l.b16 %v617
    %v1833 = vunpack.c.h.b16 %v617
    %v1834 = vunpack.c.l.b16 %v618
    %v1835 = vunpack.c.h.b16 %v618
    %v1836 = vunpack.c.l.b16 %v619
    %v1837 = vunpack.c.h.b16 %v619
    %v1838 = vunpack.c.l.b16 %v620
    %v1839 = vunpack.c.h.b16 %v620
    %v1840 = vunpack.c.l.b16 %v621
    %v1841 = vunpack.c.h.b16 %v621
    %v1842 = vunpack.c.l.b16 %v622
    %v1843 = vunpack.c.h.b16 %v622
    %v1844 = vunpack.c.l.b16 %v623
    %v1845 = vunpack.c.h.b16 %v623
    %v1846 = vunpack.c.l.b16 %v624
    %v1847 = vunpack.c.h.b16 %v624
    %v1848 = vunpack.c.l.b16 %v625
    %v1849 = vunpack.c.h.b16 %v625
    %v1850 = vunpack.c.l.b16 %v626
    %v1851 = vunpack.c.h.b16 %v626
    %v1852 = vunpack.c.l.b16 %v627
    %v1853 = vunpack.c.h.b16 %v627
    %v1854 = vunpack.c.l.b16 %v628
    %v1855 = vunpack.c.h.b16 %v628
    %v1856 = vunpack.c.l.b16 %v629
    %v1857 = vunpack.c.h.b16 %v629
    %v1858 = vunpack.c.l.b16 %v630
    %v1859 = vunpack.c.h.b16 %v630
    %v1860 = vunpack.c.l.b16 %v631
    %v1861 = vunpack.c.h.b16 %v631
    %v1862 = vunpack.c.l.b16 %v632
    %v1863 = vunpack.c.h.b16 %v632
    %v1864 = vunpack.c.l.b16 %v633
    %v1865 = vunpack.c.h.b16 %v633
    %v1866 = vunpack.c.l.b16 %v634
    %v1867 = vunpack.c.h.b16 %v634
    %v1868 = vunpack.c.l.b16 %v635
    %v1869 = vunpack.c.h.b16 %v635
    %v1870 = vunpack.c.l.b16 %v636
    %v1871 = vunpack.c.h.b16 %v636
    %v1872 = vunpack.c.l.b16 %v637
    %v1873 = vunpack.c.h.b16 %v637
    %v1874 = vunpack.c.l.b16 %v638
    %v1875 = vunpack.c.h.b16 %v638
    %v1876 = vunpack.c.l.b16 %v639
    %v1877 = vunpack.c.h.b16 %v639
    %v1878 = vunpack.c.l.b16 %v640
    %v1879 = vunpack.c.h.b16 %v640
    %v1880 = vunpack.c.l.b16 %v641
    %v1881 = vunpack.c.h.b16 %v641
    %v1882 = vunpack.c.l.b16 %v642
    %v1883 = vunpack.c.h.b16 %v642
    %v1884 = vunpack.c.l.b16 %v643
    %v1885 = vunpack.c.h.b16 %v643
    %v1886 = vunpack.c.l.b16 %v644
    %v1887 = vunpack.c.h.b16 %v644
    %v1888 = vunpack.c.l.b16 %v645
    %v1889 = vunpack.c.h.b16 %v645
    %v1890 = vunpack.c.l.b16 %v646
    %v1891 = vunpack.c.h.b16 %v646
    %v1892 = vunpack.c.l.b16 %v647
    %v1893 = vunpack.c.h.b16 %v647
    %v1894 = vunpack.c.l.b16 %v648
    %v1895 = vunpack.c.h.b16 %v648
    %v1896 = vunpack.c.l.b16 %v649
    %v1897 = vunpack.c.h.b16 %v649
    %v1898 = vunpack.c.l.b16 %v650
    %v1899 = vunpack.c.h.b16 %v650
    %v1900 = vunpack.c.l.b16 %v651
    %v1901 = vunpack.c.h.b16 %v651
    %v1902 = vunpack.c.l.b16 %v652
    %v1903 = vunpack.c.h.b16 %v652
    %v1904 = vunpack.c.l.b16 %v653
    %v1905 = vunpack.c.h.b16 %v653
    %v1906 = vunpack.c.l.b16 %v654
    %v1907 = vunpack.c.h.b16 %v654
    %v1908 = vunpack.c.l.b16 %v655
    %v1909 = vunpack.c.h.b16 %v655
    %v1910 = vunpack.c.l.b16 %v656
    %v1911 = vunpack.c.h.b16 %v656
    %v1912 = vunpack.c.l.b16 %v657
    %v1913 = vunpack.c.h.b16 %v657
    %v1914 = vunpack.c.l.b16 %v658
    %v1915 = vunpack.c.h.b16 %v658
    %v1916 = vunpack.c.l.b16 %v659
    %v1917 = vunpack.c.h.b16 %v659
    %v1918 = vunpack.c.l.b16 %v660
    %v1919 = vunpack.c.h.b16 %v660
    %v1920 = vunpack.c.l.b16 %v661
    %v1921 = vunpack.c.h.b16 %v661
    %v1922 = vunpack.c.l.b16 %v662
    %v1923 = vunpack.c.h.b16 %v662
    %v1924 = vunpack.c.l.b16 %v663
    %v1925 = vunpack.c.h.b16 %v663
    %v1926 = vunpack.c.l.b16 %v664
    %v1927 = vunpack.c.h.b16 %v664
    %v1928 = vunpack.c.l.b16 %v665
    %v1929 = vunpack.c.h.b16 %v665
    %v1930 = vunpack.c.l.b16 %v666
    %v1931 = vunpack.c.h.b16 %v666
    %v1932 = vunpack.c.l.b16 %v667
    %v1933 = vunpack.c.h.b16 %v667
    %v1934 = vunpack.c.l.b16 %v668
    %v1935 = vunpack.c.h.b16 %v668
    %v1936 = vunpack.c.l.b16 %v669
    %v1937 = vunpack.c.h.b16 %v669
    %v1938 = vunpack.c.l.b16 %v670
    %v1939 = vunpack.c.h.b16 %v670
    %v1940 = vunpack.c.l.b16 %v671
    %v1941 = vunpack.c.h.b16 %v671
    %v1942 = vunpack.c.l.b16 %v672
    %v1943 = vunpack.c.h.b16 %v672
    %v1944 = vunpack.c.l.b16 %v673
    %v1945 = vunpack.c.h.b16 %v673
    %v1946 = vunpack.c.l.b16 %v674
    %v1947 = vunpack.c.h.b16 %v674
    %v1948 = vunpack.c.l.b16 %v675
    %v1949 = vunpack.c.h.b16 %v675
    %v1950 = vunpack.c.l.b16 %v676
    %v1951 = vunpack.c.h.b16 %v676
    %v1952 = vunpack.c.l.b16 %v677
    %v1953 = vunpack.c.h.b16 %v677
    %v1954 = vunpack.c.l.b16 %v678
    %v1955 = vunpack.c.h.b16 %v678
    %v1956 = vunpack.c.l.b16 %v679
    %v1957 = vunpack.c.h.b16 %v679
    %v1958 = vunpack.c.l.b16 %v680
    %v1959 = vunpack.c.h.b16 %v680
    %v1960 = vunpack.c.l.b16 %v681
    %v1961 = vunpack.c.h.b16 %v681
    %v1962 = vunpack.c.l.b16 %v682
    %v1963 = vunpack.c.h.b16 %v682
    %v1964 = vunpack.c.l.b16 %v683
    %v1965 = vunpack.c.h.b16 %v683
    %v1966 = vunpack.c.l.b16 %v684
    %v1967 = vunpack.c.h.b16 %v684
    %v1968 = vunpack.c.l.b16 %v685
    %v1969 = vunpack.c.h.b16 %v685
    %v1970 = vunpack.c.l.b16 %v686
    %v1971 = vunpack.c.h.b16 %v686
    %v1972 = vunpack.c.l.b16 %v687
    %v1973 = vunpack.c.h.b16 %v687
    %v1974 = vunpack.c.l.b16 %v688
    %v1975 = vunpack.c.h.b16 %v688
    %v1976 = vunpack.c.l.b16 %v689
    %v1977 = vunpack.c.h.b16 %v689
    %v1978 = vunpack.c.l.b16 %v690
    %v1979 = vunpack.c.h.b16 %v690
    %v1980 = vunpack.c.l.b16 %v691
    %v1981 = vunpack.c.h.b16 %v691
    %v1982 = vunpack.c.l.b16 %v692
    %v1983 = vunpack.c.h.b16 %v692
    %v1984 = vunpack.c.l.b16 %v693
    %v1985 = vunpack.c.h.b16 %v693
    %v1986 = vunpack.c.l.b16 %v694
    %v1987 = vunpack.c.h.b16 %v694
    %v1988 = vunpack.c.l.b16 %v695
    %v1989 = vunpack.c.h.b16 %v695
    %v1990 = vunpack.c.l.b16 %v696
    %v1991 = vunpack.c.h.b16 %v696
    %v1992 = vunpack.c.l.b16 %v697
    %v1993 = vunpack.c.h.b16 %v697
    %v1994 = vunpack.c.l.b16 %v698
    %v1995 = vunpack.c.h.b16 %v698
    %v1996 = vunpack.c.l.b16 %v699
    %v1997 = vunpack.c.h.b16 %v699
    %v1998 = vunpack.c.l.b16 %v700
    %v1999 = vunpack.c.h.b16 %v700
    %v2000 = vunpack.c.l.b16 %v701
    %v2001 = vunpack.c.h.b16 %v701
    %v2002 = vunpack.c.l.b16 %v702
    %v2003 = vunpack.c.h.b16 %v702
    %v2004 = vunpack.c.l.b16 %v703
    %v2005 = vunpack.c.h.b16 %v703
    %v2006 = vunpack.c.l.b16 %v704
    %v2007 = vunpack.c.h.b16 %v704
    %v2008 = vunpack.c.l.b16 %v705
    %v2009 = vunpack.c.h.b16 %v705
    %v2010 = vunpack.c.l.b16 %v706
    %v2011 = vunpack.c.h.b16 %v706
    %v2012 = vunpack.c.l.b16 %v707
    %v2013 = vunpack.c.h.b16 %v707
    %v2014 = vunpack.c.l.b16 %v708
    %v2015 = vunpack.c.h.b16 %v708
    %v2016 = vunpack.c.l.b16 %v709
    %v2017 = vunpack.c.h.b16 %v709
    %v2018 = vunpack.c.l.b16 %v710
    %v2019 = vunpack.c.h.b16 %v710
    %v2020 = vunpack.c.l.b16 %v711
    %v2021 = vunpack.c.h.b16 %v711
    %v2022 = vunpack.c.l.b16 %v712
    %v2023 = vunpack.c.h.b16 %v712
    %v2024 = vunpack.c.l.b16 %v713
    %v2025 = vunpack.c.h.b16 %v713
    %v2026 = vunpack.c.l.b16 %v714
    %v2027 = vunpack.c.h.b16 %v714
    %v2028 = vunpack.c.l.b16 %v715
    %v2029 = vunpack.c.h.b16 %v715
    %v2030 = vunpack.c.l.b16 %v716
    %v2031 = vunpack.c.h.b16 %v716
    %v2032 = vunpack.c.l.b16 %v717
    %v2033 = vunpack.c.h.b16 %v717
    %v2034 = vunpack.c.l.b16 %v718
    %v2035 = vunpack.c.h.b16 %v718
    %v2036 = vunpack.c.l.b16 %v719
    %v2037 = vunpack.c.h.b16 %v719
    %v2038 = vunpack.c.l.b16 %v720
    %v2039 = vunpack.c.h.b16 %v720
    %v2040 = vunpack.c.l.b16 %v721
    %v2041 = vunpack.c.h.b16 %v721
    %v2042 = vunpack.c.l.b16 %v722
    %v2043 = vunpack.c.h.b16 %v722
    %v2044 = vunpack.c.l.b16 %v723
    %v2045 = vunpack.c.h.b16 %v723
    %v2046 = vunpack.c.l.b16 %v724
    %v2047 = vunpack.c.h.b16 %v724
    %v2048 = vunpack.c.l.b16 %v725
    %v2049 = vunpack.c.h.b16 %v725
    %v2050 = vunpack.c.l.b16 %v726
    %v2051 = vunpack.c.h.b16 %v726
    %v2052 = vunpack.c.l.b16 %v727
    %v2053 = vunpack.c.h.b16 %v727
    %v2054 = vunpack.c.l.b16 %v728
    %v2055 = vunpack.c.h.b16 %v728
    %v2056 = vunpack.c.l.b16 %v729
    %v2057 = vunpack.c.h.b16 %v729
    %v2058 = vunpack.c.l.b16 %v730
    %v2059 = vunpack.c.h.b16 %v730
    %v2060 = vunpack.c.l.b16 %v731
    %v2061 = vunpack.c.h.b16 %v731
    %v2062 = vunpack.c.l.b16 %v732
    %v2063 = vunpack.c.h.b16 %v732
    %v2064 = vunpack.c.l.b16 %v733
    %v2065 = vunpack.c.h.b16 %v733
    %v2066 = vunpack.c.l.b16 %v734
    %v2067 = vunpack.c.h.b16 %v734
    %v2068 = vunpack.c.l.b16 %v735
    %v2069 = vunpack.c.h.b16 %v735
    %v2070 = vunpack.c.l.b16 %v736
    %v2071 = vunpack.c.h.b16 %v736
    %v2072 = vunpack.c.l.b16 %v737
    %v2073 = vunpack.c.h.b16 %v737
    %v2074 = vunpack.c.l.b16 %v738
    %v2075 = vunpack.c.h.b16 %v738
    %v2076 = vunpack.c.l.b16 %v739
    %v2077 = vunpack.c.h.b16 %v739
    %v2078 = vunpack.c.l.b16 %v740
    %v2079 = vunpack.c.h.b16 %v740
    %v2080 = vunpack.c.l.b16 %v741
    %v2081 = vunpack.c.h.b16 %v741
    %v2082 = vunpack.c.l.b16 %v742
    %v2083 = vunpack.c.h.b16 %v742
    %v2084 = vunpack.c.l.b16 %v743
    %v2085 = vunpack.c.h.b16 %v743
    %v2086 = vunpack.c.l.b16 %v744
    %v2087 = vunpack.c.h.b16 %v744
    %v2088 = vunpack.c.l.b16 %v745
    %v2089 = vunpack.c.h.b16 %v745
    %v2090 = vunpack.c.l.b16 %v746
    %v2091 = vunpack.c.h.b16 %v746
    %v2092 = vunpack.c.l.b16 %v747
    %v2093 = vunpack.c.h.b16 %v747
    %v2094 = vunpack.c.l.b16 %v748
    %v2095 = vunpack.c.h.b16 %v748
    %v2096 = vunpack.c.l.b16 %v749
    %v2097 = vunpack.c.h.b16 %v749
    %v2098 = vunpack.c.l.b16 %v750
    %v2099 = vunpack.c.h.b16 %v750
    %v2100 = vunpack.c.l.b16 %v751
    %v2101 = vunpack.c.h.b16 %v751
    %v2102 = vunpack.c.l.b16 %v752
    %v2103 = vunpack.c.h.b16 %v752
    %v2104 = vunpack.c.l.b16 %v753
    %v2105 = vunpack.c.h.b16 %v753
    %v2106 = vunpack.c.l.b16 %v754
    %v2107 = vunpack.c.h.b16 %v754
    %v2108 = vunpack.c.l.b16 %v755
    %v2109 = vunpack.c.h.b16 %v755
    %v2110 = vunpack.c.l.b16 %v756
    %v2111 = vunpack.c.h.b16 %v756
    %v2112 = vunpack.c.l.b16 %v757
    %v2113 = vunpack.c.h.b16 %v757
    %v2114 = vunpack.c.l.b16 %v758
    %v2115 = vunpack.c.h.b16 %v758
    %v2116 = vunpack.c.l.b16 %v759
    %v2117 = vunpack.c.h.b16 %v759
    %v2118 = vunpack.c.l.b16 %v760
    %v2119 = vunpack.c.h.b16 %v760
    %v2120 = vunpack.c.l.b16 %v761
    %v2121 = vunpack.c.h.b16 %v761
    %v2122 = vunpack.c.l.b16 %v762
    %v2123 = vunpack.c.h.b16 %v762
    %v2124 = vunpack.c.l.b16 %v763
    %v2125 = vunpack.c.h.b16 %v763
    %v2126 = vunpack.c.l.b16 %v764
    %v2127 = vunpack.c.h.b16 %v764
    %v2128 = vunpack.c.l.b16 %v765
    %v2129 = vunpack.c.h.b16 %v765
    %v2130 = vunpack.c.l.b16 %v766
    %v2131 = vunpack.c.h.b16 %v766
    %v2132 = vunpack.c.l.b16 %v767
    %v2133 = vunpack.c.h.b16 %v767
    %v2134 = vunpack.c.l.b16 %v768
    %v2135 = vunpack.c.h.b16 %v768
    %v2136 = vunpack.c.l.b16 %v769
    %v2137 = vunpack.c.h.b16 %v769
    %v2138 = vunpack.c.l.b16 %v770
    %v2139 = vunpack.c.h.b16 %v770
    %v2140 = vunpack.c.l.b16 %v771
    %v2141 = vunpack.c.h.b16 %v771
    %v2142 = vunpack.c.l.b16 %v772
    %v2143 = vunpack.c.h.b16 %v772
    %v2144 = vunpack.c.l.b16 %v773
    %v2145 = vunpack.c.h.b16 %v773
    %v2146 = vunpack.c.l.b16 %v774
    %v2147 = vunpack.c.h.b16 %v774
    %v2148 = vunpack.c.l.b16 %v775
    %v2149 = vunpack.c.h.b16 %v775
    %v2150 = vunpack.c.l.b16 %v776
    %v2151 = vunpack.c.h.b16 %v776
    %v2152 = vunpack.c.l.b16 %v777
    %v2153 = vunpack.c.h.b16 %v777
    %v2154 = vunpack.c.l.b16 %v778
    %v2155 = vunpack.c.h.b16 %v778
    %v2156 = vunpack.c.l.b16 %v779
    %v2157 = vunpack.c.h.b16 %v779
    %v2158 = vunpack.c.l.b16 %v780
    %v2159 = vunpack.c.h.b16 %v780
    %v2160 = vunpack.c.l.b16 %v781
    %v2161 = vunpack.c.h.b16 %v781
    %v2162 = vunpack.c.l.b16 %v782
    %v2163 = vunpack.c.h.b16 %v782
    %v2164 = vunpack.c.l.b16 %v783
    %v2165 = vunpack.c.h.b16 %v783
    %v2166 = vunpack.c.l.b16 %v784
    %v2167 = vunpack.c.h.b16 %v784
    %v2168 = vunpack.c.l.b16 %v785
    %v2169 = vunpack.c.h.b16 %v785
    %v2170 = vunpack.c.l.b16 %v786
    %v2171 = vunpack.c.h.b16 %v786
    %v2172 = vunpack.c.l.b16 %v787
    %v2173 = vunpack.c.h.b16 %v787
    %v2174 = vunpack.c.l.b16 %v788
    %v2175 = vunpack.c.h.b16 %v788
    %v2176 = vunpack.c.l.b16 %v789
    %v2177 = vunpack.c.h.b16 %v789
    %v2178 = vunpack.c.l.b16 %v790
    %v2179 = vunpack.c.h.b16 %v790
    %v2180 = vunpack.c.l.b16 %v791
    %v2181 = vunpack.c.h.b16 %v791
    %v2182 = vunpack.c.l.b16 %v792
    %v2183 = vunpack.c.h.b16 %v792
    %v2184 = vunpack.c.l.b16 %v793
    %v2185 = vunpack.c.h.b16 %v793
    %v2186 = vunpack.c.l.b16 %v794
    %v2187 = vunpack.c.h.b16 %v794
    %v2188 = vunpack.c.l.b16 %v795
    %v2189 = vunpack.c.h.b16 %v795
    %v2190 = vunpack.c.l.b16 %v796
    %v2191 = vunpack.c.h.b16 %v796
    %v2192 = vunpack.c.l.b16 %v797
    %v2193 = vunpack.c.h.b16 %v797
    %v2194 = vunpack.c.l.b16 %v798
    %v2195 = vunpack.c.h.b16 %v798
    %v2196 = vunpack.c.l.b16 %v799
    %v2197 = vunpack.c.h.b16 %v799
    %v2198 = vunpack.c.l.b16 %v800
    %v2199 = vunpack.c.h.b16 %v800
    %v2200 = vunpack.c.l.b16 %v801
    %v2201 = vunpack.c.h.b16 %v801
    %v2202 = vunpack.c.l.b16 %v802
    %v2203 = vunpack.c.h.b16 %v802
    %v2204 = vunpack.c.l.b16 %v803
    %v2205 = vunpack.c.h.b16 %v803
    %v2206 = vunpack.c.l.b16 %v804
    %v2207 = vunpack.c.h.b16 %v804
    %v2208 = vunpack.c.l.b16 %v805
    %v2209 = vunpack.c.h.b16 %v805
    %v2210 = vunpack.c.l.b16 %v806
    %v2211 = vunpack.c.h.b16 %v806
    %v2212 = vunpack.c.l.b16 %v807
    %v2213 = vunpack.c.h.b16 %v807
    %v2214 = vunpack.c.l.b16 %v808
    %v2215 = vunpack.c.h.b16 %v808
    %v2216 = vunpack.c.l.b16 %v809
    %v2217 = vunpack.c.h.b16 %v809
    %v2218 = vunpack.c.l.b16 %v810
    %v2219 = vunpack.c.h.b16 %v810
    %v2220 = vunpack.c.l.b16 %v811
    %v2221 = vunpack.c.h.b16 %v811
    %v2222 = vunpack.c.l.b16 %v812
    %v2223 = vunpack.c.h.b16 %v812
    %v2224 = vunpack.c.l.b16 %v813
    %v2225 = vunpack.c.h.b16 %v813
    %v2226 = vunpack.c.l.b16 %v814
    %v2227 = vunpack.c.h.b16 %v814
    %v2228 = vunpack.c.l.b16 %v815
    %v2229 = vunpack.c.h.b16 %v815
    %v2230 = vunpack.c.l.b16 %v816
    %v2231 = vunpack.c.h.b16 %v816
    %v2232 = vunpack.c.l.b16 %v817
    %v2233 = vunpack.c.h.b16 %v817
    %v2234 = vunpack.c.l.b16 %v818
    %v2235 = vunpack.c.h.b16 %v818
    %v2236 = vunpack.c.l.b16 %v819
    %v2237 = vunpack.c.h.b16 %v819
    %v2238 = vunpack.c.l.b16 %v820
    %v2239 = vunpack.c.h.b16 %v820
    %v2240 = vunpack.c.l.b16 %v821
    %v2241 = vunpack.c.h.b16 %v821
    %v2242 = vunpack.c.l.b16 %v822
    %v2243 = vunpack.c.h.b16 %v822
    %v2244 = vunpack.c.l.b16 %v823
    %v2245 = vunpack.c.h.b16 %v823
    %v2246 = vunpack.c.l.b16 %v824
    %v2247 = vunpack.c.h.b16 %v824
    %v2248 = vunpack.c.l.b16 %v825
    %v2249 = vunpack.c.h.b16 %v825
    %v2250 = vunpack.c.l.b16 %v826
    %v2251 = vunpack.c.h.b16 %v826
    %v2252 = vunpack.c.l.b16 %v827
    %v2253 = vunpack.c.h.b16 %v827
    %v2254 = vunpack.c.l.b16 %v828
    %v2255 = vunpack.c.h.b16 %v828
    %v2256 = vunpack.c.l.b16 %v829
    %v2257 = vunpack.c.h.b16 %v829
    %v2258 = vunpack.c.l.b16 %v830
    %v2259 = vunpack.c.h.b16 %v830
    %v2260 = vunpack.c.l.b16 %v831
    %v2261 = vunpack.c.h.b16 %v831
    %v2262 = vunpack.c.l.b16 %v832
    %v2263 = vunpack.c.h.b16 %v832
    %v2264 = vunpack.c.l.b16 %v833
    %v2265 = vunpack.c.h.b16 %v833
    %v2266 = vunpack.c.l.b16 %v834
    %v2267 = vunpack.c.h.b16 %v834
    %v2268 = vunpack.c.l.b16 %v835
    %v2269 = vunpack.c.h.b16 %v835
    %v2270 = vunpack.c.l.b16 %v836
    %v2271 = vunpack.c.h.b16 %v836
    %v2272 = vunpack.c.l.b16 %v837
    %v2273 = vunpack.c.h.b16 %v837
    %v2274 = vunpack.c.l.b16 %v838
    %v2275 = vunpack.c.h.b16 %v838
    %v2276 = vunpack.c.l.b16 %v839
    %v2277 = vunpack.c.h.b16 %v839
    %v2278 = vunpack.c.l.b16 %v840
    %v2279 = vunpack.c.h.b16 %v840
    %v2280 = vunpack.c.l.b16 %v841
    %v2281 = vunpack.c.h.b16 %v841
    %v2282 = vunpack.c.l.b16 %v842
    %v2283 = vunpack.c.h.b16 %v842
    %v2284 = vunpack.c.l.b16 %v843
    %v2285 = vunpack.c.h.b16 %v843
    %v2286 = vunpack.c.l.b16 %v844
    %v2287 = vunpack.c.h.b16 %v844
    %v2288 = vunpack.c.l.b16 %v845
    %v2289 = vunpack.c.h.b16 %v845
    %v2290 = vunpack.c.l.b16 %v846
    %v2291 = vunpack.c.h.b16 %v846
    %v2292 = vunpack.c.l.b16 %v847
    %v2293 = vunpack.c.h.b16 %v847
    %v2294 = vunpack.c.l.b16 %v848
    %v2295 = vunpack.c.h.b16 %v848
    %v2296 = vunpack.c.l.b16 %v849
    %v2297 = vunpack.c.h.b16 %v849
    %v2298 = vunpack.c.l.b16 %v850
    %v2299 = vunpack.c.h.b16 %v850
    %v2300 = vunpack.c.l.b16 %v851
    %v2301 = vunpack.c.h.b16 %v851
    %v2302 = vunpack.c.l.b16 %v852
    %v2303 = vunpack.c.h.b16 %v852
    %v2304 = vunpack.c.l.b16 %v853
    %v2305 = vunpack.c.h.b16 %v853
    %v2306 = vunpack.c.l.b16 %v854
    %v2307 = vunpack.c.h.b16 %v854
    %v2308 = vunpack.c.l.b16 %v855
    %v2309 = vunpack.c.h.b16 %v855
    %v2310 = vunpack.c.l.b16 %v856
    %v2311 = vunpack.c.h.b16 %v856
    %v2312 = vunpack.c.l.b16 %v857
    %v2313 = vunpack.c.h.b16 %v857
    %v2314 = vunpack.c.l.b16 %v858
    %v2315 = vunpack.c.h.b16 %v858
    %v2316 = vunpack.c.l.b16 %v859
    %v2317 = vunpack.c.h.b16 %v859
    %v2318 = vunpack.c.l.b16 %v860
    %v2319 = vunpack.c.h.b16 %v860
    %v2320 = vunpack.c.l.b16 %v861
    %v2321 = vunpack.c.h.b16 %v861
    %v2322 = vunpack.c.l.b16 %v862
    %v2323 = vunpack.c.h.b16 %v862
    %v2324 = vunpack.c.l.b16 %v863
    %v2325 = vunpack.c.h.b16 %v863
    %v2326 = vunpack.c.l.b16 %v864
    %v2327 = vunpack.c.h.b16 %v864
    %v2328 = vunpack.c.l.b16 %v865
    %v2329 = vunpack.c.h.b16 %v865
    %v2330 = vunpack.c.l.b16 %v866
    %v2331 = vunpack.c.h.b16 %v866
    %v2332 = vunpack.c.l.b16 %v867
    %v2333 = vunpack.c.h.b16 %v867
    %v2334 = vunpack.c.l.b16 %v868
    %v2335 = vunpack.c.h.b16 %v868
    %v2336 = vunpack.c.l.b16 %v869
    %v2337 = vunpack.c.h.b16 %v869
    %v2338 = vunpack.c.l.b16 %v870
    %v2339 = vunpack.c.h.b16 %v870
    %v2340 = vunpack.c.l.b16 %v871
    %v2341 = vunpack.c.h.b16 %v871
    %v2342 = vunpack.c.l.b16 %v872
    %v2343 = vunpack.c.h.b16 %v872
    %v2344 = vunpack.c.l.b16 %v873
    %v2345 = vunpack.c.h.b16 %v873
    %v2346 = vunpack.c.l.b16 %v874
    %v2347 = vunpack.c.h.b16 %v874
    %v2348 = vunpack.c.l.b16 %v875
    %v2349 = vunpack.c.h.b16 %v875
    %v2350 = vunpack.c.l.b16 %v876
    %v2351 = vunpack.c.h.b16 %v876
    %v2352 = vunpack.c.l.b16 %v877
    %v2353 = vunpack.c.h.b16 %v877
    %v2354 = vunpack.c.l.b16 %v878
    %v2355 = vunpack.c.h.b16 %v878
    %v2356 = vunpack.c.l.b16 %v879
    %v2357 = vunpack.c.h.b16 %v879
    %v2358 = vunpack.c.l.b16 %v880
    %v2359 = vunpack.c.h.b16 %v880
    %v2360 = vunpack.c.l.b16 %v881
    %v2361 = vunpack.c.h.b16 %v881
    %v2362 = vunpack.c.l.b16 %v882
    %v2363 = vunpack.c.h.b16 %v882
    %v2364 = vunpack.c.l.b16 %v883
    %v2365 = vunpack.c.h.b16 %v883
    %v2366 = vunpack.c.l.b16 %v884
    %v2367 = vunpack.c.h.b16 %v884
    %v2368 = vunpack.c.l.b16 %v885
    %v2369 = vunpack.c.h.b16 %v885
    %v2370 = vunpack.c.l.b16 %v886
    %v2371 = vunpack.c.h.b16 %v886
    %v2372 = vunpack.c.l.b16 %v887
    %v2373 = vunpack.c.h.b16 %v887
    %v2374 = vunpack.c.l.b16 %v888
    %v2375 = vunpack.c.h.b16 %v888
    %v2376 = vunpack.c.l.b16 %v889
    %v2377 = vunpack.c.h.b16 %v889
    %v2378 = vunpack.c.l.b16 %v890
    %v2379 = vunpack.c.h.b16 %v890
    %v2380 = vunpack.c.l.b16 %v891
    %v2381 = vunpack.c.h.b16 %v891
    %v2382 = vunpack.c.l.b16 %v892
    %v2383 = vunpack.c.h.b16 %v892
    %v2384 = vunpack.c.l.b16 %v893
    %v2385 = vunpack.c.h.b16 %v893
    %v2386 = vunpack.c.l.b16 %v894
    %v2387 = vunpack.c.h.b16 %v894
    %v2388 = vunpack.c.l.b16 %v895
    %v2389 = vunpack.c.h.b16 %v895
    %v2390 = vunpack.c.l.b16 %v896
    %v2391 = vunpack.c.h.b16 %v896
    %v2392 = vunpack.c.l.b16 %v897
    %v2393 = vunpack.c.h.b16 %v897
    %v2394 = vunpack.c.l.b16 %v898
    %v2395 = vunpack.c.h.b16 %v898
    %v2396 = vunpack.c.l.b16 %v899
    %v2397 = vunpack.c.h.b16 %v899
    %v2398 = vunpack.c.l.b16 %v900
    %v2399 = vunpack.c.h.b16 %v900
    %v2400 = vunpack.c.l.b16 %v901
    %v2401 = vunpack.c.h.b16 %v901
    %v2402 = vunpack.c.l.b16 %v902
    %v2403 = vunpack.c.h.b16 %v902
    %v2404 = vunpack.c.l.b16 %v903
    %v2405 = vunpack.c.h.b16 %v903
    %v2406 = vunpack.c.l.b16 %v904
    %v2407 = vunpack.c.h.b16 %v904
    %v2408 = vunpack.c.l.b16 %v905
    %v2409 = vunpack.c.h.b16 %v905
    %v2410 = vunpack.c.l.b16 %v906
    %v2411 = vunpack.c.h.b16 %v906
    %v2412 = vunpack.c.l.b16 %v907
    %v2413 = vunpack.c.h.b16 %v907
    %v2414 = vunpack.c.l.b16 %v908
    %v2415 = vunpack.c.h.b16 %v908
    %v2416 = vunpack.c.l.b16 %v909
    %v2417 = vunpack.c.h.b16 %v909
    %v2418 = vunpack.c.l.b16 %v910
    %v2419 = vunpack.c.h.b16 %v910
    %v2420 = vunpack.c.l.b16 %v911
    %v2421 = vunpack.c.h.b16 %v911
    %v2422 = vunpack.c.l.b16 %v912
    %v2423 = vunpack.c.h.b16 %v912
    %v2424 = vunpack.c.l.b16 %v913
    %v2425 = vunpack.c.h.b16 %v913
    %v2426 = vunpack.c.l.b16 %v914
    %v2427 = vunpack.c.h.b16 %v914
    %v2428 = vunpack.c.l.b16 %v915
    %v2429 = vunpack.c.h.b16 %v915
    %v2430 = vunpack.c.l.b16 %v916
    %v2431 = vunpack.c.h.b16 %v916
    %v2432 = vunpack.c.l.b16 %v917
    %v2433 = vunpack.c.h.b16 %v917
    %v2434 = vunpack.c.l.b16 %v918
    %v2435 = vunpack.c.h.b16 %v918
    %v2436 = vunpack.c.l.b16 %v919
    %v2437 = vunpack.c.h.b16 %v919
    %v2438 = vunpack.c.l.b16 %v920
    %v2439 = vunpack.c.h.b16 %v920
    %v2440 = vunpack.c.l.b16 %v921
    %v2441 = vunpack.c.h.b16 %v921
    %v2442 = vunpack.c.l.b16 %v922
    %v2443 = vunpack.c.h.b16 %v922
    %v2444 = vunpack.c.l.b16 %v923
    %v2445 = vunpack.c.h.b16 %v923
    %v2446 = vunpack.c.l.b16 %v924
    %v2447 = vunpack.c.h.b16 %v924
    %v2448 = vunpack.c.l.b16 %v925
    %v2449 = vunpack.c.h.b16 %v925
    %v2450 = vunpack.c.l.b16 %v926
    %v2451 = vunpack.c.h.b16 %v926
    %v2452 = vunpack.c.l.b16 %v927
    %v2453 = vunpack.c.h.b16 %v927
    %v2454 = vunpack.c.l.b16 %v928
    %v2455 = vunpack.c.h.b16 %v928
    %v2456 = vunpack.c.l.b16 %v929
    %v2457 = vunpack.c.h.b16 %v929
    %v2458 = vunpack.c.l.b16 %v930
    %v2459 = vunpack.c.h.b16 %v930
    %v2460 = vunpack.c.l.b16 %v931
    %v2461 = vunpack.c.h.b16 %v931
    %v2462 = vunpack.c.l.b16 %v932
    %v2463 = vunpack.c.h.b16 %v932
    %v2464 = vunpack.c.l.b16 %v933
    %v2465 = vunpack.c.h.b16 %v933
    %v2466 = vunpack.c.l.b16 %v934
    %v2467 = vunpack.c.h.b16 %v934
    %v2468 = vunpack.c.l.b16 %v935
    %v2469 = vunpack.c.h.b16 %v935
    %v2470 = vunpack.c.l.b16 %v936
    %v2471 = vunpack.c.h.b16 %v936
    %v2472 = vunpack.c.l.b16 %v937
    %v2473 = vunpack.c.h.b16 %v937
    %v2474 = vunpack.c.l.b16 %v938
    %v2475 = vunpack.c.h.b16 %v938
    %v2476 = vunpack.c.l.b16 %v939
    %v2477 = vunpack.c.h.b16 %v939
    %v2478 = vunpack.c.l.b16 %v940
    %v2479 = vunpack.c.h.b16 %v940
    %v2480 = vunpack.c.l.b16 %v941
    %v2481 = vunpack.c.h.b16 %v941
    %v2482 = vunpack.c.l.b16 %v942
    %v2483 = vunpack.c.h.b16 %v942
    %v2484 = vunpack.c.l.b16 %v943
    %v2485 = vunpack.c.h.b16 %v943
    %v2486 = vunpack.c.l.b16 %v944
    %v2487 = vunpack.c.h.b16 %v944
    %v2488 = vunpack.c.l.b16 %v945
    %v2489 = vunpack.c.h.b16 %v945
    %v2490 = vunpack.c.l.b16 %v946
    %v2491 = vunpack.c.h.b16 %v946
    %v2492 = vunpack.c.l.b16 %v947
    %v2493 = vunpack.c.h.b16 %v947
    %v2494 = vunpack.c.l.b16 %v948
    %v2495 = vunpack.c.h.b16 %v948
    %v2496 = vunpack.c.l.b16 %v949
    %v2497 = vunpack.c.h.b16 %v949
    %v2498 = vunpack.c.l.b16 %v950
    %v2499 = vunpack.c.h.b16 %v950
    %v2500 = vunpack.c.l.b16 %v951
    %v2501 = vunpack.c.h.b16 %v951
    %v2502 = vunpack.c.l.b16 %v952
    %v2503 = vunpack.c.h.b16 %v952
    %v2504 = vunpack.c.l.b16 %v953
    %v2505 = vunpack.c.h.b16 %v953
    %v2506 = vunpack.c.l.b16 %v954
    %v2507 = vunpack.c.h.b16 %v954
    %v2508 = vunpack.c.l.b16 %v955
    %v2509 = vunpack.c.h.b16 %v955
    %v2510 = vunpack.c.l.b16 %v956
    %v2511 = vunpack.c.h.b16 %v956
    %v2512 = vunpack.c.l.b16 %v957
    %v2513 = vunpack.c.h.b16 %v957
    %v2514 = vunpack.c.l.b16 %v958
    %v2515 = vunpack.c.h.b16 %v958
    %v2516 = vunpack.c.l.b16 %v959
    %v2517 = vunpack.c.h.b16 %v959
    %v2518 = vunpack.c.l.b16 %v960
    %v2519 = vunpack.c.h.b16 %v960
    %v2520 = vunpack.c.l.b16 %v961
    %v2521 = vunpack.c.h.b16 %v961
    %v2522 = vunpack.c.l.b16 %v962
    %v2523 = vunpack.c.h.b16 %v962
    %v2524 = vunpack.c.l.b16 %v963
    %v2525 = vunpack.c.h.b16 %v963
    %v2526 = vunpack.c.l.b16 %v964
    %v2527 = vunpack.c.h.b16 %v964
    %v2528 = vunpack.c.l.b16 %v965
    %v2529 = vunpack.c.h.b16 %v965
    %v2530 = vunpack.c.l.b16 %v966
    %v2531 = vunpack.c.h.b16 %v966
    %v2532 = vunpack.c.l.b16 %v967
    %v2533 = vunpack.c.h.b16 %v967
    %v2534 = vunpack.c.l.b16 %v968
    %v2535 = vunpack.c.h.b16 %v968
    %v2536 = vunpack.c.l.b16 %v969
    %v2537 = vunpack.c.h.b16 %v969
    %v2538 = vpack.c.b16 %v1522, %v1514
    %v2539 = vpack.c.b16 %v1523, %v1515
    %v2540 = vpack.c.b16 %v1524, %v1516
    %v2541 = vpack.c.b16 %v1525, %v1517
    %v2542 = vpack.c.b16 %v1526, %v1518
    %v2543 = vpack.c.b16 %v1527, %v1519
    %v2544 = vpack.c.b16 %v1528, %v1520
    %v2545 = vpack.c.b16 %v1529, %v1521
    %v2546 = vpack.c.b16 %v1538, %v1530
    %v2547 = vpack.c.b16 %v1539, %v1531
    %v2548 = vpack.c.b16 %v1540, %v1532
    %v2549 = vpack.c.b16 %v1541, %v1533
    %v2550 = vpack.c.b16 %v1542, %v1534
    %v2551 = vpack.c.b16 %v1543, %v1535
    %v2552 = vpack.c.b16 %v1544, %v1536
    %v2553 = vpack.c.b16 %v1545, %v1537
    %v2554 = vpack.c.b16 %v1554, %v1546
    %v2555 = vpack.c.b16 %v1555, %v1547
    %v2556 = vpack.c.b16 %v1556, %v1548
    %v2557 = vpack.c.b16 %v1557, %v1549
    %v2558 = vpack.c.b16 %v1558, %v1550
    %v2559 = vpack.c.b16 %v1559, %v1551
    %v2560 = vpack.c.b16 %v1560, %v1552
    %v2561 = vpack.c.b16 %v1561, %v1553
    %v2562 = vpack.c.b16 %v1570, %v1562
    %v2563 = vpack.c.b16 %v1571, %v1563
    %v2564 = vpack.c.b16 %v1572, %v1564
    %v2565 = vpack.c.b16 %v1573, %v1565
    %v2566 = vpack.c.b16 %v1574, %v1566
    %v2567 = vpack.c.b16 %v1575, %v1567
    %v2568 = vpack.c.b16 %v1576, %v1568
    %v2569 = vpack.c.b16 %v1577, %v1569
    %v2570 = vpack.c.b16 %v1586, %v1578
    %v2571 = vpack.c.b16 %v1587, %v1579
    %v2572 = vpack.c.b16 %v1588, %v1580
    %v2573 = vpack.c.b16 %v1589, %v1581
    %v2574 = vpack.c.b16 %v1590, %v1582
    %v2575 = vpack.c.b16 %v1591, %v1583
    %v2576 = vpack.c.b16 %v1592, %v1584
    %v2577 = vpack.c.b16 %v1593, %v1585
    %v2578 = vpack.c.b16 %v1602, %v1594
    %v2579 = vpack.c.b16 %v1603, %v1595
    %v2580 = vpack.c.b16 %v1604, %v1596
    %v2581 = vpack.c.b16 %v1605, %v1597
    %v2582 = vpack.c.b16 %v1606, %v1598
    %v2583 = vpack.c.b16 %v1607, %v1599
    %v2584 = vpack.c.b16 %v1608, %v1600
    %v2585 = vpack.c.b16 %v1609, %v1601
    %v2586 = vpack.c.b16 %v1618, %v1610
    %v2587 = vpack.c.b16 %v1619, %v1611
    %v2588 = vpack.c.b16 %v1620, %v1612
    %v2589 = vpack.c.b16 %v1621, %v1613
    %v2590 = vpack.c.b16 %v1622, %v1614
    %v2591 = vpack.c.b16 %v1623, %v1615
    %v2592 = vpack.c.b16 %v1624, %v1616
    %v2593 = vpack.c.b16 %v1625, %v1617
    %v2594 = vpack.c.b16 %v1634, %v1626
    %v2595 = vpack.c.b16 %v1635, %v1627
    %v2596 = vpack.c.b16 %v1636, %v1628
    %v2597 = vpack.c.b16 %v1637, %v1629
    %v2598 = vpack.c.b16 %v1638, %v1630
    %v2599 = vpack.c.b16 %v1639, %v1631
    %v2600 = vpack.c.b16 %v1640, %v1632
    %v2601 = vpack.c.b16 %v1641, %v1633
    %v2602 = vpack.c.b16 %v1650, %v1642
    %v2603 = vpack.c.b16 %v1651, %v1643
    %v2604 = vpack.c.b16 %v1652, %v1644
    %v2605 = vpack.c.b16 %v1653, %v1645
    %v2606 = vpack.c.b16 %v1654, %v1646
    %v2607 = vpack.c.b16 %v1655, %v1647
    %v2608 = vpack.c.b16 %v1656, %v1648
    %v2609 = vpack.c.b16 %v1657, %v1649
    %v2610 = vpack.c.b16 %v1666, %v1658
    %v2611 = vpack.c.b16 %v1667, %v1659
    %v2612 = vpack.c.b16 %v1668, %v1660
    %v2613 = vpack.c.b16 %v1669, %v1661
    %v2614 = vpack.c.b16 %v1670, %v1662
    %v2615 = vpack.c.b16 %v1671, %v1663
    %v2616 = vpack.c.b16 %v1672, %v1664
    %v2617 = vpack.c.b16 %v1673, %v1665
    %v2618 = vpack.c.b16 %v1682, %v1674
    %v2619 = vpack.c.b16 %v1683, %v1675
    %v2620 = vpack.c.b16 %v1684, %v1676
    %v2621 = vpack.c.b16 %v1685, %v1677
    %v2622 = vpack.c.b16 %v1686, %v1678
    %v2623 = vpack.c.b16 %v1687, %v1679
    %v2624 = vpack.c.b16 %v1688, %v1680
    %v2625 = vpack.c.b16 %v1689, %v1681
    %v2626 = vpack.c.b16 %v1698, %v1690
    %v2627 = vpack.c.b16 %v1699, %v1691
    %v2628 = vpack.c.b16 %v1700, %v1692
    %v2629 = vpack.c.b16 %v1701, %v1693
    %v2630 = vpack.c.b16 %v1702, %v1694
    %v2631 = vpack.c.b16 %v1703, %v1695
    %v2632 = vpack.c.b16 %v1704, %v1696
    %v2633 = vpack.c.b16 %v1705, %v1697
    %v2634 = vpack.c.b16 %v1714, %v1706
    %v2635 = vpack.c.b16 %v1715, %v1707
    %v2636 = vpack.c.b16 %v1716, %v1708
    %v2637 = vpack.c.b16 %v1717, %v1709
    %v2638 = vpack.c.b16 %v1718, %v1710
    %v2639 = vpack.c.b16 %v1719, %v1711
    %v2640 = vpack.c.b16 %v1720, %v1712
    %v2641 = vpack.c.b16 %v1721, %v1713
    %v2642 = vpack.c.b16 %v1730, %v1722
    %v2643 = vpack.c.b16 %v1731, %v1723
    %v2644 = vpack.c.b16 %v1732, %v1724
    %v2645 = vpack.c.b16 %v1733, %v1725
    %v2646 = vpack.c.b16 %v1734, %v1726
    %v2647 = vpack.c.b16 %v1735, %v1727
    %v2648 = vpack.c.b16 %v1736, %v1728
    %v2649 = vpack.c.b16 %v1737, %v1729
    %v2650 = vpack.c.b16 %v1746, %v1738
    %v2651 = vpack.c.b16 %v1747, %v1739
    %v2652 = vpack.c.b16 %v1748, %v1740
    %v2653 = vpack.c.b16 %v1749, %v1741
    %v2654 = vpack.c.b16 %v1750, %v1742
    %v2655 = vpack.c.b16 %v1751, %v1743
    %v2656 = vpack.c.b16 %v1752, %v1744
    %v2657 = vpack.c.b16 %v1753, %v1745
    %v2658 = vpack.c.b16 %v1762, %v1754
    %v2659 = vpack.c.b16 %v1763, %v1755
    %v2660 = vpack.c.b16 %v1764, %v1756
    %v2661 = vpack.c.b16 %v1765, %v1757
    %v2662 = vpack.c.b16 %v1766, %v1758
    %v2663 = vpack.c.b16 %v1767, %v1759
    %v2664 = vpack.c.b16 %v1768, %v1760
    %v2665 = vpack.c.b16 %v1769, %v1761
    %v2666 = vpack.c.b16 %v1778, %v1770
    %v2667 = vpack.c.b16 %v1779, %v1771
    %v2668 = vpack.c.b16 %v1780, %v1772
    %v2669 = vpack.c.b16 %v1781, %v1773
    %v2670 = vpack.c.b16 %v1782, %v1774
    %v2671 = vpack.c.b16 %v1783, %v1775
    %v2672 = vpack.c.b16 %v1784, %v1776
    %v2673 = vpack.c.b16 %v1785, %v1777
    %v2674 = vpack.c.b16 %v1794, %v1786
    %v2675 = vpack.c.b16 %v1795, %v1787
    %v2676 = vpack.c.b16 %v1796, %v1788
    %v2677 = vpack.c.b16 %v1797, %v1789
    %v2678 = vpack.c.b16 %v1798, %v1790
    %v2679 = vpack.c.b16 %v1799, %v1791
    %v2680 = vpack.c.b16 %v1800, %v1792
    %v2681 = vpack.c.b16 %v1801, %v1793
    %v2682 = vpack.c.b16 %v1810, %v1802
    %v2683 = vpack.c.b16 %v1811, %v1803
    %v2684 = vpack.c.b16 %v1812, %v1804
    %v2685 = vpack.c.b16 %v1813, %v1805
    %v2686 = vpack.c.b16 %v1814, %v1806
    %v2687 = vpack.c.b16 %v1815, %v1807
    %v2688 = vpack.c.b16 %v1816, %v1808
    %v2689 = vpack.c.b16 %v1817, %v1809
    %v2690 = vpack.c.b16 %v1826, %v1818
    %v2691 = vpack.c.b16 %v1827, %v1819
    %v2692 = vpack.c.b16 %v1828, %v1820
    %v2693 = vpack.c.b16 %v1829, %v1821
    %v2694 = vpack.c.b16 %v1830, %v1822
    %v2695 = vpack.c.b16 %v1831, %v1823
    %v2696 = vpack.c.b16 %v1832, %v1824
    %v2697 = vpack.c.b16 %v1833, %v1825
    %v2698 = vpack.c.b16 %v1842, %v1834
    %v2699 = vpack.c.b16 %v1843, %v1835
    %v2700 = vpack.c.b16 %v1844, %v1836
    %v2701 = vpack.c.b16 %v1845, %v1837
    %v2702 = vpack.c.b16 %v1846, %v1838
    %v2703 = vpack.c.b16 %v1847, %v1839
    %v2704 = vpack.c.b16 %v1848, %v1840
    %v2705 = vpack.c.b16 %v1849, %v1841
    %v2706 = vpack.c.b16 %v1858, %v1850
    %v2707 = vpack.c.b16 %v1859, %v1851
    %v2708 = vpack.c.b16 %v1860, %v1852
    %v2709 = vpack.c.b16 %v1861, %v1853
    %v2710 = vpack.c.b16 %v1862, %v1854
    %v2711 = vpack.c.b16 %v1863, %v1855
    %v2712 = vpack.c.b16 %v1864, %v1856
    %v2713 = vpack.c.b16 %v1865, %v1857
    %v2714 = vpack.c.b16 %v1874, %v1866
    %v2715 = vpack.c.b16 %v1875, %v1867
    %v2716 = vpack.c.b16 %v1876, %v1868
    %v2717 = vpack.c.b16 %v1877, %v1869
    %v2718 = vpack.c.b16 %v1878, %v1870
    %v2719 = vpack.c.b16 %v1879, %v1871
    %v2720 = vpack.c.b16 %v1880, %v1872
    %v2721 = vpack.c.b16 %v1881, %v1873
    %v2722 = vpack.c.b16 %v1890, %v1882
    %v2723 = vpack.c.b16 %v1891, %v1883
    %v2724 = vpack.c.b16 %v1892, %v1884
    %v2725 = vpack.c.b16 %v1893, %v1885
    %v2726 = vpack.c.b16 %v1894, %v1886
    %v2727 = vpack.c.b16 %v1895, %v1887
    %v2728 = vpack.c.b16 %v1896, %v1888
    %v2729 = vpack.c.b16 %v1897, %v1889
    %v2730 = vpack.c.b16 %v1906, %v1898
    %v2731 = vpack.c.b16 %v1907, %v1899
    %v2732 = vpack.c.b16 %v1908, %v1900
    %v2733 = vpack.c.b16 %v1909, %v1901
    %v2734 = vpack.c.b16 %v1910, %v1902
    %v2735 = vpack.c.b16 %v1911, %v1903
    %v2736 = vpack.c.b16 %v1912, %v1904
    %v2737 = vpack.c.b16 %v1913, %v1905
    %v2738 = vpack.c.b16 %v1922, %v1914
    %v2739 = vpack.c.b16 %v1923, %v1915
    %v2740 = vpack.c.b16 %v1924, %v1916
    %v2741 = vpack.c.b16 %v1925, %v1917
    %v2742 = vpack.c.b16 %v1926, %v1918
    %v2743 = vpack.c.b16 %v1927, %v1919
    %v2744 = vpack.c.b16 %v1928, %v1920
    %v2745 = vpack.c.b16 %v1929, %v1921
    %v2746 = vpack.c.b16 %v1938, %v1930
    %v2747 = vpack.c.b16 %v1939, %v1931
    %v2748 = vpack.c.b16 %v1940, %v1932
    %v2749 = vpack.c.b16 %v1941, %v1933
    %v2750 = vpack.c.b16 %v1942, %v1934
    %v2751 = vpack.c.b16 %v1943, %v1935
    %v2752 = vpack.c.b16 %v1944, %v1936
    %v2753 = vpack.c.b16 %v1945, %v1937
    %v2754 = vpack.c.b16 %v1954, %v1946
    %v2755 = vpack.c.b16 %v1955, %v1947
    %v2756 = vpack.c.b16 %v1956, %v1948
    %v2757 = vpack.c.b16 %v1957, %v1949
    %v2758 = vpack.c.b16 %v1958, %v1950
    %v2759 = vpack.c.b16 %v1959, %v1951
    %v2760 = vpack.c.b16 %v1960, %v1952
    %v2761 = vpack.c.b16 %v1961, %v1953
    %v2762 = vpack.c.b16 %v1970, %v1962
    %v2763 = vpack.c.b16 %v1971, %v1963
    %v2764 = vpack.c.b16 %v1972, %v1964
    %v2765 = vpack.c.b16 %v1973, %v1965
    %v2766 = vpack.c.b16 %v1974, %v1966
    %v2767 = vpack.c.b16 %v1975, %v1967
    %v2768 = vpack.c.b16 %v1976, %v1968
    %v2769 = vpack.c.b16 %v1977, %v1969
    %v2770 = vpack.c.b16 %v1986, %v1978
    %v2771 = vpack.c.b16 %v1987, %v1979
    %v2772 = vpack.c.b16 %v1988, %v1980
    %v2773 = vpack.c.b16 %v1989, %v1981
    %v2774 = vpack.c.b16 %v1990, %v1982
    %v2775 = vpack.c.b16 %v1991, %v1983
    %v2776 = vpack.c.b16 %v1992, %v1984
    %v2777 = vpack.c.b16 %v1993, %v1985
    %v2778 = vpack.c.b16 %v2002, %v1994
    %v2779 = vpack.c.b16 %v2003, %v1995
    %v2780 = vpack.c.b16 %v2004, %v1996
    %v2781 = vpack.c.b16 %v2005, %v1997
    %v2782 = vpack.c.b16 %v2006, %v1998
    %v2783 = vpack.c.b16 %v2007, %v1999
    %v2784 = vpack.c.b16 %v2008, %v2000
    %v2785 = vpack.c.b16 %v2009, %v2001
    %v2786 = vpack.c.b16 %v2018, %v2010
    %v2787 = vpack.c.b16 %v2019, %v2011
    %v2788 = vpack.c.b16 %v2020, %v2012
    %v2789 = vpack.c.b16 %v2021, %v2013
    %v2790 = vpack.c.b16 %v2022, %v2014
    %v2791 = vpack.c.b16 %v2023, %v2015
    %v2792 = vpack.c.b16 %v2024, %v2016
    %v2793 = vpack.c.b16 %v2025, %v2017
    %v2794 = vpack.c.b16 %v2034, %v2026
    %v2795 = vpack.c.b16 %v2035, %v2027
    %v2796 = vpack.c.b16 %v2036, %v2028
    %v2797 = vpack.c.b16 %v2037, %v2029
    %v2798 = vpack.c.b16 %v2038, %v2030
    %v2799 = vpack.c.b16 %v2039, %v2031
    %v2800 = vpack.c.b16 %v2040, %v2032
    %v2801 = vpack.c.b16 %v2041, %v2033
    %v2802 = vpack.c.b16 %v2050, %v2042
    %v2803 = vpack.c.b16 %v2051, %v2043
    %v2804 = vpack.c.b16 %v2052, %v2044
    %v2805 = vpack.c.b16 %v2053, %v2045
    %v2806 = vpack.c.b16 %v2054, %v2046
    %v2807 = vpack.c.b16 %v2055, %v2047
    %v2808 = vpack.c.b16 %v2056, %v2048
    %v2809 = vpack.c.b16 %v2057, %v2049
    %v2810 = vpack.c.b16 %v2066, %v2058
    %v2811 = vpack.c.b16 %v2067, %v2059
    %v2812 = vpack.c.b16 %v2068, %v2060
    %v2813 = vpack.c.b16 %v2069, %v2061
    %v2814 = vpack.c.b16 %v2070, %v2062
    %v2815 = vpack.c.b16 %v2071, %v2063
    %v2816 = vpack.c.b16 %v2072, %v2064
    %v2817 = vpack.c.b16 %v2073, %v2065
    %v2818 = vpack.c.b16 %v2082, %v2074
    %v2819 = vpack.c.b16 %v2083, %v2075
    %v2820 = vpack.c.b16 %v2084, %v2076
    %v2821 = vpack.c.b16 %v2085, %v2077
    %v2822 = vpack.c.b16 %v2086, %v2078
    %v2823 = vpack.c.b16 %v2087, %v2079
    %v2824 = vpack.c.b16 %v2088, %v2080
    %v2825 = vpack.c.b16 %v2089, %v2081
    %v2826 = vpack.c.b16 %v2098, %v2090
    %v2827 = vpack.c.b16 %v2099, %v2091
    %v2828 = vpack.c.b16 %v2100, %v2092
    %v2829 = vpack.c.b16 %v2101, %v2093
    %v2830 = vpack.c.b16 %v2102, %v2094
    %v2831 = vpack.c.b16 %v2103, %v2095
    %v2832 = vpack.c.b16 %v2104, %v2096
    %v2833 = vpack.c.b16 %v2105, %v2097
    %v2834 = vpack.c.b16 %v2114, %v2106
    %v2835 = vpack.c.b16 %v2115, %v2107
    %v2836 = vpack.c.b16 %v2116, %v2108
    %v2837 = vpack.c.b16 %v2117, %v2109
    %v2838 = vpack.c.b16 %v2118, %v2110
    %v2839 = vpack.c.b16 %v2119, %v2111
    %v2840 = vpack.c.b16 %v2120, %v2112
    %v2841 = vpack.c.b16 %v2121, %v2113
    %v2842 = vpack.c.b16 %v2130, %v2122
    %v2843 = vpack.c.b16 %v2131, %v2123
    %v2844 = vpack.c.b16 %v2132, %v2124
    %v2845 = vpack.c.b16 %v2133, %v2125
    %v2846 = vpack.c.b16 %v2134, %v2126
    %v2847 = vpack.c.b16 %v2135, %v2127
    %v2848 = vpack.c.b16 %v2136, %v2128
    %v2849 = vpack.c.b16 %v2137, %v2129
    %v2850 = vpack.c.b16 %v2146, %v2138
    %v2851 = vpack.c.b16 %v2147, %v2139
    %v2852 = vpack.c.b16 %v2148, %v2140
    %v2853 = vpack.c.b16 %v2149, %v2141
    %v2854 = vpack.c.b16 %v2150, %v2142
    %v2855 = vpack.c.b16 %v2151, %v2143
    %v2856 = vpack.c.b16 %v2152, %v2144
    %v2857 = vpack.c.b16 %v2153, %v2145
    %v2858 = vpack.c.b16 %v2162, %v2154
    %v2859 = vpack.c.b16 %v2163, %v2155
    %v2860 = vpack.c.b16 %v2164, %v2156
    %v2861 = vpack.c.b16 %v2165, %v2157
    %v2862 = vpack.c.b16 %v2166, %v2158
    %v2863 = vpack.c.b16 %v2167, %v2159
    %v2864 = vpack.c.b16 %v2168, %v2160
    %v2865 = vpack.c.b16 %v2169, %v2161
    %v2866 = vpack.c.b16 %v2178, %v2170
    %v2867 = vpack.c.b16 %v2179, %v2171
    %v2868 = vpack.c.b16 %v2180, %v2172
    %v2869 = vpack.c.b16 %v2181, %v2173
    %v2870 = vpack.c.b16 %v2182, %v2174
    %v2871 = vpack.c.b16 %v2183, %v2175
    %v2872 = vpack.c.b16 %v2184, %v2176
    %v2873 = vpack.c.b16 %v2185, %v2177
    %v2874 = vpack.c.b16 %v2194, %v2186
    %v2875 = vpack.c.b16 %v2195, %v2187
    %v2876 = vpack.c.b16 %v2196, %v2188
    %v2877 = vpack.c.b16 %v2197, %v2189
    %v2878 = vpack.c.b16 %v2198, %v2190
    %v2879 = vpack.c.b16 %v2199, %v2191
    %v2880 = vpack.c.b16 %v2200, %v2192
    %v2881 = vpack.c.b16 %v2201, %v2193
    %v2882 = vpack.c.b16 %v2210, %v2202
    %v2883 = vpack.c.b16 %v2211, %v2203
    %v2884 = vpack.c.b16 %v2212, %v2204
    %v2885 = vpack.c.b16 %v2213, %v2205
    %v2886 = vpack.c.b16 %v2214, %v2206
    %v2887 = vpack.c.b16 %v2215, %v2207
    %v2888 = vpack.c.b16 %v2216, %v2208
    %v2889 = vpack.c.b16 %v2217, %v2209
    %v2890 = vpack.c.b16 %v2226, %v2218
    %v2891 = vpack.c.b16 %v2227, %v2219
    %v2892 = vpack.c.b16 %v2228, %v2220
    %v2893 = vpack.c.b16 %v2229, %v2221
    %v2894 = vpack.c.b16 %v2230, %v2222
    %v2895 = vpack.c.b16 %v2231, %v2223
    %v2896 = vpack.c.b16 %v2232, %v2224
    %v2897 = vpack.c.b16 %v2233, %v2225
    %v2898 = vpack.c.b16 %v2242, %v2234
    %v2899 = vpack.c.b16 %v2243, %v2235
    %v2900 = vpack.c.b16 %v2244, %v2236
    %v2901 = vpack.c.b16 %v2245, %v2237
    %v2902 = vpack.c.b16 %v2246, %v2238
    %v2903 = vpack.c.b16 %v2247, %v2239
    %v2904 = vpack.c.b16 %v2248, %v2240
    %v2905 = vpack.c.b16 %v2249, %v2241
    %v2906 = vpack.c.b16 %v2258, %v2250
    %v2907 = vpack.c.b16 %v2259, %v2251
    %v2908 = vpack.c.b16 %v2260, %v2252
    %v2909 = vpack.c.b16 %v2261, %v2253
    %v2910 = vpack.c.b16 %v2262, %v2254
    %v2911 = vpack.c.b16 %v2263, %v2255
    %v2912 = vpack.c.b16 %v2264, %v2256
    %v2913 = vpack.c.b16 %v2265, %v2257
    %v2914 = vpack.c.b16 %v2274, %v2266
    %v2915 = vpack.c.b16 %v2275, %v2267
    %v2916 = vpack.c.b16 %v2276, %v2268
    %v2917 = vpack.c.b16 %v2277, %v2269
    %v2918 = vpack.c.b16 %v2278, %v2270
    %v2919 = vpack.c.b16 %v2279, %v2271
    %v2920 = vpack.c.b16 %v2280, %v2272
    %v2921 = vpack.c.b16 %v2281, %v2273
    %v2922 = vpack.c.b16 %v2290, %v2282
    %v2923 = vpack.c.b16 %v2291, %v2283
    %v2924 = vpack.c.b16 %v2292, %v2284
    %v2925 = vpack.c.b16 %v2293, %v2285
    %v2926 = vpack.c.b16 %v2294, %v2286
    %v2927 = vpack.c.b16 %v2295, %v2287
    %v2928 = vpack.c.b16 %v2296, %v2288
    %v2929 = vpack.c.b16 %v2297, %v2289
    %v2930 = vpack.c.b16 %v2306, %v2298
    %v2931 = vpack.c.b16 %v2307, %v2299
    %v2932 = vpack.c.b16 %v2308, %v2300
    %v2933 = vpack.c.b16 %v2309, %v2301
    %v2934 = vpack.c.b16 %v2310, %v2302
    %v2935 = vpack.c.b16 %v2311, %v2303
    %v2936 = vpack.c.b16 %v2312, %v2304
    %v2937 = vpack.c.b16 %v2313, %v2305
    %v2938 = vpack.c.b16 %v2322, %v2314
    %v2939 = vpack.c.b16 %v2323, %v2315
    %v2940 = vpack.c.b16 %v2324, %v2316
    %v2941 = vpack.c.b16 %v2325, %v2317
    %v2942 = vpack.c.b16 %v2326, %v2318
    %v2943 = vpack.c.b16 %v2327, %v2319
    %v2944 = vpack.c.b16 %v2328, %v2320
    %v2945 = vpack.c.b16 %v2329, %v2321
    %v2946 = vpack.c.b16 %v2338, %v2330
    %v2947 = vpack.c.b16 %v2339, %v2331
    %v2948 = vpack.c.b16 %v2340, %v2332
    %v2949 = vpack.c.b16 %v2341, %v2333
    %v2950 = vpack.c.b16 %v2342, %v2334
    %v2951 = vpack.c.b16 %v2343, %v2335
    %v2952 = vpack.c.b16 %v2344, %v2336
    %v2953 = vpack.c.b16 %v2345, %v2337
    %v2954 = vpack.c.b16 %v2354, %v2346
    %v2955 = vpack.c.b16 %v2355, %v2347
    %v2956 = vpack.c.b16 %v2356, %v2348
    %v2957 = vpack.c.b16 %v2357, %v2349
    %v2958 = vpack.c.b16 %v2358, %v2350
    %v2959 = vpack.c.b16 %v2359, %v2351
    %v2960 = vpack.c.b16 %v2360, %v2352
    %v2961 = vpack.c.b16 %v2361, %v2353
    %v2962 = vpack.c.b16 %v2370, %v2362
    %v2963 = vpack.c.b16 %v2371, %v2363
    %v2964 = vpack.c.b16 %v2372, %v2364
    %v2965 = vpack.c.b16 %v2373, %v2365
    %v2966 = vpack.c.b16 %v2374, %v2366
    %v2967 = vpack.c.b16 %v2375, %v2367
    %v2968 = vpack.c.b16 %v2376, %v2368
    %v2969 = vpack.c.b16 %v2377, %v2369
    %v2970 = vpack.c.b16 %v2386, %v2378
    %v2971 = vpack.c.b16 %v2387, %v2379
    %v2972 = vpack.c.b16 %v2388, %v2380
    %v2973 = vpack.c.b16 %v2389, %v2381
    %v2974 = vpack.c.b16 %v2390, %v2382
    %v2975 = vpack.c.b16 %v2391, %v2383
    %v2976 = vpack.c.b16 %v2392, %v2384
    %v2977 = vpack.c.b16 %v2393, %v2385
    %v2978 = vpack.c.b16 %v2402, %v2394
    %v2979 = vpack.c.b16 %v2403, %v2395
    %v2980 = vpack.c.b16 %v2404, %v2396
    %v2981 = vpack.c.b16 %v2405, %v2397
    %v2982 = vpack.c.b16 %v2406, %v2398
    %v2983 = vpack.c.b16 %v2407, %v2399
    %v2984 = vpack.c.b16 %v2408, %v2400
    %v2985 = vpack.c.b16 %v2409, %v2401
    %v2986 = vpack.c.b16 %v2418, %v2410
    %v2987 = vpack.c.b16 %v2419, %v2411
    %v2988 = vpack.c.b16 %v2420, %v2412
    %v2989 = vpack.c.b16 %v2421, %v2413
    %v2990 = vpack.c.b16 %v2422, %v2414
    %v2991 = vpack.c.b16 %v2423, %v2415
    %v2992 = vpack.c.b16 %v2424, %v2416
    %v2993 = vpack.c.b16 %v2425, %v2417
    %v2994 = vpack.c.b16 %v2434, %v2426
    %v2995 = vpack.c.b16 %v2435, %v2427
    %v2996 = vpack.c.b16 %v2436, %v2428
    %v2997 = vpack.c.b16 %v2437, %v2429
    %v2998 = vpack.c.b16 %v2438, %v2430
    %v2999 = vpack.c.b16 %v2439, %v2431
    %v3000 = vpack.c.b16 %v2440, %v2432
    %v3001 = vpack.c.b16 %v2441, %v2433
    %v3002 = vpack.c.b16 %v2450, %v2442
    %v3003 = vpack.c.b16 %v2451, %v2443
    %v3004 = vpack.c.b16 %v2452, %v2444
    %v3005 = vpack.c.b16 %v2453, %v2445
    %v3006 = vpack.c.b16 %v2454, %v2446
    %v3007 = vpack.c.b16 %v2455, %v2447
    %v3008 = vpack.c.b16 %v2456, %v2448
    %v3009 = vpack.c.b16 %v2457, %v2449
    %v3010 = vpack.c.b16 %v2466, %v2458
    %v3011 = vpack.c.b16 %v2467, %v2459
    %v3012 = vpack.c.b16 %v2468, %v2460
    %v3013 = vpack.c.b16 %v2469, %v2461
    %v3014 = vpack.c.b16 %v2470, %v2462
    %v3015 = vpack.c.b16 %v2471, %v2463
    %v3016 = vpack.c.b16 %v2472, %v2464
    %v3017 = vpack.c.b16 %v2473, %v2465
    %v3018 = vpack.c.b16 %v2482, %v2474
    %v3019 = vpack.c.b16 %v2483, %v2475
    %v3020 = vpack.c.b16 %v2484, %v2476
    %v3021 = vpack.c.b16 %v2485, %v2477
    %v3022 = vpack.c.b16 %v2486, %v2478
    %v3023 = vpack.c.b16 %v2487, %v2479
    %v3024 = vpack.c.b16 %v2488, %v2480
    %v3025 = vpack.c.b16 %v2489, %v2481
    %v3026 = vpack.c.b16 %v2498, %v2490
    %v3027 = vpack.c.b16 %v2499, %v2491
    %v3028 = vpack.c.b16 %v2500, %v2492
    %v3029 = vpack.c.b16 %v2501, %v2493
    %v3030 = vpack.c.b16 %v2502, %v2494
    %v3031 = vpack.c.b16 %v2503, %v2495
    %v3032 = vpack.c.b16 %v2504, %v2496
    %v3033 = vpack.c.b16 %v2505, %v2497
    %v3034 = vpack.c.b16 %v2514, %v2506
    %v3035 = vpack.c.b16 %v2515, %v2507
    %v3036 = vpack.c.b16 %v2516, %v2508
    %v3037 = vpack.c.b16 %v2517, %v2509
    %v3038 = vpack.c.b16 %v2518, %v2510
    %v3039 = vpack.c.b16 %v2519, %v2511
    %v3040 = vpack.c.b16 %v2520, %v2512
    %v3041 = vpack.c.b16 %v2521, %v2513
    %v3042 = vpack.c.b16 %v2530, %v2522
    %v3043 = vpack.c.b16 %v2531, %v2523
    %v3044 = vpack.c.b16 %v2532, %v2524
    %v3045 = vpack.c.b16 %v2533, %v2525
    %v3046 = vpack.c.b16 %v2534, %v2526
    %v3047 = vpack.c.b16 %v2535, %v2527
    %v3048 = vpack.c.b16 %v2536, %v2528
    %v3049 = vpack.c.b16 %v2537, %v2529
    %3562 = vmatprep.subr.bf16.mxu0 %v2539
    %3563 = vmatpush1.bf16.msra.mxu0 %v2538
    %3564 = vmatprep.subr.bf16.mxu0 %v2547
    %3565 = vmatpush1.bf16.msra.mxu0 %v2546
    %3566 = vmatprep.subr.bf16.mxu0 %v2555
    %3567 = vmatpush1.bf16.msra.mxu0 %v2554
    %3568 = vmatprep.subr.bf16.mxu0 %v2563
    %3569 = vmatpush1.bf16.msra.mxu0 %v2562
    %3570 = vmatprep.subr.bf16.mxu0 %v2571
    %3571 = vmatpush1.bf16.msra.mxu0 %v2570
    %3572 = vmatprep.subr.bf16.mxu0 %v2579
    %3573 = vmatpush1.bf16.msra.mxu0 %v2578
    %3574 = vmatprep.subr.bf16.mxu0 %v2587
    %3575 = vmatpush1.bf16.msra.mxu0 %v2586
    %3576 = vmatprep.subr.bf16.mxu0 %v2595
    %3577 = vmatpush1.bf16.msra.mxu0 %v2594
    %3578 = vmatprep.subr.bf16.mxu0 %v2603
    %3579 = vmatpush1.bf16.msra.mxu0 %v2602
    %3580 = vmatprep.subr.bf16.mxu0 %v2611
    %3581 = vmatpush1.bf16.msra.mxu0 %v2610
    %3582 = vmatprep.subr.bf16.mxu0 %v2619
    %3583 = vmatpush1.bf16.msra.mxu0 %v2618
    %3584 = vmatprep.subr.bf16.mxu0 %v2627
    %3585 = vmatpush1.bf16.msra.mxu0 %v2626
    %3586 = vmatprep.subr.bf16.mxu0 %v2635
    %3587 = vmatpush1.bf16.msra.mxu0 %v2634
    %3588 = vmatprep.subr.bf16.mxu0 %v2643
    %3589 = vmatpush1.bf16.msra.mxu0 %v2642
    %3590 = vmatprep.subr.bf16.mxu0 %v2651
    %3591 = vmatpush1.bf16.msra.mxu0 %v2650
    %3592 = vmatprep.subr.bf16.mxu0 %v2659
    %3593 = vmatpush1.bf16.msra.mxu0 %v2658
    %3594 = vmatprep.mubr.bf16.mxu0 %v451
    %3595 = vmatmul.mubr.bf16.gmra.mrb[0].mxu0 %v450
    %v3596 = vpop.f32.mrb[0].mxu0
    %v3597 = vadd.f32 %v973, %v3596
    %v3598 = vpop.f32.mrb[0].mxu0
    %v3599 = vadd.f32 %v977, %v3598
    %v3600 = vpop.f32.mrb[0].mxu0
    %v3601 = vpop.f32.mrb[0].mxu0
    %3602 = vdwg.mxu0
    %3603 = vmatprep.subr.bf16.mxu0 %v2667
    %3604 = vmatpush1.bf16.msra.mxu0 %v2666
    %3605 = vmatprep.subr.bf16.mxu0 %v2675
    %3606 = vmatpush1.bf16.msra.mxu0 %v2674
    %3607 = vmatprep.subr.bf16.mxu0 %v2683
    %3608 = vmatpush1.bf16.msra.mxu0 %v2682
    %3609 = vmatprep.subr.bf16.mxu0 %v2691
    %3610 = vmatpush1.bf16.msra.mxu0 %v2690
    %3611 = vmatprep.subr.bf16.mxu0 %v2699
    %3612 = vmatpush1.bf16.msra.mxu0 %v2698
    %3613 = vmatprep.subr.bf16.mxu0 %v2707
    %3614 = vmatpush1.bf16.msra.mxu0 %v2706
    %3615 = vmatprep.subr.bf16.mxu0 %v2715
    %3616 = vmatpush1.bf16.msra.mxu0 %v2714
    %3617 = vmatprep.subr.bf16.mxu0 %v2723
    %3618 = vmatpush1.bf16.msra.mxu0 %v2722
    %3619 = vmatprep.subr.bf16.mxu0 %v2731
    %3620 = vmatpush1.bf16.msra.mxu0 %v2730
    %3621 = vmatprep.subr.bf16.mxu0 %v2739
    %3622 = vmatpush1.bf16.msra.mxu0 %v2738
    %3623 = vmatprep.subr.bf16.mxu0 %v2747
    %3624 = vmatpush1.bf16.msra.mxu0 %v2746
    %3625 = vmatprep.subr.bf16.mxu0 %v2755
    %3626 = vmatpush1.bf16.msra.mxu0 %v2754
    %3627 = vmatprep.subr.bf16.mxu0 %v2763
    %3628 = vmatpush1.bf16.msra.mxu0 %v2762
    %3629 = vmatprep.subr.bf16.mxu0 %v2771
    %3630 = vmatpush1.bf16.msra.mxu0 %v2770
    %3631 = vmatprep.subr.bf16.mxu0 %v2779
    %3632 = vmatpush1.bf16.msra.mxu0 %v2778
    %3633 = vmatprep.subr.bf16.mxu0 %v2787
    %3634 = vmatpush1.bf16.msra.mxu0 %v2786
    %3635 = vmatprep.mubr.bf16.mxu0 %v453
    %3636 = vmatmul.mubr.bf16.gmra.mrb[0].mxu0 %v452
    %v3637 = vpop.f32.mrb[0].mxu0
    %v3638 = vadd.f32 %v3597, %v3637
    %v3639 = vpop.f32.mrb[0].mxu0
    %v3640 = vadd.f32 %v3599, %v3639
    %v3641 = vpop.f32.mrb[0].mxu0
    %v3642 = vpop.f32.mrb[0].mxu0
    %3643 = vdwg.mxu0
    %3644 = vmatprep.subr.bf16.mxu0 %v2795
    %3645 = vmatpush1.bf16.msra.mxu0 %v2794
    %3646 = vmatprep.subr.bf16.mxu0 %v2803
    %3647 = vmatpush1.bf16.msra.mxu0 %v2802
    %3648 = vmatprep.subr.bf16.mxu0 %v2811
    %3649 = vmatpush1.bf16.msra.mxu0 %v2810
    %3650 = vmatprep.subr.bf16.mxu0 %v2819
    %3651 = vmatpush1.bf16.msra.mxu0 %v2818
    %3652 = vmatprep.subr.bf16.mxu0 %v2827
    %3653 = vmatpush1.bf16.msra.mxu0 %v2826
    %3654 = vmatprep.subr.bf16.mxu0 %v2835
    %3655 = vmatpush1.bf16.msra.mxu0 %v2834
    %3656 = vmatprep.subr.bf16.mxu0 %v2843
    %3657 = vmatpush1.bf16.msra.mxu0 %v2842
    %3658 = vmatprep.subr.bf16.mxu0 %v2851
    %3659 = vmatpush1.bf16.msra.mxu0 %v2850
    %3660 = vmatprep.subr.bf16.mxu0 %v2859
    %3661 = vmatpush1.bf16.msra.mxu0 %v2858
    %3662 = vmatprep.subr.bf16.mxu0 %v2867
    %3663 = vmatpush1.bf16.msra.mxu0 %v2866
    %3664 = vmatprep.subr.bf16.mxu0 %v2875
    %3665 = vmatpush1.bf16.msra.mxu0 %v2874
    %3666 = vmatprep.subr.bf16.mxu0 %v2883
    %3667 = vmatpush1.bf16.msra.mxu0 %v2882
    %3668 = vmatprep.subr.bf16.mxu0 %v2891
    %3669 = vmatpush1.bf16.msra.mxu0 %v2890
    %3670 = vmatprep.subr.bf16.mxu0 %v2899
    %3671 = vmatpush1.bf16.msra.mxu0 %v2898
    %3672 = vmatprep.subr.bf16.mxu0 %v2907
    %3673 = vmatpush1.bf16.msra.mxu0 %v2906
    %3674 = vmatprep.subr.bf16.mxu0 %v2915
    %3675 = vmatpush1.bf16.msra.mxu0 %v2914
    %3676 = vmatprep.mubr.bf16.mxu0 %v455
    %3677 = vmatmul.mubr.bf16.gmra.mrb[0].mxu0 %v454
    %v3678 = vpop.f32.mrb[0].mxu0
    %v3679 = vadd.f32 %v3638, %v3678
    %v3680 = vpop.f32.mrb[0].mxu0
    %v3681 = vadd.f32 %v3640, %v3680
    %v3682 = vpop.f32.mrb[0].mxu0
    %v3683 = vpop.f32.mrb[0].mxu0
    %3684 = vdwg.mxu0
    %3685 = vmatprep.subr.bf16.mxu0 %v2923
    %3686 = vmatpush1.bf16.msra.mxu0 %v2922
    %3687 = vmatprep.subr.bf16.mxu0 %v2931
    %3688 = vmatpush1.bf16.msra.mxu0 %v2930
    %3689 = vmatprep.subr.bf16.mxu0 %v2939
    %3690 = vmatpush1.bf16.msra.mxu0 %v2938
    %3691 = vmatprep.subr.bf16.mxu0 %v2947
    %3692 = vmatpush1.bf16.msra.mxu0 %v2946
    %3693 = vmatprep.subr.bf16.mxu0 %v2955
    %3694 = vmatpush1.bf16.msra.mxu0 %v2954
    %3695 = vmatprep.subr.bf16.mxu0 %v2963
    %3696 = vmatpush1.bf16.msra.mxu0 %v2962
    %3697 = vmatprep.subr.bf16.mxu0 %v2971
    %3698 = vmatpush1.bf16.msra.mxu0 %v2970
    %3699 = vmatprep.subr.bf16.mxu0 %v2979
    %3700 = vmatpush1.bf16.msra.mxu0 %v2978
    %3701 = vmatprep.subr.bf16.mxu0 %v2987
    %3702 = vmatpush1.bf16.msra.mxu0 %v2986
    %3703 = vmatprep.subr.bf16.mxu0 %v2995
    %3704 = vmatpush1.bf16.msra.mxu0 %v2994
    %3705 = vmatprep.subr.bf16.mxu0 %v3003
    %3706 = vmatpush1.bf16.msra.mxu0 %v3002
    %3707 = vmatprep.subr.bf16.mxu0 %v3011
    %3708 = vmatpush1.bf16.msra.mxu0 %v3010
    %3709 = vmatprep.subr.bf16.mxu0 %v3019
    %3710 = vmatpush1.bf16.msra.mxu0 %v3018
    %3711 = vmatprep.subr.bf16.mxu0 %v3027
    %3712 = vmatpush1.bf16.msra.mxu0 %v3026
    %3713 = vmatprep.subr.bf16.mxu0 %v3035
    %3714 = vmatpush1.bf16.msra.mxu0 %v3034
    %3715 = vmatprep.subr.bf16.mxu0 %v3043
    %3716 = vmatpush1.bf16.msra.mxu0 %v3042
    %3717 = vmatprep.mubr.bf16.mxu0 %v457
    %3718 = vmatmul.mubr.bf16.gmra.mrb[0].mxu0 %v456
    %v3719 = vpop.f32.mrb[0].mxu0
    %v3720 = vadd.f32 %v3679, %v3719
    %v3721 = vpop.f32.mrb[0].mxu0
    %v3722 = vadd.f32 %v3681, %v3721
    %v3723 = vpop.f32.mrb[0].mxu0
    %v3724 = vpop.f32.mrb[0].mxu0
    %3725 = vdwg.mxu0
    %3726 = vmatprep.subr.bf16.mxu0 %v2541
    %3727 = vmatpush1.bf16.msra.mxu0 %v2540
    %3728 = vmatprep.subr.bf16.mxu0 %v2549
    %3729 = vmatpush1.bf16.msra.mxu0 %v2548
    %3730 = vmatprep.subr.bf16.mxu0 %v2557
    %3731 = vmatpush1.bf16.msra.mxu0 %v2556
    %3732 = vmatprep.subr.bf16.mxu0 %v2565
    %3733 = vmatpush1.bf16.msra.mxu0 %v2564
    %3734 = vmatprep.subr.bf16.mxu0 %v2573
    %3735 = vmatpush1.bf16.msra.mxu0 %v2572
    %3736 = vmatprep.subr.bf16.mxu0 %v2581
    %3737 = vmatpush1.bf16.msra.mxu0 %v2580
    %3738 = vmatprep.subr.bf16.mxu0 %v2589
    %3739 = vmatpush1.bf16.msra.mxu0 %v2588
    %3740 = vmatprep.subr.bf16.mxu0 %v2597
    %3741 = vmatpush1.bf16.msra.mxu0 %v2596
    %3742 = vmatprep.subr.bf16.mxu0 %v2605
    %3743 = vmatpush1.bf16.msra.mxu0 %v2604
    %3744 = vmatprep.subr.bf16.mxu0 %v2613
    %3745 = vmatpush1.bf16.msra.mxu0 %v2612
    %3746 = vmatprep.subr.bf16.mxu0 %v2621
    %3747 = vmatpush1.bf16.msra.mxu0 %v2620
    %3748 = vmatprep.subr.bf16.mxu0 %v2629
    %3749 = vmatpush1.bf16.msra.mxu0 %v2628
    %3750 = vmatprep.subr.bf16.mxu0 %v2637
    %3751 = vmatpush1.bf16.msra.mxu0 %v2636
    %3752 = vmatprep.subr.bf16.mxu0 %v2645
    %3753 = vmatpush1.bf16.msra.mxu0 %v2644
    %3754 = vmatprep.subr.bf16.mxu0 %v2653
    %3755 = vmatpush1.bf16.msra.mxu0 %v2652
    %3756 = vmatprep.subr.bf16.mxu0 %v2661
    %3757 = vmatpush1.bf16.msra.mxu0 %v2660
    %3758 = vmatprep.mubr.bf16.mxu0 %v451
    %3759 = vmatmul.mubr.bf16.gmra.mrb[0].mxu0 %v450
    %v3760 = vpop.f32.mrb[0].mxu0
    %v3761 = vadd.f32 %v981, %v3760
    %v3762 = vpop.f32.mrb[0].mxu0
    %v3763 = vadd.f32 %v985, %v3762
    %v3764 = vpop.f32.mrb[0].mxu0
    %v3765 = vpop.f32.mrb[0].mxu0
    %3766 = vdwg.mxu0
    %3767 = vmatprep.subr.bf16.mxu0 %v2669
    %3768 = vmatpush1.bf16.msra.mxu0 %v2668
    %3769 = vmatprep.subr.bf16.mxu0 %v2677
    %3770 = vmatpush1.bf16.msra.mxu0 %v2676
    %3771 = vmatprep.subr.bf16.mxu0 %v2685
    %3772 = vmatpush1.bf16.msra.mxu0 %v2684
    %3773 = vmatprep.subr.bf16.mxu0 %v2693
    %3774 = vmatpush1.bf16.msra.mxu0 %v2692
    %3775 = vmatprep.subr.bf16.mxu0 %v2701
    %3776 = vmatpush1.bf16.msra.mxu0 %v2700
    %3777 = vmatprep.subr.bf16.mxu0 %v2709
    %3778 = vmatpush1.bf16.msra.mxu0 %v2708
    %3779 = vmatprep.subr.bf16.mxu0 %v2717
    %3780 = vmatpush1.bf16.msra.mxu0 %v2716
    %3781 = vmatprep.subr.bf16.mxu0 %v2725
    %3782 = vmatpush1.bf16.msra.mxu0 %v2724
    %3783 = vmatprep.subr.bf16.mxu0 %v2733
    %3784 = vmatpush1.bf16.msra.mxu0 %v2732
    %3785 = vmatprep.subr.bf16.mxu0 %v2741
    %3786 = vmatpush1.bf16.msra.mxu0 %v2740
    %3787 = vmatprep.subr.bf16.mxu0 %v2749
    %3788 = vmatpush1.bf16.msra.mxu0 %v2748
    %3789 = vmatprep.subr.bf16.mxu0 %v2757
    %3790 = vmatpush1.bf16.msra.mxu0 %v2756
    %3791 = vmatprep.subr.bf16.mxu0 %v2765
    %3792 = vmatpush1.bf16.msra.mxu0 %v2764
    %3793 = vmatprep.subr.bf16.mxu0 %v2773
    %3794 = vmatpush1.bf16.msra.mxu0 %v2772
    %3795 = vmatprep.subr.bf16.mxu0 %v2781
    %3796 = vmatpush1.bf16.msra.mxu0 %v2780
    %3797 = vmatprep.subr.bf16.mxu0 %v2789
    %3798 = vmatpush1.bf16.msra.mxu0 %v2788
    %3799 = vmatprep.mubr.bf16.mxu0 %v453
    %3800 = vmatmul.mubr.bf16.gmra.mrb[0].mxu0 %v452
    %v3801 = vpop.f32.mrb[0].mxu0
    %v3802 = vadd.f32 %v3761, %v3801
    %v3803 = vpop.f32.mrb[0].mxu0
    %v3804 = vadd.f32 %v3763, %v3803
    %v3805 = vpop.f32.mrb[0].mxu0
    %v3806 = vpop.f32.mrb[0].mxu0
    %3807 = vdwg.mxu0
    %3808 = vmatprep.subr.bf16.mxu0 %v2797
    %3809 = vmatpush1.bf16.msra.mxu0 %v2796
    %3810 = vmatprep.subr.bf16.mxu0 %v2805
    %3811 = vmatpush1.bf16.msra.mxu0 %v2804
    %3812 = vmatprep.subr.bf16.mxu0 %v2813
    %3813 = vmatpush1.bf16.msra.mxu0 %v2812
    %3814 = vmatprep.subr.bf16.mxu0 %v2821
    %3815 = vmatpush1.bf16.msra.mxu0 %v2820
    %3816 = vmatprep.subr.bf16.mxu0 %v2829
    %3817 = vmatpush1.bf16.msra.mxu0 %v2828
    %3818 = vmatprep.subr.bf16.mxu0 %v2837
    %3819 = vmatpush1.bf16.msra.mxu0 %v2836
    %3820 = vmatprep.subr.bf16.mxu0 %v2845
    %3821 = vmatpush1.bf16.msra.mxu0 %v2844
    %3822 = vmatprep.subr.bf16.mxu0 %v2853
    %3823 = vmatpush1.bf16.msra.mxu0 %v2852
    %3824 = vmatprep.subr.bf16.mxu0 %v2861
    %3825 = vmatpush1.bf16.msra.mxu0 %v2860
    %3826 = vmatprep.subr.bf16.mxu0 %v2869
    %3827 = vmatpush1.bf16.msra.mxu0 %v2868
    %3828 = vmatprep.subr.bf16.mxu0 %v2877
    %3829 = vmatpush1.bf16.msra.mxu0 %v2876
    %3830 = vmatprep.subr.bf16.mxu0 %v2885
    %3831 = vmatpush1.bf16.msra.mxu0 %v2884
    %3832 = vmatprep.subr.bf16.mxu0 %v2893
    %3833 = vmatpush1.bf16.msra.mxu0 %v2892
    %3834 = vmatprep.subr.bf16.mxu0 %v2901
    %3835 = vmatpush1.bf16.msra.mxu0 %v2900
    %3836 = vmatprep.subr.bf16.mxu0 %v2909
    %3837 = vmatpush1.bf16.msra.mxu0 %v2908
    %3838 = vmatprep.subr.bf16.mxu0 %v2917
    %3839 = vmatpush1.bf16.msra.mxu0 %v2916
    %3840 = vmatprep.mubr.bf16.mxu0 %v455
    %3841 = vmatmul.mubr.bf16.gmra.mrb[0].mxu0 %v454
    %v3842 = vpop.f32.mrb[0].mxu0
    %v3843 = vadd.f32 %v3802, %v3842
    %v3844 = vpop.f32.mrb[0].mxu0
    %v3845 = vadd.f32 %v3804, %v3844
    %v3846 = vpop.f32.mrb[0].mxu0
    %v3847 = vpop.f32.mrb[0].mxu0
    %3848 = vdwg.mxu0
    %3849 = vmatprep.subr.bf16.mxu0 %v2925
    %3850 = vmatpush1.bf16.msra.mxu0 %v2924
    %3851 = vmatprep.subr.bf16.mxu0 %v2933
    %3852 = vmatpush1.bf16.msra.mxu0 %v2932
    %3853 = vmatprep.subr.bf16.mxu0 %v2941
    %3854 = vmatpush1.bf16.msra.mxu0 %v2940
    %3855 = vmatprep.subr.bf16.mxu0 %v2949
    %3856 = vmatpush1.bf16.msra.mxu0 %v2948
    %3857 = vmatprep.subr.bf16.mxu0 %v2957
    %3858 = vmatpush1.bf16.msra.mxu0 %v2956
    %3859 = vmatprep.subr.bf16.mxu0 %v2965
    %3860 = vmatpush1.bf16.msra.mxu0 %v2964
    %3861 = vmatprep.subr.bf16.mxu0 %v2973
    %3862 = vmatpush1.bf16.msra.mxu0 %v2972
    %3863 = vmatprep.subr.bf16.mxu0 %v2981
    %3864 = vmatpush1.bf16.msra.mxu0 %v2980
    %3865 = vmatprep.subr.bf16.mxu0 %v2989
    %3866 = vmatpush1.bf16.msra.mxu0 %v2988
    %3867 = vmatprep.subr.bf16.mxu0 %v2997
    %3868 = vmatpush1.bf16.msra.mxu0 %v2996
    %3869 = vmatprep.subr.bf16.mxu0 %v3005
    %3870 = vmatpush1.bf16.msra.mxu0 %v3004
    %3871 = vmatprep.subr.bf16.mxu0 %v3013
    %3872 = vmatpush1.bf16.msra.mxu0 %v3012
    %3873 = vmatprep.subr.bf16.mxu0 %v3021
    %3874 = vmatpush1.bf16.msra.mxu0 %v3020
    %3875 = vmatprep.subr.bf16.mxu0 %v3029
    %3876 = vmatpush1.bf16.msra.mxu0 %v3028
    %3877 = vmatprep.subr.bf16.mxu0 %v3037
    %3878 = vmatpush1.bf16.msra.mxu0 %v3036
    %3879 = vmatprep.subr.bf16.mxu0 %v3045
    %3880 = vmatpush1.bf16.msra.mxu0 %v3044
    %3881 = vmatprep.mubr.bf16.mxu0 %v457
    %3882 = vmatmul.mubr.bf16.gmra.mrb[0].mxu0 %v456
    %v3883 = vpop.f32.mrb[0].mxu0
    %v3884 = vadd.f32 %v3843, %v3883
    %v3885 = vpop.f32.mrb[0].mxu0
    %v3886 = vadd.f32 %v3845, %v3885
    %v3887 = vpop.f32.mrb[0].mxu0
    %v3888 = vpop.f32.mrb[0].mxu0
    %3889 = vdwg.mxu0
    %3890 = vmatprep.subr.bf16.mxu0 %v2543
    %3891 = vmatpush1.bf16.msra.mxu0 %v2542
    %3892 = vmatprep.subr.bf16.mxu0 %v2551
    %3893 = vmatpush1.bf16.msra.mxu0 %v2550
    %3894 = vmatprep.subr.bf16.mxu0 %v2559
    %3895 = vmatpush1.bf16.msra.mxu0 %v2558
    %3896 = vmatprep.subr.bf16.mxu0 %v2567
    %3897 = vmatpush1.bf16.msra.mxu0 %v2566
    %3898 = vmatprep.subr.bf16.mxu0 %v2575
    %3899 = vmatpush1.bf16.msra.mxu0 %v2574
    %3900 = vmatprep.subr.bf16.mxu0 %v2583
    %3901 = vmatpush1.bf16.msra.mxu0 %v2582
    %3902 = vmatprep.subr.bf16.mxu0 %v2591
    %3903 = vmatpush1.bf16.msra.mxu0 %v2590
    %3904 = vmatprep.subr.bf16.mxu0 %v2599
    %3905 = vmatpush1.bf16.msra.mxu0 %v2598
    %3906 = vmatprep.subr.bf16.mxu0 %v2607
    %3907 = vmatpush1.bf16.msra.mxu0 %v2606
    %3908 = vmatprep.subr.bf16.mxu0 %v2615
    %3909 = vmatpush1.bf16.msra.mxu0 %v2614
    %3910 = vmatprep.subr.bf16.mxu0 %v2623
    %3911 = vmatpush1.bf16.msra.mxu0 %v2622
    %3912 = vmatprep.subr.bf16.mxu0 %v2631
    %3913 = vmatpush1.bf16.msra.mxu0 %v2630
    %3914 = vmatprep.subr.bf16.mxu0 %v2639
    %3915 = vmatpush1.bf16.msra.mxu0 %v2638
    %3916 = vmatprep.subr.bf16.mxu0 %v2647
    %3917 = vmatpush1.bf16.msra.mxu0 %v2646
    %3918 = vmatprep.subr.bf16.mxu0 %v2655
    %3919 = vmatpush1.bf16.msra.mxu0 %v2654
    %3920 = vmatprep.subr.bf16.mxu0 %v2663
    %3921 = vmatpush1.bf16.msra.mxu0 %v2662
    %3922 = vmatprep.mubr.bf16.mxu0 %v451
    %3923 = vmatmul.mubr.bf16.gmra.mrb[0].mxu0 %v450
    %v3924 = vpop.f32.mrb[0].mxu0
    %v3925 = vadd.f32 %v989, %v3924
    %v3926 = vpop.f32.mrb[0].mxu0
    %v3927 = vadd.f32 %v993, %v3926
    %v3928 = vpop.f32.mrb[0].mxu0
    %v3929 = vpop.f32.mrb[0].mxu0
    %3930 = vdwg.mxu0
    %3931 = vmatprep.subr.bf16.mxu0 %v2671
    %3932 = vmatpush1.bf16.msra.mxu0 %v2670
    %3933 = vmatprep.subr.bf16.mxu0 %v2679
    %3934 = vmatpush1.bf16.msra.mxu0 %v2678
    %3935 = vmatprep.subr.bf16.mxu0 %v2687
    %3936 = vmatpush1.bf16.msra.mxu0 %v2686
    %3937 = vmatprep.subr.bf16.mxu0 %v2695
    %3938 = vmatpush1.bf16.msra.mxu0 %v2694
    %3939 = vmatprep.subr.bf16.mxu0 %v2703
    %3940 = vmatpush1.bf16.msra.mxu0 %v2702
    %3941 = vmatprep.subr.bf16.mxu0 %v2711
    %3942 = vmatpush1.bf16.msra.mxu0 %v2710
    %3943 = vmatprep.subr.bf16.mxu0 %v2719
    %3944 = vmatpush1.bf16.msra.mxu0 %v2718
    %3945 = vmatprep.subr.bf16.mxu0 %v2727
    %3946 = vmatpush1.bf16.msra.mxu0 %v2726
    %3947 = vmatprep.subr.bf16.mxu0 %v2735
    %3948 = vmatpush1.bf16.msra.mxu0 %v2734
    %3949 = vmatprep.subr.bf16.mxu0 %v2743
    %3950 = vmatpush1.bf16.msra.mxu0 %v2742
    %3951 = vmatprep.subr.bf16.mxu0 %v2751
    %3952 = vmatpush1.bf16.msra.mxu0 %v2750
    %3953 = vmatprep.subr.bf16.mxu0 %v2759
    %3954 = vmatpush1.bf16.msra.mxu0 %v2758
    %3955 = vmatprep.subr.bf16.mxu0 %v2767
    %3956 = vmatpush1.bf16.msra.mxu0 %v2766
    %3957 = vmatprep.subr.bf16.mxu0 %v2775
    %3958 = vmatpush1.bf16.msra.mxu0 %v2774
    %3959 = vmatprep.subr.bf16.mxu0 %v2783
    %3960 = vmatpush1.bf16.msra.mxu0 %v2782
    %3961 = vmatprep.subr.bf16.mxu0 %v2791
    %3962 = vmatpush1.bf16.msra.mxu0 %v2790
    %3963 = vmatprep.mubr.bf16.mxu0 %v453
    %3964 = vmatmul.mubr.bf16.gmra.mrb[0].mxu0 %v452
    %v3965 = vpop.f32.mrb[0].mxu0
    %v3966 = vadd.f32 %v3925, %v3965
    %v3967 = vpop.f32.mrb[0].mxu0
    %v3968 = vadd.f32 %v3927, %v3967
    %v3969 = vpop.f32.mrb[0].mxu0
    %v3970 = vpop.f32.mrb[0].mxu0
    %3971 = vdwg.mxu0
    %3972 = vmatprep.subr.bf16.mxu0 %v2799
    %3973 = vmatpush1.bf16.msra.mxu0 %v2798
    %3974 = vmatprep.subr.bf16.mxu0 %v2807
    %3975 = vmatpush1.bf16.msra.mxu0 %v2806
    %3976 = vmatprep.subr.bf16.mxu0 %v2815
    %3977 = vmatpush1.bf16.msra.mxu0 %v2814
    %3978 = vmatprep.subr.bf16.mxu0 %v2823
    %3979 = vmatpush1.bf16.msra.mxu0 %v2822
    %3980 = vmatprep.subr.bf16.mxu0 %v2831
    %3981 = vmatpush1.bf16.msra.mxu0 %v2830
    %3982 = vmatprep.subr.bf16.mxu0 %v2839
    %3983 = vmatpush1.bf16.msra.mxu0 %v2838
    %3984 = vmatprep.subr.bf16.mxu0 %v2847
    %3985 = vmatpush1.bf16.msra.mxu0 %v2846
    %3986 = vmatprep.subr.bf16.mxu0 %v2855
    %3987 = vmatpush1.bf16.msra.mxu0 %v2854
    %3988 = vmatprep.subr.bf16.mxu0 %v2863
    %3989 = vmatpush1.bf16.msra.mxu0 %v2862
    %3990 = vmatprep.subr.bf16.mxu0 %v2871
    %3991 = vmatpush1.bf16.msra.mxu0 %v2870
    %3992 = vmatprep.subr.bf16.mxu0 %v2879
    %3993 = vmatpush1.bf16.msra.mxu0 %v2878
    %3994 = vmatprep.subr.bf16.mxu0 %v2887
    %3995 = vmatpush1.bf16.msra.mxu0 %v2886
    %3996 = vmatprep.subr.bf16.mxu0 %v2895
    %3997 = vmatpush1.bf16.msra.mxu0 %v2894
    %3998 = vmatprep.subr.bf16.mxu0 %v2903
    %3999 = vmatpush1.bf16.msra.mxu0 %v2902
    %4000 = vmatprep.subr.bf16.mxu0 %v2911
    %4001 = vmatpush1.bf16.msra.mxu0 %v2910
    %4002 = vmatprep.subr.bf16.mxu0 %v2919
    %4003 = vmatpush1.bf16.msra.mxu0 %v2918
    %4004 = vmatprep.mubr.bf16.mxu0 %v455
    %4005 = vmatmul.mubr.bf16.gmra.mrb[0].mxu0 %v454
    %v4006 = vpop.f32.mrb[0].mxu0
    %v4007 = vadd.f32 %v3966, %v4006
    %v4008 = vpop.f32.mrb[0].mxu0
    %v4009 = vadd.f32 %v3968, %v4008
    %v4010 = vpop.f32.mrb[0].mxu0
    %v4011 = vpop.f32.mrb[0].mxu0
    %4012 = vdwg.mxu0
    %4013 = vmatprep.subr.bf16.mxu0 %v2927
    %4014 = vmatpush1.bf16.msra.mxu0 %v2926
    %4015 = vmatprep.subr.bf16.mxu0 %v2935
    %4016 = vmatpush1.bf16.msra.mxu0 %v2934
    %4017 = vmatprep.subr.bf16.mxu0 %v2943
    %4018 = vmatpush1.bf16.msra.mxu0 %v2942
    %4019 = vmatprep.subr.bf16.mxu0 %v2951
    %4020 = vmatpush1.bf16.msra.mxu0 %v2950
    %4021 = vmatprep.subr.bf16.mxu0 %v2959
    %4022 = vmatpush1.bf16.msra.mxu0 %v2958
    %4023 = vmatprep.subr.bf16.mxu0 %v2967
    %4024 = vmatpush1.bf16.msra.mxu0 %v2966
    %4025 = vmatprep.subr.bf16.mxu0 %v2975
    %4026 = vmatpush1.bf16.msra.mxu0 %v2974
    %4027 = vmatprep.subr.bf16.mxu0 %v2983
    %4028 = vmatpush1.bf16.msra.mxu0 %v2982
    %4029 = vmatprep.subr.bf16.mxu0 %v2991
    %4030 = vmatpush1.bf16.msra.mxu0 %v2990
    %4031 = vmatprep.subr.bf16.mxu0 %v2999
    %4032 = vmatpush1.bf16.msra.mxu0 %v2998
    %4033 = vmatprep.subr.bf16.mxu0 %v3007
    %4034 = vmatpush1.bf16.msra.mxu0 %v3006
    %4035 = vmatprep.subr.bf16.mxu0 %v3015
    %4036 = vmatpush1.bf16.msra.mxu0 %v3014
    %4037 = vmatprep.subr.bf16.mxu0 %v3023
    %4038 = vmatpush1.bf16.msra.mxu0 %v3022
    %4039 = vmatprep.subr.bf16.mxu0 %v3031
    %4040 = vmatpush1.bf16.msra.mxu0 %v3030
    %4041 = vmatprep.subr.bf16.mxu0 %v3039
    %4042 = vmatpush1.bf16.msra.mxu0 %v3038
    %4043 = vmatprep.subr.bf16.mxu0 %v3047
    %4044 = vmatpush1.bf16.msra.mxu0 %v3046
    %4045 = vmatprep.mubr.bf16.mxu0 %v457
    %4046 = vmatmul.mubr.bf16.gmra.mrb[0].mxu0 %v456
    %v4047 = vpop.f32.mrb[0].mxu0
    %v4048 = vadd.f32 %v4007, %v4047
    %v4049 = vpop.f32.mrb[0].mxu0
    %v4050 = vadd.f32 %v4009, %v4049
    %v4051 = vpop.f32.mrb[0].mxu0
    %v4052 = vpop.f32.mrb[0].mxu0
    %4053 = vdwg.mxu0
    %4054 = vmatprep.subr.bf16.mxu0 %v2545
    %4055 = vmatpush1.bf16.msra.mxu0 %v2544
    %4056 = vmatprep.subr.bf16.mxu0 %v2553
    %4057 = vmatpush1.bf16.msra.mxu0 %v2552
    %4058 = vmatprep.subr.bf16.mxu0 %v2561
    %4059 = vmatpush1.bf16.msra.mxu0 %v2560
    %4060 = vmatprep.subr.bf16.mxu0 %v2569
    %4061 = vmatpush1.bf16.msra.mxu0 %v2568
    %4062 = vmatprep.subr.bf16.mxu0 %v2577
    %4063 = vmatpush1.bf16.msra.mxu0 %v2576
    %4064 = vmatprep.subr.bf16.mxu0 %v2585
    %4065 = vmatpush1.bf16.msra.mxu0 %v2584
    %4066 = vmatprep.subr.bf16.mxu0 %v2593
    %4067 = vmatpush1.bf16.msra.mxu0 %v2592
    %4068 = vmatprep.subr.bf16.mxu0 %v2601
    %4069 = vmatpush1.bf16.msra.mxu0 %v2600
    %4070 = vmatprep.subr.bf16.mxu0 %v2609
    %4071 = vmatpush1.bf16.msra.mxu0 %v2608
    %4072 = vmatprep.subr.bf16.mxu0 %v2617
    %4073 = vmatpush1.bf16.msra.mxu0 %v2616
    %4074 = vmatprep.subr.bf16.mxu0 %v2625
    %4075 = vmatpush1.bf16.msra.mxu0 %v2624
    %4076 = vmatprep.subr.bf16.mxu0 %v2633
    %4077 = vmatpush1.bf16.msra.mxu0 %v2632
    %4078 = vmatprep.subr.bf16.mxu0 %v2641
    %4079 = vmatpush1.bf16.msra.mxu0 %v2640
    %4080 = vmatprep.subr.bf16.mxu0 %v2649
    %4081 = vmatpush1.bf16.msra.mxu0 %v2648
    %4082 = vmatprep.subr.bf16.mxu0 %v2657
    %4083 = vmatpush1.bf16.msra.mxu0 %v2656
    %4084 = vmatprep.subr.bf16.mxu0 %v2665
    %4085 = vmatpush1.bf16.msra.mxu0 %v2664
    %4086 = vmatprep.mubr.bf16.mxu0 %v451
    %4087 = vmatmul.mubr.bf16.gmra.mrb[0].mxu0 %v450
    %v4088 = vpop.f32.mrb[0].mxu0
    %v4089 = vadd.f32 %v997, %v4088
    %v4090 = vpop.f32.mrb[0].mxu0
    %v4091 = vadd.f32 %v1001, %v4090
    %v4092 = vpop.f32.mrb[0].mxu0
    %v4093 = vpop.f32.mrb[0].mxu0
    %4094 = vdwg.mxu0
    %4095 = vmatprep.subr.bf16.mxu0 %v2673
    %4096 = vmatpush1.bf16.msra.mxu0 %v2672
    %4097 = vmatprep.subr.bf16.mxu0 %v2681
    %4098 = vmatpush1.bf16.msra.mxu0 %v2680
    %4099 = vmatprep.subr.bf16.mxu0 %v2689
    %4100 = vmatpush1.bf16.msra.mxu0 %v2688
    %4101 = vmatprep.subr.bf16.mxu0 %v2697
    %4102 = vmatpush1.bf16.msra.mxu0 %v2696
    %4103 = vmatprep.subr.bf16.mxu0 %v2705
    %4104 = vmatpush1.bf16.msra.mxu0 %v2704
    %4105 = vmatprep.subr.bf16.mxu0 %v2713
    %4106 = vmatpush1.bf16.msra.mxu0 %v2712
    %4107 = vmatprep.subr.bf16.mxu0 %v2721
    %4108 = vmatpush1.bf16.msra.mxu0 %v2720
    %4109 = vmatprep.subr.bf16.mxu0 %v2729
    %4110 = vmatpush1.bf16.msra.mxu0 %v2728
    %4111 = vmatprep.subr.bf16.mxu0 %v2737
    %4112 = vmatpush1.bf16.msra.mxu0 %v2736
    %4113 = vmatprep.subr.bf16.mxu0 %v2745
    %4114 = vmatpush1.bf16.msra.mxu0 %v2744
    %4115 = vmatprep.subr.bf16.mxu0 %v2753
    %4116 = vmatpush1.bf16.msra.mxu0 %v2752
    %4117 = vmatprep.subr.bf16.mxu0 %v2761
    %4118 = vmatpush1.bf16.msra.mxu0 %v2760
    %4119 = vmatprep.subr.bf16.mxu0 %v2769
    %4120 = vmatpush1.bf16.msra.mxu0 %v2768
    %4121 = vmatprep.subr.bf16.mxu0 %v2777
    %4122 = vmatpush1.bf16.msra.mxu0 %v2776
    %4123 = vmatprep.subr.bf16.mxu0 %v2785
    %4124 = vmatpush1.bf16.msra.mxu0 %v2784
    %4125 = vmatprep.subr.bf16.mxu0 %v2793
    %4126 = vmatpush1.bf16.msra.mxu0 %v2792
    %4127 = vmatprep.mubr.bf16.mxu0 %v453
    %4128 = vmatmul.mubr.bf16.gmra.mrb[0].mxu0 %v452
    %v4129 = vpop.f32.mrb[0].mxu0
    %v4130 = vadd.f32 %v4089, %v4129
    %v4131 = vpop.f32.mrb[0].mxu0
    %v4132 = vadd.f32 %v4091, %v4131
    %v4133 = vpop.f32.mrb[0].mxu0
    %v4134 = vpop.f32.mrb[0].mxu0
    %4135 = vdwg.mxu0
    %4136 = vmatprep.subr.bf16.mxu0 %v2801
    %4137 = vmatpush1.bf16.msra.mxu0 %v2800
    %4138 = vmatprep.subr.bf16.mxu0 %v2809
    %4139 = vmatpush1.bf16.msra.mxu0 %v2808
    %4140 = vmatprep.subr.bf16.mxu0 %v2817
    %4141 = vmatpush1.bf16.msra.mxu0 %v2816
    %4142 = vmatprep.subr.bf16.mxu0 %v2825
    %4143 = vmatpush1.bf16.msra.mxu0 %v2824
    %4144 = vmatprep.subr.bf16.mxu0 %v2833
    %4145 = vmatpush1.bf16.msra.mxu0 %v2832
    %4146 = vmatprep.subr.bf16.mxu0 %v2841
    %4147 = vmatpush1.bf16.msra.mxu0 %v2840
    %4148 = vmatprep.subr.bf16.mxu0 %v2849
    %4149 = vmatpush1.bf16.msra.mxu0 %v2848
    %4150 = vmatprep.subr.bf16.mxu0 %v2857
    %4151 = vmatpush1.bf16.msra.mxu0 %v2856
    %4152 = vmatprep.subr.bf16.mxu0 %v2865
    %4153 = vmatpush1.bf16.msra.mxu0 %v2864
    %4154 = vmatprep.subr.bf16.mxu0 %v2873
    %4155 = vmatpush1.bf16.msra.mxu0 %v2872
    %4156 = vmatprep.subr.bf16.mxu0 %v2881
    %4157 = vmatpush1.bf16.msra.mxu0 %v2880
    %4158 = vmatprep.subr.bf16.mxu0 %v2889
    %4159 = vmatpush1.bf16.msra.mxu0 %v2888
    %4160 = vmatprep.subr.bf16.mxu0 %v2897
    %4161 = vmatpush1.bf16.msra.mxu0 %v2896
    %4162 = vmatprep.subr.bf16.mxu0 %v2905
    %4163 = vmatpush1.bf16.msra.mxu0 %v2904
    %4164 = vmatprep.subr.bf16.mxu0 %v2913
    %4165 = vmatpush1.bf16.msra.mxu0 %v2912
    %4166 = vmatprep.subr.bf16.mxu0 %v2921
    %4167 = vmatpush1.bf16.msra.mxu0 %v2920
    %4168 = vmatprep.mubr.bf16.mxu0 %v455
    %4169 = vmatmul.mubr.bf16.gmra.mrb[0].mxu0 %v454
    %v4170 = vpop.f32.mrb[0].mxu0
    %v4171 = vadd.f32 %v4130, %v4170
    %v4172 = vpop.f32.mrb[0].mxu0
    %v4173 = vadd.f32 %v4132, %v4172
    %v4174 = vpop.f32.mrb[0].mxu0
    %v4175 = vpop.f32.mrb[0].mxu0
    %4176 = vdwg.mxu0
    %4177 = vmatprep.subr.bf16.mxu0 %v2929
    %4178 = vmatpush1.bf16.msra.mxu0 %v2928
    %4179 = vmatprep.subr.bf16.mxu0 %v2937
    %4180 = vmatpush1.bf16.msra.mxu0 %v2936
    %4181 = vmatprep.subr.bf16.mxu0 %v2945
    %4182 = vmatpush1.bf16.msra.mxu0 %v2944
    %4183 = vmatprep.subr.bf16.mxu0 %v2953
    %4184 = vmatpush1.bf16.msra.mxu0 %v2952
    %4185 = vmatprep.subr.bf16.mxu0 %v2961
    %4186 = vmatpush1.bf16.msra.mxu0 %v2960
    %4187 = vmatprep.subr.bf16.mxu0 %v2969
    %4188 = vmatpush1.bf16.msra.mxu0 %v2968
    %4189 = vmatprep.subr.bf16.mxu0 %v2977
    %4190 = vmatpush1.bf16.msra.mxu0 %v2976
    %4191 = vmatprep.subr.bf16.mxu0 %v2985
    %4192 = vmatpush1.bf16.msra.mxu0 %v2984
    %4193 = vmatprep.subr.bf16.mxu0 %v2993
    %4194 = vmatpush1.bf16.msra.mxu0 %v2992
    %4195 = vmatprep.subr.bf16.mxu0 %v3001
    %4196 = vmatpush1.bf16.msra.mxu0 %v3000
    %4197 = vmatprep.subr.bf16.mxu0 %v3009
    %4198 = vmatpush1.bf16.msra.mxu0 %v3008
    %4199 = vmatprep.subr.bf16.mxu0 %v3017
    %4200 = vmatpush1.bf16.msra.mxu0 %v3016
    %4201 = vmatprep.subr.bf16.mxu0 %v3025
    %4202 = vmatpush1.bf16.msra.mxu0 %v3024
    %4203 = vmatprep.subr.bf16.mxu0 %v3033
    %4204 = vmatpush1.bf16.msra.mxu0 %v3032
    %4205 = vmatprep.subr.bf16.mxu0 %v3041
    %4206 = vmatpush1.bf16.msra.mxu0 %v3040
    %4207 = vmatprep.subr.bf16.mxu0 %v3049
    %4208 = vmatpush1.bf16.msra.mxu0 %v3048
    %4209 = vmatprep.mubr.bf16.mxu0 %v457
    %4210 = vmatmul.mubr.bf16.gmra.mrb[0].mxu0 %v456
    %v4211 = vpop.f32.mrb[0].mxu0
    %v4212 = vadd.f32 %v4171, %v4211
    %v4213 = vpop.f32.mrb[0].mxu0
    %v4214 = vadd.f32 %v4173, %v4213
    %v4215 = vpop.f32.mrb[0].mxu0
    %v4216 = vpop.f32.mrb[0].mxu0
    %4217 = vdwg.mxu0
    %v4218 = vmax.f32 %v3720, 0.0
    %v4219 = vmax.f32 %v3722, 0.0
    %v4220 = vmax.f32 %v3884, 0.0
    %v4221 = vmax.f32 %v3886, 0.0
    %v4222 = vmax.f32 %v4048, 0.0
    %v4223 = vmax.f32 %v4050, 0.0
    %v4224 = vmax.f32 %v4212, 0.0
    %v4225 = vmax.f32 %v4214, 0.0
    %v4226 = vpack.c.bf16 %v4218, %v4218
    %v4227 = vpack.c.bf16 %v4219, %v4219
    %v4228 = vpack.c.bf16 %v4220, %v4220
    %v4229 = vpack.c.bf16 %v4221, %v4221
    %v4230 = vpack.c.bf16 %v4222, %v4222
    %v4231 = vpack.c.bf16 %v4223, %v4223
    %v4232 = vpack.c.bf16 %v4224, %v4224
    %v4233 = vpack.c.bf16 %v4225, %v4225
    %v4234 = vld [vmem:[#allocation8] sm:$0xff]
    %v4235 = vld [vmem:[#allocation8 + $0x8] sm:$0xff]
    %v4236 = vld [vmem:[#allocation8 + $0x10] sm:$0xff]
    %v4237 = vld [vmem:[#allocation8 + $0x18] sm:$0xff]
    %v4238 = vld [vmem:[#allocation8 + $0x20] sm:$0xff]
    %v4239 = vld [vmem:[#allocation8 + $0x28] sm:$0xff]
    %v4240 = vld [vmem:[#allocation8 + $0x30] sm:$0xff]
    %v4241 = vld [vmem:[#allocation8 + $0x38] sm:$0xff]
    %v4242 = vld [vmem:[#allocation8 + $0x40] sm:$0xff]
    %v4243 = vld [vmem:[#allocation8 + $0x48] sm:$0xff]
    %v4244 = vld [vmem:[#allocation8 + $0x50] sm:$0xff]
    %v4245 = vld [vmem:[#allocation8 + $0x58] sm:$0xff]
    %v4246 = vld [vmem:[#allocation8 + $0x60] sm:$0xff]
    %v4247 = vld [vmem:[#allocation8 + $0x68] sm:$0xff]
    %v4248 = vld [vmem:[#allocation8 + $0x70] sm:$0xff]
    %v4249 = vld [vmem:[#allocation8 + $0x78] sm:$0xff]
    %v4250 = vld [vmem:[#allocation8 + $0x80] sm:$0xff]
    %v4251 = vld [vmem:[#allocation8 + $0x88] sm:$0xff]
    %v4252 = vld [vmem:[#allocation8 + $0x90] sm:$0xff]
    %v4253 = vld [vmem:[#allocation8 + $0x98] sm:$0xff]
    %v4254 = vld [vmem:[#allocation8 + $0xa0] sm:$0xff]
    %v4255 = vld [vmem:[#allocation8 + $0xa8] sm:$0xff]
    %v4256 = vld [vmem:[#allocation8 + $0xb0] sm:$0xff]
    %v4257 = vld [vmem:[#allocation8 + $0xb8] sm:$0xff]
    %v4258 = vld [vmem:[#allocation8 + $0xc0] sm:$0xff]
    %v4259 = vld [vmem:[#allocation8 + $0xc8] sm:$0xff]
    %v4260 = vld [vmem:[#allocation8 + $0xd0] sm:$0xff]
    %v4261 = vld [vmem:[#allocation8 + $0xd8] sm:$0xff]
    %v4262 = vld [vmem:[#allocation8 + $0xe0] sm:$0xff]
    %v4263 = vld [vmem:[#allocation8 + $0xe8] sm:$0xff]
    %v4264 = vld [vmem:[#allocation8 + $0xf0] sm:$0xff]
    %v4265 = vld [vmem:[#allocation8 + $0xf8] sm:$0xff]
    %v4266 = vld [vmem:[#allocation8 + $0x100] sm:$0xff]
    %v4267 = vld [vmem:[#allocation8 + $0x108] sm:$0xff]
    %v4268 = vld [vmem:[#allocation8 + $0x110] sm:$0xff]
    %v4269 = vld [vmem:[#allocation8 + $0x118] sm:$0xff]
    %v4270 = vld [vmem:[#allocation8 + $0x120] sm:$0xff]
    %v4271 = vld [vmem:[#allocation8 + $0x128] sm:$0xff]
    %v4272 = vld [vmem:[#allocation8 + $0x130] sm:$0xff]
    %v4273 = vld [vmem:[#allocation8 + $0x138] sm:$0xff]
    %v4274 = vld [vmem:[#allocation8 + $0x140] sm:$0xff]
    %v4275 = vld [vmem:[#allocation8 + $0x148] sm:$0xff]
    %v4276 = vld [vmem:[#allocation8 + $0x150] sm:$0xff]
    %v4277 = vld [vmem:[#allocation8 + $0x158] sm:$0xff]
    %v4278 = vld [vmem:[#allocation8 + $0x160] sm:$0xff]
    %v4279 = vld [vmem:[#allocation8 + $0x168] sm:$0xff]
    %v4280 = vld [vmem:[#allocation8 + $0x170] sm:$0xff]
    %v4281 = vld [vmem:[#allocation8 + $0x178] sm:$0xff]
    %v4282 = vld [vmem:[#allocation8 + $0x180] sm:$0xff]
    %v4283 = vld [vmem:[#allocation8 + $0x188] sm:$0xff]
    %v4284 = vld [vmem:[#allocation8 + $0x190] sm:$0xff]
    %v4285 = vld [vmem:[#allocation8 + $0x198] sm:$0xff]
    %v4286 = vld [vmem:[#allocation8 + $0x1a0] sm:$0xff]
    %v4287 = vld [vmem:[#allocation8 + $0x1a8] sm:$0xff]
    %v4288 = vld [vmem:[#allocation8 + $0x1b0] sm:$0xff]
    %v4289 = vld [vmem:[#allocation8 + $0x1b8] sm:$0xff]
    %v4290 = vld [vmem:[#allocation8 + $0x1c0] sm:$0xff]
    %v4291 = vld [vmem:[#allocation8 + $0x1c8] sm:$0xff]
    %v4292 = vld [vmem:[#allocation8 + $0x1d0] sm:$0xff]
    %v4293 = vld [vmem:[#allocation8 + $0x1d8] sm:$0xff]
    %v4294 = vld [vmem:[#allocation8 + $0x1e0] sm:$0xff]
    %v4295 = vld [vmem:[#allocation8 + $0x1e8] sm:$0xff]
    %v4296 = vld [vmem:[#allocation8 + $0x1f0] sm:$0xff]
    %v4297 = vld [vmem:[#allocation8 + $0x1f8] sm:$0xff]
    %v4298 = vld [vmem:[#allocation8 + $0x200] sm:$0xff]
    %v4299 = vld [vmem:[#allocation8 + $0x208] sm:$0xff]
    %v4300 = vld [vmem:[#allocation8 + $0x210] sm:$0xff]
    %v4301 = vld [vmem:[#allocation8 + $0x218] sm:$0xff]
    %v4302 = vld [vmem:[#allocation8 + $0x220] sm:$0xff]
    %v4303 = vld [vmem:[#allocation8 + $0x228] sm:$0xff]
    %v4304 = vld [vmem:[#allocation8 + $0x230] sm:$0xff]
    %v4305 = vld [vmem:[#allocation8 + $0x238] sm:$0xff]
    %v4306 = vld [vmem:[#allocation8 + $0x240] sm:$0xff]
    %v4307 = vld [vmem:[#allocation8 + $0x248] sm:$0xff]
    %v4308 = vld [vmem:[#allocation8 + $0x250] sm:$0xff]
    %v4309 = vld [vmem:[#allocation8 + $0x258] sm:$0xff]
    %v4310 = vld [vmem:[#allocation8 + $0x260] sm:$0xff]
    %v4311 = vld [vmem:[#allocation8 + $0x268] sm:$0xff]
    %v4312 = vld [vmem:[#allocation8 + $0x270] sm:$0xff]
    %v4313 = vld [vmem:[#allocation8 + $0x278] sm:$0xff]
    %v4314 = vld [vmem:[#allocation8 + $0x280] sm:$0xff]
    %v4315 = vld [vmem:[#allocation8 + $0x288] sm:$0xff]
    %v4316 = vld [vmem:[#allocation8 + $0x290] sm:$0xff]
    %v4317 = vld [vmem:[#allocation8 + $0x298] sm:$0xff]
    %v4318 = vld [vmem:[#allocation8 + $0x2a0] sm:$0xff]
    %v4319 = vld [vmem:[#allocation8 + $0x2a8] sm:$0xff]
    %v4320 = vld [vmem:[#allocation8 + $0x2b0] sm:$0xff]
    %v4321 = vld [vmem:[#allocation8 + $0x2b8] sm:$0xff]
    %v4322 = vld [vmem:[#allocation8 + $0x2c0] sm:$0xff]
    %v4323 = vld [vmem:[#allocation8 + $0x2c8] sm:$0xff]
    %v4324 = vld [vmem:[#allocation8 + $0x2d0] sm:$0xff]
    %v4325 = vld [vmem:[#allocation8 + $0x2d8] sm:$0xff]
    %v4326 = vld [vmem:[#allocation8 + $0x2e0] sm:$0xff]
    %v4327 = vld [vmem:[#allocation8 + $0x2e8] sm:$0xff]
    %v4328 = vld [vmem:[#allocation8 + $0x2f0] sm:$0xff]
    %v4329 = vld [vmem:[#allocation8 + $0x2f8] sm:$0xff]
    %v4330 = vld [vmem:[#allocation8 + $0x300] sm:$0xff]
    %v4331 = vld [vmem:[#allocation8 + $0x308] sm:$0xff]
    %v4332 = vld [vmem:[#allocation8 + $0x310] sm:$0xff]
    %v4333 = vld [vmem:[#allocation8 + $0x318] sm:$0xff]
    %v4334 = vld [vmem:[#allocation8 + $0x320] sm:$0xff]
    %v4335 = vld [vmem:[#allocation8 + $0x328] sm:$0xff]
    %v4336 = vld [vmem:[#allocation8 + $0x330] sm:$0xff]
    %v4337 = vld [vmem:[#allocation8 + $0x338] sm:$0xff]
    %v4338 = vld [vmem:[#allocation8 + $0x340] sm:$0xff]
    %v4339 = vld [vmem:[#allocation8 + $0x348] sm:$0xff]
    %v4340 = vld [vmem:[#allocation8 + $0x350] sm:$0xff]
    %v4341 = vld [vmem:[#allocation8 + $0x358] sm:$0xff]
    %v4342 = vld [vmem:[#allocation8 + $0x360] sm:$0xff]
    %v4343 = vld [vmem:[#allocation8 + $0x368] sm:$0xff]
    %v4344 = vld [vmem:[#allocation8 + $0x370] sm:$0xff]
    %v4345 = vld [vmem:[#allocation8 + $0x378] sm:$0xff]
    %v4346 = vld [vmem:[#allocation8 + $0x380] sm:$0xff]
    %v4347 = vld [vmem:[#allocation8 + $0x388] sm:$0xff]
    %v4348 = vld [vmem:[#allocation8 + $0x390] sm:$0xff]
    %v4349 = vld [vmem:[#allocation8 + $0x398] sm:$0xff]
    %v4350 = vld [vmem:[#allocation8 + $0x3a0] sm:$0xff]
    %v4351 = vld [vmem:[#allocation8 + $0x3a8] sm:$0xff]
    %v4352 = vld [vmem:[#allocation8 + $0x3b0] sm:$0xff]
    %v4353 = vld [vmem:[#allocation8 + $0x3b8] sm:$0xff]
    %v4354 = vld [vmem:[#allocation8 + $0x3c0] sm:$0xff]
    %v4355 = vld [vmem:[#allocation8 + $0x3c8] sm:$0xff]
    %v4356 = vld [vmem:[#allocation8 + $0x3d0] sm:$0xff]
    %v4357 = vld [vmem:[#allocation8 + $0x3d8] sm:$0xff]
    %v4358 = vld [vmem:[#allocation8 + $0x3e0] sm:$0xff]
    %v4359 = vld [vmem:[#allocation8 + $0x3e8] sm:$0xff]
    %v4360 = vld [vmem:[#allocation8 + $0x3f0] sm:$0xff]
    %v4361 = vld [vmem:[#allocation8 + $0x3f8] sm:$0xff]
    %v4362 = vld [vmem:[#allocation8 + $0x400] sm:$0xff]
    %v4363 = vld [vmem:[#allocation8 + $0x408] sm:$0xff]
    %v4364 = vld [vmem:[#allocation8 + $0x410] sm:$0xff]
    %v4365 = vld [vmem:[#allocation8 + $0x418] sm:$0xff]
    %v4366 = vld [vmem:[#allocation8 + $0x420] sm:$0xff]
    %v4367 = vld [vmem:[#allocation8 + $0x428] sm:$0xff]
    %v4368 = vld [vmem:[#allocation8 + $0x430] sm:$0xff]
    %v4369 = vld [vmem:[#allocation8 + $0x438] sm:$0xff]
    %v4370 = vld [vmem:[#allocation8 + $0x440] sm:$0xff]
    %v4371 = vld [vmem:[#allocation8 + $0x448] sm:$0xff]
    %v4372 = vld [vmem:[#allocation8 + $0x450] sm:$0xff]
    %v4373 = vld [vmem:[#allocation8 + $0x458] sm:$0xff]
    %v4374 = vld [vmem:[#allocation8 + $0x460] sm:$0xff]
    %v4375 = vld [vmem:[#allocation8 + $0x468] sm:$0xff]
    %v4376 = vld [vmem:[#allocation8 + $0x470] sm:$0xff]
    %v4377 = vld [vmem:[#allocation8 + $0x478] sm:$0xff]
    %v4378 = vld [vmem:[#allocation8 + $0x480] sm:$0xff]
    %v4379 = vld [vmem:[#allocation8 + $0x488] sm:$0xff]
    %v4380 = vld [vmem:[#allocation8 + $0x490] sm:$0xff]
    %v4381 = vld [vmem:[#allocation8 + $0x498] sm:$0xff]
    %v4382 = vld [vmem:[#allocation8 + $0x4a0] sm:$0xff]
    %v4383 = vld [vmem:[#allocation8 + $0x4a8] sm:$0xff]
    %v4384 = vld [vmem:[#allocation8 + $0x4b0] sm:$0xff]
    %v4385 = vld [vmem:[#allocation8 + $0x4b8] sm:$0xff]
    %v4386 = vld [vmem:[#allocation8 + $0x4c0] sm:$0xff]
    %v4387 = vld [vmem:[#allocation8 + $0x4c8] sm:$0xff]
    %v4388 = vld [vmem:[#allocation8 + $0x4d0] sm:$0xff]
    %v4389 = vld [vmem:[#allocation8 + $0x4d8] sm:$0xff]
    %v4390 = vld [vmem:[#allocation8 + $0x4e0] sm:$0xff]
    %v4391 = vld [vmem:[#allocation8 + $0x4e8] sm:$0xff]
    %v4392 = vld [vmem:[#allocation8 + $0x4f0] sm:$0xff]
    %v4393 = vld [vmem:[#allocation8 + $0x4f8] sm:$0xff]
    %v4394 = vld [vmem:[#allocation8 + $0x500] sm:$0xff]
    %v4395 = vld [vmem:[#allocation8 + $0x508] sm:$0xff]
    %v4396 = vld [vmem:[#allocation8 + $0x510] sm:$0xff]
    %v4397 = vld [vmem:[#allocation8 + $0x518] sm:$0xff]
    %v4398 = vld [vmem:[#allocation8 + $0x520] sm:$0xff]
    %v4399 = vld [vmem:[#allocation8 + $0x528] sm:$0xff]
    %v4400 = vld [vmem:[#allocation8 + $0x530] sm:$0xff]
    %v4401 = vld [vmem:[#allocation8 + $0x538] sm:$0xff]
    %v4402 = vld [vmem:[#allocation8 + $0x540] sm:$0xff]
    %v4403 = vld [vmem:[#allocation8 + $0x548] sm:$0xff]
    %v4404 = vld [vmem:[#allocation8 + $0x550] sm:$0xff]
    %v4405 = vld [vmem:[#allocation8 + $0x558] sm:$0xff]
    %v4406 = vld [vmem:[#allocation8 + $0x560] sm:$0xff]
    %v4407 = vld [vmem:[#allocation8 + $0x568] sm:$0xff]
    %v4408 = vld [vmem:[#allocation8 + $0x570] sm:$0xff]
    %v4409 = vld [vmem:[#allocation8 + $0x578] sm:$0xff]
    %v4410 = vld [vmem:[#allocation8 + $0x580] sm:$0xff]
    %v4411 = vld [vmem:[#allocation8 + $0x588] sm:$0xff]
    %v4412 = vld [vmem:[#allocation8 + $0x590] sm:$0xff]
    %v4413 = vld [vmem:[#allocation8 + $0x598] sm:$0xff]
    %v4414 = vld [vmem:[#allocation8 + $0x5a0] sm:$0xff]
    %v4415 = vld [vmem:[#allocation8 + $0x5a8] sm:$0xff]
    %v4416 = vld [vmem:[#allocation8 + $0x5b0] sm:$0xff]
    %v4417 = vld [vmem:[#allocation8 + $0x5b8] sm:$0xff]
    %v4418 = vld [vmem:[#allocation8 + $0x5c0] sm:$0xff]
    %v4419 = vld [vmem:[#allocation8 + $0x5c8] sm:$0xff]
    %v4420 = vld [vmem:[#allocation8 + $0x5d0] sm:$0xff]
    %v4421 = vld [vmem:[#allocation8 + $0x5d8] sm:$0xff]
    %v4422 = vld [vmem:[#allocation8 + $0x5e0] sm:$0xff]
    %v4423 = vld [vmem:[#allocation8 + $0x5e8] sm:$0xff]
    %v4424 = vld [vmem:[#allocation8 + $0x5f0] sm:$0xff]
    %v4425 = vld [vmem:[#allocation8 + $0x5f8] sm:$0xff]
    %v4426 = vld [vmem:[#allocation8 + $0x600] sm:$0xff]
    %v4427 = vld [vmem:[#allocation8 + $0x608] sm:$0xff]
    %v4428 = vld [vmem:[#allocation8 + $0x610] sm:$0xff]
    %v4429 = vld [vmem:[#allocation8 + $0x618] sm:$0xff]
    %v4430 = vld [vmem:[#allocation8 + $0x620] sm:$0xff]
    %v4431 = vld [vmem:[#allocation8 + $0x628] sm:$0xff]
    %v4432 = vld [vmem:[#allocation8 + $0x630] sm:$0xff]
    %v4433 = vld [vmem:[#allocation8 + $0x638] sm:$0xff]
    %v4434 = vld [vmem:[#allocation8 + $0x640] sm:$0xff]
    %v4435 = vld [vmem:[#allocation8 + $0x648] sm:$0xff]
    %v4436 = vld [vmem:[#allocation8 + $0x650] sm:$0xff]
    %v4437 = vld [vmem:[#allocation8 + $0x658] sm:$0xff]
    %v4438 = vld [vmem:[#allocation8 + $0x660] sm:$0xff]
    %v4439 = vld [vmem:[#allocation8 + $0x668] sm:$0xff]
    %v4440 = vld [vmem:[#allocation8 + $0x670] sm:$0xff]
    %v4441 = vld [vmem:[#allocation8 + $0x678] sm:$0xff]
    %v4442 = vld [vmem:[#allocation8 + $0x680] sm:$0xff]
    %v4443 = vld [vmem:[#allocation8 + $0x688] sm:$0xff]
    %v4444 = vld [vmem:[#allocation8 + $0x690] sm:$0xff]
    %v4445 = vld [vmem:[#allocation8 + $0x698] sm:$0xff]
    %v4446 = vld [vmem:[#allocation8 + $0x6a0] sm:$0xff]
    %v4447 = vld [vmem:[#allocation8 + $0x6a8] sm:$0xff]
    %v4448 = vld [vmem:[#allocation8 + $0x6b0] sm:$0xff]
    %v4449 = vld [vmem:[#allocation8 + $0x6b8] sm:$0xff]
    %v4450 = vld [vmem:[#allocation8 + $0x6c0] sm:$0xff]
    %v4451 = vld [vmem:[#allocation8 + $0x6c8] sm:$0xff]
    %v4452 = vld [vmem:[#allocation8 + $0x6d0] sm:$0xff]
    %v4453 = vld [vmem:[#allocation8 + $0x6d8] sm:$0xff]
    %v4454 = vld [vmem:[#allocation8 + $0x6e0] sm:$0xff]
    %v4455 = vld [vmem:[#allocation8 + $0x6e8] sm:$0xff]
    %v4456 = vld [vmem:[#allocation8 + $0x6f0] sm:$0xff]
    %v4457 = vld [vmem:[#allocation8 + $0x6f8] sm:$0xff]
    %v4458 = vld [vmem:[#allocation8 + $0x700] sm:$0xff]
    %v4459 = vld [vmem:[#allocation8 + $0x708] sm:$0xff]
    %v4460 = vld [vmem:[#allocation8 + $0x710] sm:$0xff]
    %v4461 = vld [vmem:[#allocation8 + $0x718] sm:$0xff]
    %v4462 = vld [vmem:[#allocation8 + $0x720] sm:$0xff]
    %v4463 = vld [vmem:[#allocation8 + $0x728] sm:$0xff]
    %v4464 = vld [vmem:[#allocation8 + $0x730] sm:$0xff]
    %v4465 = vld [vmem:[#allocation8 + $0x738] sm:$0xff]
    %v4466 = vld [vmem:[#allocation8 + $0x740] sm:$0xff]
    %v4467 = vld [vmem:[#allocation8 + $0x748] sm:$0xff]
    %v4468 = vld [vmem:[#allocation8 + $0x750] sm:$0xff]
    %v4469 = vld [vmem:[#allocation8 + $0x758] sm:$0xff]
    %v4470 = vld [vmem:[#allocation8 + $0x760] sm:$0xff]
    %v4471 = vld [vmem:[#allocation8 + $0x768] sm:$0xff]
    %v4472 = vld [vmem:[#allocation8 + $0x770] sm:$0xff]
    %v4473 = vld [vmem:[#allocation8 + $0x778] sm:$0xff]
    %v4474 = vld [vmem:[#allocation8 + $0x780] sm:$0xff]
    %v4475 = vld [vmem:[#allocation8 + $0x788] sm:$0xff]
    %v4476 = vld [vmem:[#allocation8 + $0x790] sm:$0xff]
    %v4477 = vld [vmem:[#allocation8 + $0x798] sm:$0xff]
    %v4478 = vld [vmem:[#allocation8 + $0x7a0] sm:$0xff]
    %v4479 = vld [vmem:[#allocation8 + $0x7a8] sm:$0xff]
    %v4480 = vld [vmem:[#allocation8 + $0x7b0] sm:$0xff]
    %v4481 = vld [vmem:[#allocation8 + $0x7b8] sm:$0xff]
    %v4482 = vld [vmem:[#allocation8 + $0x7c0] sm:$0xff]
    %v4483 = vld [vmem:[#allocation8 + $0x7c8] sm:$0xff]
    %v4484 = vld [vmem:[#allocation8 + $0x7d0] sm:$0xff]
    %v4485 = vld [vmem:[#allocation8 + $0x7d8] sm:$0xff]
    %v4486 = vld [vmem:[#allocation8 + $0x7e0] sm:$0xff]
    %v4487 = vld [vmem:[#allocation8 + $0x7e8] sm:$0xff]
    %v4488 = vld [vmem:[#allocation8 + $0x7f0] sm:$0xff]
    %v4489 = vld [vmem:[#allocation8 + $0x7f8] sm:$0xff]
    %v4490 = vlaneseq
    %v4491 = vshrl.u32 %v4490, 7
    %v4492 = vsub.s32 2, %v4491
    %v4493 = vrot.slane %v137, %v4492
    %v4494 = vlaneseq
    %v4495 = vshrl.u32 %v4494, 7
    %v4496 = vsub.s32 2, %v4495
    %v4497 = vrot.slane %v138, %v4496
    %v4498 = vlaneseq
    %v4499 = vshrl.u32 %v4498, 7
    %v4500 = vsub.s32 2, %v4499
    %v4501 = vrot.slane %v139, %v4500
    %v4502 = vlaneseq
    %v4503 = vshrl.u32 %v4502, 7
    %v4504 = vsub.s32 2, %v4503
    %v4505 = vrot.slane %v140, %v4504
    %v4762 = vunpack.c.l.b16 %v4234
    %v4763 = vunpack.c.h.b16 %v4234
    %v4764 = vunpack.c.l.b16 %v4235
    %v4765 = vunpack.c.h.b16 %v4235
    %v4766 = vunpack.c.l.b16 %v4236
    %v4767 = vunpack.c.h.b16 %v4236
    %v4768 = vunpack.c.l.b16 %v4237
    %v4769 = vunpack.c.h.b16 %v4237
    %v4770 = vunpack.c.l.b16 %v4238
    %v4771 = vunpack.c.h.b16 %v4238
    %v4772 = vunpack.c.l.b16 %v4239
    %v4773 = vunpack.c.h.b16 %v4239
    %v4774 = vunpack.c.l.b16 %v4240
    %v4775 = vunpack.c.h.b16 %v4240
    %v4776 = vunpack.c.l.b16 %v4241
    %v4777 = vunpack.c.h.b16 %v4241
    %v4778 = vunpack.c.l.b16 %v4242
    %v4779 = vunpack.c.h.b16 %v4242
    %v4780 = vunpack.c.l.b16 %v4243
    %v4781 = vunpack.c.h.b16 %v4243
    %v4782 = vunpack.c.l.b16 %v4244
    %v4783 = vunpack.c.h.b16 %v4244
    %v4784 = vunpack.c.l.b16 %v4245
    %v4785 = vunpack.c.h.b16 %v4245
    %v4786 = vunpack.c.l.b16 %v4246
    %v4787 = vunpack.c.h.b16 %v4246
    %v4788 = vunpack.c.l.b16 %v4247
    %v4789 = vunpack.c.h.b16 %v4247
    %v4790 = vunpack.c.l.b16 %v4248
    %v4791 = vunpack.c.h.b16 %v4248
    %v4792 = vunpack.c.l.b16 %v4249
    %v4793 = vunpack.c.h.b16 %v4249
    %v4794 = vunpack.c.l.b16 %v4250
    %v4795 = vunpack.c.h.b16 %v4250
    %v4796 = vunpack.c.l.b16 %v4251
    %v4797 = vunpack.c.h.b16 %v4251
    %v4798 = vunpack.c.l.b16 %v4252
    %v4799 = vunpack.c.h.b16 %v4252
    %v4800 = vunpack.c.l.b16 %v4253
    %v4801 = vunpack.c.h.b16 %v4253
    %v4802 = vunpack.c.l.b16 %v4254
    %v4803 = vunpack.c.h.b16 %v4254
    %v4804 = vunpack.c.l.b16 %v4255
    %v4805 = vunpack.c.h.b16 %v4255
    %v4806 = vunpack.c.l.b16 %v4256
    %v4807 = vunpack.c.h.b16 %v4256
    %v4808 = vunpack.c.l.b16 %v4257
    %v4809 = vunpack.c.h.b16 %v4257
    %v4810 = vunpack.c.l.b16 %v4258
    %v4811 = vunpack.c.h.b16 %v4258
    %v4812 = vunpack.c.l.b16 %v4259
    %v4813 = vunpack.c.h.b16 %v4259
    %v4814 = vunpack.c.l.b16 %v4260
    %v4815 = vunpack.c.h.b16 %v4260
    %v4816 = vunpack.c.l.b16 %v4261
    %v4817 = vunpack.c.h.b16 %v4261
    %v4818 = vunpack.c.l.b16 %v4262
    %v4819 = vunpack.c.h.b16 %v4262
    %v4820 = vunpack.c.l.b16 %v4263
    %v4821 = vunpack.c.h.b16 %v4263
    %v4822 = vunpack.c.l.b16 %v4264
    %v4823 = vunpack.c.h.b16 %v4264
    %v4824 = vunpack.c.l.b16 %v4265
    %v4825 = vunpack.c.h.b16 %v4265
    %v4826 = vunpack.c.l.b16 %v4266
    %v4827 = vunpack.c.h.b16 %v4266
    %v4828 = vunpack.c.l.b16 %v4267
    %v4829 = vunpack.c.h.b16 %v4267
    %v4830 = vunpack.c.l.b16 %v4268
    %v4831 = vunpack.c.h.b16 %v4268
    %v4832 = vunpack.c.l.b16 %v4269
    %v4833 = vunpack.c.h.b16 %v4269
    %v4834 = vunpack.c.l.b16 %v4270
    %v4835 = vunpack.c.h.b16 %v4270
    %v4836 = vunpack.c.l.b16 %v4271
    %v4837 = vunpack.c.h.b16 %v4271
    %v4838 = vunpack.c.l.b16 %v4272
    %v4839 = vunpack.c.h.b16 %v4272
    %v4840 = vunpack.c.l.b16 %v4273
    %v4841 = vunpack.c.h.b16 %v4273
    %v4842 = vunpack.c.l.b16 %v4274
    %v4843 = vunpack.c.h.b16 %v4274
    %v4844 = vunpack.c.l.b16 %v4275
    %v4845 = vunpack.c.h.b16 %v4275
    %v4846 = vunpack.c.l.b16 %v4276
    %v4847 = vunpack.c.h.b16 %v4276
    %v4848 = vunpack.c.l.b16 %v4277
    %v4849 = vunpack.c.h.b16 %v4277
    %v4850 = vunpack.c.l.b16 %v4278
    %v4851 = vunpack.c.h.b16 %v4278
    %v4852 = vunpack.c.l.b16 %v4279
    %v4853 = vunpack.c.h.b16 %v4279
    %v4854 = vunpack.c.l.b16 %v4280
    %v4855 = vunpack.c.h.b16 %v4280
    %v4856 = vunpack.c.l.b16 %v4281
    %v4857 = vunpack.c.h.b16 %v4281
    %v4858 = vunpack.c.l.b16 %v4282
    %v4859 = vunpack.c.h.b16 %v4282
    %v4860 = vunpack.c.l.b16 %v4283
    %v4861 = vunpack.c.h.b16 %v4283
    %v4862 = vunpack.c.l.b16 %v4284
    %v4863 = vunpack.c.h.b16 %v4284
    %v4864 = vunpack.c.l.b16 %v4285
    %v4865 = vunpack.c.h.b16 %v4285
    %v4866 = vunpack.c.l.b16 %v4286
    %v4867 = vunpack.c.h.b16 %v4286
    %v4868 = vunpack.c.l.b16 %v4287
    %v4869 = vunpack.c.h.b16 %v4287
    %v4870 = vunpack.c.l.b16 %v4288
    %v4871 = vunpack.c.h.b16 %v4288
    %v4872 = vunpack.c.l.b16 %v4289
    %v4873 = vunpack.c.h.b16 %v4289
    %v4874 = vunpack.c.l.b16 %v4290
    %v4875 = vunpack.c.h.b16 %v4290
    %v4876 = vunpack.c.l.b16 %v4291
    %v4877 = vunpack.c.h.b16 %v4291
    %v4878 = vunpack.c.l.b16 %v4292
    %v4879 = vunpack.c.h.b16 %v4292
    %v4880 = vunpack.c.l.b16 %v4293
    %v4881 = vunpack.c.h.b16 %v4293
    %v4882 = vunpack.c.l.b16 %v4294
    %v4883 = vunpack.c.h.b16 %v4294
    %v4884 = vunpack.c.l.b16 %v4295
    %v4885 = vunpack.c.h.b16 %v4295
    %v4886 = vunpack.c.l.b16 %v4296
    %v4887 = vunpack.c.h.b16 %v4296
    %v4888 = vunpack.c.l.b16 %v4297
    %v4889 = vunpack.c.h.b16 %v4297
    %v4890 = vunpack.c.l.b16 %v4298
    %v4891 = vunpack.c.h.b16 %v4298
    %v4892 = vunpack.c.l.b16 %v4299
    %v4893 = vunpack.c.h.b16 %v4299
    %v4894 = vunpack.c.l.b16 %v4300
    %v4895 = vunpack.c.h.b16 %v4300
    %v4896 = vunpack.c.l.b16 %v4301
    %v4897 = vunpack.c.h.b16 %v4301
    %v4898 = vunpack.c.l.b16 %v4302
    %v4899 = vunpack.c.h.b16 %v4302
    %v4900 = vunpack.c.l.b16 %v4303
    %v4901 = vunpack.c.h.b16 %v4303
    %v4902 = vunpack.c.l.b16 %v4304
    %v4903 = vunpack.c.h.b16 %v4304
    %v4904 = vunpack.c.l.b16 %v4305
    %v4905 = vunpack.c.h.b16 %v4305
    %v4906 = vunpack.c.l.b16 %v4306
    %v4907 = vunpack.c.h.b16 %v4306
    %v4908 = vunpack.c.l.b16 %v4307
    %v4909 = vunpack.c.h.b16 %v4307
    %v4910 = vunpack.c.l.b16 %v4308
    %v4911 = vunpack.c.h.b16 %v4308
    %v4912 = vunpack.c.l.b16 %v4309
    %v4913 = vunpack.c.h.b16 %v4309
    %v4914 = vunpack.c.l.b16 %v4310
    %v4915 = vunpack.c.h.b16 %v4310
    %v4916 = vunpack.c.l.b16 %v4311
    %v4917 = vunpack.c.h.b16 %v4311
    %v4918 = vunpack.c.l.b16 %v4312
    %v4919 = vunpack.c.h.b16 %v4312
    %v4920 = vunpack.c.l.b16 %v4313
    %v4921 = vunpack.c.h.b16 %v4313
    %v4922 = vunpack.c.l.b16 %v4314
    %v4923 = vunpack.c.h.b16 %v4314
    %v4924 = vunpack.c.l.b16 %v4315
    %v4925 = vunpack.c.h.b16 %v4315
    %v4926 = vunpack.c.l.b16 %v4316
    %v4927 = vunpack.c.h.b16 %v4316
    %v4928 = vunpack.c.l.b16 %v4317
    %v4929 = vunpack.c.h.b16 %v4317
    %v4930 = vunpack.c.l.b16 %v4318
    %v4931 = vunpack.c.h.b16 %v4318
    %v4932 = vunpack.c.l.b16 %v4319
    %v4933 = vunpack.c.h.b16 %v4319
    %v4934 = vunpack.c.l.b16 %v4320
    %v4935 = vunpack.c.h.b16 %v4320
    %v4936 = vunpack.c.l.b16 %v4321
    %v4937 = vunpack.c.h.b16 %v4321
    %v4938 = vunpack.c.l.b16 %v4322
    %v4939 = vunpack.c.h.b16 %v4322
    %v4940 = vunpack.c.l.b16 %v4323
    %v4941 = vunpack.c.h.b16 %v4323
    %v4942 = vunpack.c.l.b16 %v4324
    %v4943 = vunpack.c.h.b16 %v4324
    %v4944 = vunpack.c.l.b16 %v4325
    %v4945 = vunpack.c.h.b16 %v4325
    %v4946 = vunpack.c.l.b16 %v4326
    %v4947 = vunpack.c.h.b16 %v4326
    %v4948 = vunpack.c.l.b16 %v4327
    %v4949 = vunpack.c.h.b16 %v4327
    %v4950 = vunpack.c.l.b16 %v4328
    %v4951 = vunpack.c.h.b16 %v4328
    %v4952 = vunpack.c.l.b16 %v4329
    %v4953 = vunpack.c.h.b16 %v4329
    %v4954 = vunpack.c.l.b16 %v4330
    %v4955 = vunpack.c.h.b16 %v4330
    %v4956 = vunpack.c.l.b16 %v4331
    %v4957 = vunpack.c.h.b16 %v4331
    %v4958 = vunpack.c.l.b16 %v4332
    %v4959 = vunpack.c.h.b16 %v4332
    %v4960 = vunpack.c.l.b16 %v4333
    %v4961 = vunpack.c.h.b16 %v4333
    %v4962 = vunpack.c.l.b16 %v4334
    %v4963 = vunpack.c.h.b16 %v4334
    %v4964 = vunpack.c.l.b16 %v4335
    %v4965 = vunpack.c.h.b16 %v4335
    %v4966 = vunpack.c.l.b16 %v4336
    %v4967 = vunpack.c.h.b16 %v4336
    %v4968 = vunpack.c.l.b16 %v4337
    %v4969 = vunpack.c.h.b16 %v4337
    %v4970 = vunpack.c.l.b16 %v4338
    %v4971 = vunpack.c.h.b16 %v4338
    %v4972 = vunpack.c.l.b16 %v4339
    %v4973 = vunpack.c.h.b16 %v4339
    %v4974 = vunpack.c.l.b16 %v4340
    %v4975 = vunpack.c.h.b16 %v4340
    %v4976 = vunpack.c.l.b16 %v4341
    %v4977 = vunpack.c.h.b16 %v4341
    %v4978 = vunpack.c.l.b16 %v4342
    %v4979 = vunpack.c.h.b16 %v4342
    %v4980 = vunpack.c.l.b16 %v4343
    %v4981 = vunpack.c.h.b16 %v4343
    %v4982 = vunpack.c.l.b16 %v4344
    %v4983 = vunpack.c.h.b16 %v4344
    %v4984 = vunpack.c.l.b16 %v4345
    %v4985 = vunpack.c.h.b16 %v4345
    %v4986 = vunpack.c.l.b16 %v4346
    %v4987 = vunpack.c.h.b16 %v4346
    %v4988 = vunpack.c.l.b16 %v4347
    %v4989 = vunpack.c.h.b16 %v4347
    %v4990 = vunpack.c.l.b16 %v4348
    %v4991 = vunpack.c.h.b16 %v4348
    %v4992 = vunpack.c.l.b16 %v4349
    %v4993 = vunpack.c.h.b16 %v4349
    %v4994 = vunpack.c.l.b16 %v4350
    %v4995 = vunpack.c.h.b16 %v4350
    %v4996 = vunpack.c.l.b16 %v4351
    %v4997 = vunpack.c.h.b16 %v4351
    %v4998 = vunpack.c.l.b16 %v4352
    %v4999 = vunpack.c.h.b16 %v4352
    %v5000 = vunpack.c.l.b16 %v4353
    %v5001 = vunpack.c.h.b16 %v4353
    %v5002 = vunpack.c.l.b16 %v4354
    %v5003 = vunpack.c.h.b16 %v4354
    %v5004 = vunpack.c.l.b16 %v4355
    %v5005 = vunpack.c.h.b16 %v4355
    %v5006 = vunpack.c.l.b16 %v4356
    %v5007 = vunpack.c.h.b16 %v4356
    %v5008 = vunpack.c.l.b16 %v4357
    %v5009 = vunpack.c.h.b16 %v4357
    %v5010 = vunpack.c.l.b16 %v4358
    %v5011 = vunpack.c.h.b16 %v4358
    %v5012 = vunpack.c.l.b16 %v4359
    %v5013 = vunpack.c.h.b16 %v4359
    %v5014 = vunpack.c.l.b16 %v4360
    %v5015 = vunpack.c.h.b16 %v4360
    %v5016 = vunpack.c.l.b16 %v4361
    %v5017 = vunpack.c.h.b16 %v4361
    %v5018 = vunpack.c.l.b16 %v4362
    %v5019 = vunpack.c.h.b16 %v4362
    %v5020 = vunpack.c.l.b16 %v4363
    %v5021 = vunpack.c.h.b16 %v4363
    %v5022 = vunpack.c.l.b16 %v4364
    %v5023 = vunpack.c.h.b16 %v4364
    %v5024 = vunpack.c.l.b16 %v4365
    %v5025 = vunpack.c.h.b16 %v4365
    %v5026 = vunpack.c.l.b16 %v4366
    %v5027 = vunpack.c.h.b16 %v4366
    %v5028 = vunpack.c.l.b16 %v4367
    %v5029 = vunpack.c.h.b16 %v4367
    %v5030 = vunpack.c.l.b16 %v4368
    %v5031 = vunpack.c.h.b16 %v4368
    %v5032 = vunpack.c.l.b16 %v4369
    %v5033 = vunpack.c.h.b16 %v4369
    %v5034 = vunpack.c.l.b16 %v4370
    %v5035 = vunpack.c.h.b16 %v4370
    %v5036 = vunpack.c.l.b16 %v4371
    %v5037 = vunpack.c.h.b16 %v4371
    %v5038 = vunpack.c.l.b16 %v4372
    %v5039 = vunpack.c.h.b16 %v4372
    %v5040 = vunpack.c.l.b16 %v4373
    %v5041 = vunpack.c.h.b16 %v4373
    %v5042 = vunpack.c.l.b16 %v4374
    %v5043 = vunpack.c.h.b16 %v4374
    %v5044 = vunpack.c.l.b16 %v4375
    %v5045 = vunpack.c.h.b16 %v4375
    %v5046 = vunpack.c.l.b16 %v4376
    %v5047 = vunpack.c.h.b16 %v4376
    %v5048 = vunpack.c.l.b16 %v4377
    %v5049 = vunpack.c.h.b16 %v4377
    %v5050 = vunpack.c.l.b16 %v4378
    %v5051 = vunpack.c.h.b16 %v4378
    %v5052 = vunpack.c.l.b16 %v4379
    %v5053 = vunpack.c.h.b16 %v4379
    %v5054 = vunpack.c.l.b16 %v4380
    %v5055 = vunpack.c.h.b16 %v4380
    %v5056 = vunpack.c.l.b16 %v4381
    %v5057 = vunpack.c.h.b16 %v4381
    %v5058 = vunpack.c.l.b16 %v4382
    %v5059 = vunpack.c.h.b16 %v4382
    %v5060 = vunpack.c.l.b16 %v4383
    %v5061 = vunpack.c.h.b16 %v4383
    %v5062 = vunpack.c.l.b16 %v4384
    %v5063 = vunpack.c.h.b16 %v4384
    %v5064 = vunpack.c.l.b16 %v4385
    %v5065 = vunpack.c.h.b16 %v4385
    %v5066 = vunpack.c.l.b16 %v4386
    %v5067 = vunpack.c.h.b16 %v4386
    %v5068 = vunpack.c.l.b16 %v4387
    %v5069 = vunpack.c.h.b16 %v4387
    %v5070 = vunpack.c.l.b16 %v4388
    %v5071 = vunpack.c.h.b16 %v4388
    %v5072 = vunpack.c.l.b16 %v4389
    %v5073 = vunpack.c.h.b16 %v4389
    %v5074 = vunpack.c.l.b16 %v4390
    %v5075 = vunpack.c.h.b16 %v4390
    %v5076 = vunpack.c.l.b16 %v4391
    %v5077 = vunpack.c.h.b16 %v4391
    %v5078 = vunpack.c.l.b16 %v4392
    %v5079 = vunpack.c.h.b16 %v4392
    %v5080 = vunpack.c.l.b16 %v4393
    %v5081 = vunpack.c.h.b16 %v4393
    %v5082 = vunpack.c.l.b16 %v4394
    %v5083 = vunpack.c.h.b16 %v4394
    %v5084 = vunpack.c.l.b16 %v4395
    %v5085 = vunpack.c.h.b16 %v4395
    %v5086 = vunpack.c.l.b16 %v4396
    %v5087 = vunpack.c.h.b16 %v4396
    %v5088 = vunpack.c.l.b16 %v4397
    %v5089 = vunpack.c.h.b16 %v4397
    %v5090 = vunpack.c.l.b16 %v4398
    %v5091 = vunpack.c.h.b16 %v4398
    %v5092 = vunpack.c.l.b16 %v4399
    %v5093 = vunpack.c.h.b16 %v4399
    %v5094 = vunpack.c.l.b16 %v4400
    %v5095 = vunpack.c.h.b16 %v4400
    %v5096 = vunpack.c.l.b16 %v4401
    %v5097 = vunpack.c.h.b16 %v4401
    %v5098 = vunpack.c.l.b16 %v4402
    %v5099 = vunpack.c.h.b16 %v4402
    %v5100 = vunpack.c.l.b16 %v4403
    %v5101 = vunpack.c.h.b16 %v4403
    %v5102 = vunpack.c.l.b16 %v4404
    %v5103 = vunpack.c.h.b16 %v4404
    %v5104 = vunpack.c.l.b16 %v4405
    %v5105 = vunpack.c.h.b16 %v4405
    %v5106 = vunpack.c.l.b16 %v4406
    %v5107 = vunpack.c.h.b16 %v4406
    %v5108 = vunpack.c.l.b16 %v4407
    %v5109 = vunpack.c.h.b16 %v4407
    %v5110 = vunpack.c.l.b16 %v4408
    %v5111 = vunpack.c.h.b16 %v4408
    %v5112 = vunpack.c.l.b16 %v4409
    %v5113 = vunpack.c.h.b16 %v4409
    %v5114 = vunpack.c.l.b16 %v4410
    %v5115 = vunpack.c.h.b16 %v4410
    %v5116 = vunpack.c.l.b16 %v4411
    %v5117 = vunpack.c.h.b16 %v4411
    %v5118 = vunpack.c.l.b16 %v4412
    %v5119 = vunpack.c.h.b16 %v4412
    %v5120 = vunpack.c.l.b16 %v4413
    %v5121 = vunpack.c.h.b16 %v4413
    %v5122 = vunpack.c.l.b16 %v4414
    %v5123 = vunpack.c.h.b16 %v4414
    %v5124 = vunpack.c.l.b16 %v4415
    %v5125 = vunpack.c.h.b16 %v4415
    %v5126 = vunpack.c.l.b16 %v4416
    %v5127 = vunpack.c.h.b16 %v4416
    %v5128 = vunpack.c.l.b16 %v4417
    %v5129 = vunpack.c.h.b16 %v4417
    %v5130 = vunpack.c.l.b16 %v4418
    %v5131 = vunpack.c.h.b16 %v4418
    %v5132 = vunpack.c.l.b16 %v4419
    %v5133 = vunpack.c.h.b16 %v4419
    %v5134 = vunpack.c.l.b16 %v4420
    %v5135 = vunpack.c.h.b16 %v4420
    %v5136 = vunpack.c.l.b16 %v4421
    %v5137 = vunpack.c.h.b16 %v4421
    %v5138 = vunpack.c.l.b16 %v4422
    %v5139 = vunpack.c.h.b16 %v4422
    %v5140 = vunpack.c.l.b16 %v4423
    %v5141 = vunpack.c.h.b16 %v4423
    %v5142 = vunpack.c.l.b16 %v4424
    %v5143 = vunpack.c.h.b16 %v4424
    %v5144 = vunpack.c.l.b16 %v4425
    %v5145 = vunpack.c.h.b16 %v4425
    %v5146 = vunpack.c.l.b16 %v4426
    %v5147 = vunpack.c.h.b16 %v4426
    %v5148 = vunpack.c.l.b16 %v4427
    %v5149 = vunpack.c.h.b16 %v4427
    %v5150 = vunpack.c.l.b16 %v4428
    %v5151 = vunpack.c.h.b16 %v4428
    %v5152 = vunpack.c.l.b16 %v4429
    %v5153 = vunpack.c.h.b16 %v4429
    %v5154 = vunpack.c.l.b16 %v4430
    %v5155 = vunpack.c.h.b16 %v4430
    %v5156 = vunpack.c.l.b16 %v4431
    %v5157 = vunpack.c.h.b16 %v4431
    %v5158 = vunpack.c.l.b16 %v4432
    %v5159 = vunpack.c.h.b16 %v4432
    %v5160 = vunpack.c.l.b16 %v4433
    %v5161 = vunpack.c.h.b16 %v4433
    %v5162 = vunpack.c.l.b16 %v4434
    %v5163 = vunpack.c.h.b16 %v4434
    %v5164 = vunpack.c.l.b16 %v4435
    %v5165 = vunpack.c.h.b16 %v4435
    %v5166 = vunpack.c.l.b16 %v4436
    %v5167 = vunpack.c.h.b16 %v4436
    %v5168 = vunpack.c.l.b16 %v4437
    %v5169 = vunpack.c.h.b16 %v4437
    %v5170 = vunpack.c.l.b16 %v4438
    %v5171 = vunpack.c.h.b16 %v4438
    %v5172 = vunpack.c.l.b16 %v4439
    %v5173 = vunpack.c.h.b16 %v4439
    %v5174 = vunpack.c.l.b16 %v4440
    %v5175 = vunpack.c.h.b16 %v4440
    %v5176 = vunpack.c.l.b16 %v4441
    %v5177 = vunpack.c.h.b16 %v4441
    %v5178 = vunpack.c.l.b16 %v4442
    %v5179 = vunpack.c.h.b16 %v4442
    %v5180 = vunpack.c.l.b16 %v4443
    %v5181 = vunpack.c.h.b16 %v4443
    %v5182 = vunpack.c.l.b16 %v4444
    %v5183 = vunpack.c.h.b16 %v4444
    %v5184 = vunpack.c.l.b16 %v4445
    %v5185 = vunpack.c.h.b16 %v4445
    %v5186 = vunpack.c.l.b16 %v4446
    %v5187 = vunpack.c.h.b16 %v4446
    %v5188 = vunpack.c.l.b16 %v4447
    %v5189 = vunpack.c.h.b16 %v4447
    %v5190 = vunpack.c.l.b16 %v4448
    %v5191 = vunpack.c.h.b16 %v4448
    %v5192 = vunpack.c.l.b16 %v4449
    %v5193 = vunpack.c.h.b16 %v4449
    %v5194 = vunpack.c.l.b16 %v4450
    %v5195 = vunpack.c.h.b16 %v4450
    %v5196 = vunpack.c.l.b16 %v4451
    %v5197 = vunpack.c.h.b16 %v4451
    %v5198 = vunpack.c.l.b16 %v4452
    %v5199 = vunpack.c.h.b16 %v4452
    %v5200 = vunpack.c.l.b16 %v4453
    %v5201 = vunpack.c.h.b16 %v4453
    %v5202 = vunpack.c.l.b16 %v4454
    %v5203 = vunpack.c.h.b16 %v4454
    %v5204 = vunpack.c.l.b16 %v4455
    %v5205 = vunpack.c.h.b16 %v4455
    %v5206 = vunpack.c.l.b16 %v4456
    %v5207 = vunpack.c.h.b16 %v4456
    %v5208 = vunpack.c.l.b16 %v4457
    %v5209 = vunpack.c.h.b16 %v4457
    %v5210 = vunpack.c.l.b16 %v4458
    %v5211 = vunpack.c.h.b16 %v4458
    %v5212 = vunpack.c.l.b16 %v4459
    %v5213 = vunpack.c.h.b16 %v4459
    %v5214 = vunpack.c.l.b16 %v4460
    %v5215 = vunpack.c.h.b16 %v4460
    %v5216 = vunpack.c.l.b16 %v4461
    %v5217 = vunpack.c.h.b16 %v4461
    %v5218 = vunpack.c.l.b16 %v4462
    %v5219 = vunpack.c.h.b16 %v4462
    %v5220 = vunpack.c.l.b16 %v4463
    %v5221 = vunpack.c.h.b16 %v4463
    %v5222 = vunpack.c.l.b16 %v4464
    %v5223 = vunpack.c.h.b16 %v4464
    %v5224 = vunpack.c.l.b16 %v4465
    %v5225 = vunpack.c.h.b16 %v4465
    %v5226 = vunpack.c.l.b16 %v4466
    %v5227 = vunpack.c.h.b16 %v4466
    %v5228 = vunpack.c.l.b16 %v4467
    %v5229 = vunpack.c.h.b16 %v4467
    %v5230 = vunpack.c.l.b16 %v4468
    %v5231 = vunpack.c.h.b16 %v4468
    %v5232 = vunpack.c.l.b16 %v4469
    %v5233 = vunpack.c.h.b16 %v4469
    %v5234 = vunpack.c.l.b16 %v4470
    %v5235 = vunpack.c.h.b16 %v4470
    %v5236 = vunpack.c.l.b16 %v4471
    %v5237 = vunpack.c.h.b16 %v4471
    %v5238 = vunpack.c.l.b16 %v4472
    %v5239 = vunpack.c.h.b16 %v4472
    %v5240 = vunpack.c.l.b16 %v4473
    %v5241 = vunpack.c.h.b16 %v4473
    %v5242 = vunpack.c.l.b16 %v4474
    %v5243 = vunpack.c.h.b16 %v4474
    %v5244 = vunpack.c.l.b16 %v4475
    %v5245 = vunpack.c.h.b16 %v4475
    %v5246 = vunpack.c.l.b16 %v4476
    %v5247 = vunpack.c.h.b16 %v4476
    %v5248 = vunpack.c.l.b16 %v4477
    %v5249 = vunpack.c.h.b16 %v4477
    %v5250 = vunpack.c.l.b16 %v4478
    %v5251 = vunpack.c.h.b16 %v4478
    %v5252 = vunpack.c.l.b16 %v4479
    %v5253 = vunpack.c.h.b16 %v4479
    %v5254 = vunpack.c.l.b16 %v4480
    %v5255 = vunpack.c.h.b16 %v4480
    %v5256 = vunpack.c.l.b16 %v4481
    %v5257 = vunpack.c.h.b16 %v4481
    %v5258 = vunpack.c.l.b16 %v4482
    %v5259 = vunpack.c.h.b16 %v4482
    %v5260 = vunpack.c.l.b16 %v4483
    %v5261 = vunpack.c.h.b16 %v4483
    %v5262 = vunpack.c.l.b16 %v4484
    %v5263 = vunpack.c.h.b16 %v4484
    %v5264 = vunpack.c.l.b16 %v4485
    %v5265 = vunpack.c.h.b16 %v4485
    %v5266 = vunpack.c.l.b16 %v4486
    %v5267 = vunpack.c.h.b16 %v4486
    %v5268 = vunpack.c.l.b16 %v4487
    %v5269 = vunpack.c.h.b16 %v4487
    %v5270 = vunpack.c.l.b16 %v4488
    %v5271 = vunpack.c.h.b16 %v4488
    %v5272 = vunpack.c.l.b16 %v4489
    %v5273 = vunpack.c.h.b16 %v4489
    %v5274 = vpack.c.b16 %v4766, %v4762
    %v5275 = vpack.c.b16 %v4767, %v4763
    %v5276 = vpack.c.b16 %v4768, %v4764
    %v5277 = vpack.c.b16 %v4769, %v4765
    %v5278 = vpack.c.b16 %v4774, %v4770
    %v5279 = vpack.c.b16 %v4775, %v4771
    %v5280 = vpack.c.b16 %v4776, %v4772
    %v5281 = vpack.c.b16 %v4777, %v4773
    %v5282 = vpack.c.b16 %v4782, %v4778
    %v5283 = vpack.c.b16 %v4783, %v4779
    %v5284 = vpack.c.b16 %v4784, %v4780
    %v5285 = vpack.c.b16 %v4785, %v4781
    %v5286 = vpack.c.b16 %v4790, %v4786
    %v5287 = vpack.c.b16 %v4791, %v4787
    %v5288 = vpack.c.b16 %v4792, %v4788
    %v5289 = vpack.c.b16 %v4793, %v4789
    %v5290 = vpack.c.b16 %v4798, %v4794
    %v5291 = vpack.c.b16 %v4799, %v4795
    %v5292 = vpack.c.b16 %v4800, %v4796
    %v5293 = vpack.c.b16 %v4801, %v4797
    %v5294 = vpack.c.b16 %v4806, %v4802
    %v5295 = vpack.c.b16 %v4807, %v4803
    %v5296 = vpack.c.b16 %v4808, %v4804
    %v5297 = vpack.c.b16 %v4809, %v4805
    %v5298 = vpack.c.b16 %v4814, %v4810
    %v5299 = vpack.c.b16 %v4815, %v4811
    %v5300 = vpack.c.b16 %v4816, %v4812
    %v5301 = vpack.c.b16 %v4817, %v4813
    %v5302 = vpack.c.b16 %v4822, %v4818
    %v5303 = vpack.c.b16 %v4823, %v4819
    %v5304 = vpack.c.b16 %v4824, %v4820
    %v5305 = vpack.c.b16 %v4825, %v4821
    %v5306 = vpack.c.b16 %v4830, %v4826
    %v5307 = vpack.c.b16 %v4831, %v4827
    %v5308 = vpack.c.b16 %v4832, %v4828
    %v5309 = vpack.c.b16 %v4833, %v4829
    %v5310 = vpack.c.b16 %v4838, %v4834
    %v5311 = vpack.c.b16 %v4839, %v4835
    %v5312 = vpack.c.b16 %v4840, %v4836
    %v5313 = vpack.c.b16 %v4841, %v4837
    %v5314 = vpack.c.b16 %v4846, %v4842
    %v5315 = vpack.c.b16 %v4847, %v4843
    %v5316 = vpack.c.b16 %v4848, %v4844
    %v5317 = vpack.c.b16 %v4849, %v4845
    %v5318 = vpack.c.b16 %v4854, %v4850
    %v5319 = vpack.c.b16 %v4855, %v4851
    %v5320 = vpack.c.b16 %v4856, %v4852
    %v5321 = vpack.c.b16 %v4857, %v4853
    %v5322 = vpack.c.b16 %v4862, %v4858
    %v5323 = vpack.c.b16 %v4863, %v4859
    %v5324 = vpack.c.b16 %v4864, %v4860
    %v5325 = vpack.c.b16 %v4865, %v4861
    %v5326 = vpack.c.b16 %v4870, %v4866
    %v5327 = vpack.c.b16 %v4871, %v4867
    %v5328 = vpack.c.b16 %v4872, %v4868
    %v5329 = vpack.c.b16 %v4873, %v4869
    %v5330 = vpack.c.b16 %v4878, %v4874
    %v5331 = vpack.c.b16 %v4879, %v4875
    %v5332 = vpack.c.b16 %v4880, %v4876
    %v5333 = vpack.c.b16 %v4881, %v4877
    %v5334 = vpack.c.b16 %v4886, %v4882
    %v5335 = vpack.c.b16 %v4887, %v4883
    %v5336 = vpack.c.b16 %v4888, %v4884
    %v5337 = vpack.c.b16 %v4889, %v4885
    %v5338 = vpack.c.b16 %v4894, %v4890
    %v5339 = vpack.c.b16 %v4895, %v4891
    %v5340 = vpack.c.b16 %v4896, %v4892
    %v5341 = vpack.c.b16 %v4897, %v4893
    %v5342 = vpack.c.b16 %v4902, %v4898
    %v5343 = vpack.c.b16 %v4903, %v4899
    %v5344 = vpack.c.b16 %v4904, %v4900
    %v5345 = vpack.c.b16 %v4905, %v4901
    %v5346 = vpack.c.b16 %v4910, %v4906
    %v5347 = vpack.c.b16 %v4911, %v4907
    %v5348 = vpack.c.b16 %v4912, %v4908
    %v5349 = vpack.c.b16 %v4913, %v4909
    %v5350 = vpack.c.b16 %v4918, %v4914
    %v5351 = vpack.c.b16 %v4919, %v4915
    %v5352 = vpack.c.b16 %v4920, %v4916
    %v5353 = vpack.c.b16 %v4921, %v4917
    %v5354 = vpack.c.b16 %v4926, %v4922
    %v5355 = vpack.c.b16 %v4927, %v4923
    %v5356 = vpack.c.b16 %v4928, %v4924
    %v5357 = vpack.c.b16 %v4929, %v4925
    %v5358 = vpack.c.b16 %v4934, %v4930
    %v5359 = vpack.c.b16 %v4935, %v4931
    %v5360 = vpack.c.b16 %v4936, %v4932
    %v5361 = vpack.c.b16 %v4937, %v4933
    %v5362 = vpack.c.b16 %v4942, %v4938
    %v5363 = vpack.c.b16 %v4943, %v4939
    %v5364 = vpack.c.b16 %v4944, %v4940
    %v5365 = vpack.c.b16 %v4945, %v4941
    %v5366 = vpack.c.b16 %v4950, %v4946
    %v5367 = vpack.c.b16 %v4951, %v4947
    %v5368 = vpack.c.b16 %v4952, %v4948
    %v5369 = vpack.c.b16 %v4953, %v4949
    %v5370 = vpack.c.b16 %v4958, %v4954
    %v5371 = vpack.c.b16 %v4959, %v4955
    %v5372 = vpack.c.b16 %v4960, %v4956
    %v5373 = vpack.c.b16 %v4961, %v4957
    %v5374 = vpack.c.b16 %v4966, %v4962
    %v5375 = vpack.c.b16 %v4967, %v4963
    %v5376 = vpack.c.b16 %v4968, %v4964
    %v5377 = vpack.c.b16 %v4969, %v4965
    %v5378 = vpack.c.b16 %v4974, %v4970
    %v5379 = vpack.c.b16 %v4975, %v4971
    %v5380 = vpack.c.b16 %v4976, %v4972
    %v5381 = vpack.c.b16 %v4977, %v4973
    %v5382 = vpack.c.b16 %v4982, %v4978
    %v5383 = vpack.c.b16 %v4983, %v4979
    %v5384 = vpack.c.b16 %v4984, %v4980
    %v5385 = vpack.c.b16 %v4985, %v4981
    %v5386 = vpack.c.b16 %v4990, %v4986
    %v5387 = vpack.c.b16 %v4991, %v4987
    %v5388 = vpack.c.b16 %v4992, %v4988
    %v5389 = vpack.c.b16 %v4993, %v4989
    %v5390 = vpack.c.b16 %v4998, %v4994
    %v5391 = vpack.c.b16 %v4999, %v4995
    %v5392 = vpack.c.b16 %v5000, %v4996
    %v5393 = vpack.c.b16 %v5001, %v4997
    %v5394 = vpack.c.b16 %v5006, %v5002
    %v5395 = vpack.c.b16 %v5007, %v5003
    %v5396 = vpack.c.b16 %v5008, %v5004
    %v5397 = vpack.c.b16 %v5009, %v5005
    %v5398 = vpack.c.b16 %v5014, %v5010
    %v5399 = vpack.c.b16 %v5015, %v5011
    %v5400 = vpack.c.b16 %v5016, %v5012
    %v5401 = vpack.c.b16 %v5017, %v5013
    %v5402 = vpack.c.b16 %v5022, %v5018
    %v5403 = vpack.c.b16 %v5023, %v5019
    %v5404 = vpack.c.b16 %v5024, %v5020
    %v5405 = vpack.c.b16 %v5025, %v5021
    %v5406 = vpack.c.b16 %v5030, %v5026
    %v5407 = vpack.c.b16 %v5031, %v5027
    %v5408 = vpack.c.b16 %v5032, %v5028
    %v5409 = vpack.c.b16 %v5033, %v5029
    %v5410 = vpack.c.b16 %v5038, %v5034
    %v5411 = vpack.c.b16 %v5039, %v5035
    %v5412 = vpack.c.b16 %v5040, %v5036
    %v5413 = vpack.c.b16 %v5041, %v5037
    %v5414 = vpack.c.b16 %v5046, %v5042
    %v5415 = vpack.c.b16 %v5047, %v5043
    %v5416 = vpack.c.b16 %v5048, %v5044
    %v5417 = vpack.c.b16 %v5049, %v5045
    %v5418 = vpack.c.b16 %v5054, %v5050
    %v5419 = vpack.c.b16 %v5055, %v5051
    %v5420 = vpack.c.b16 %v5056, %v5052
    %v5421 = vpack.c.b16 %v5057, %v5053
    %v5422 = vpack.c.b16 %v5062, %v5058
    %v5423 = vpack.c.b16 %v5063, %v5059
    %v5424 = vpack.c.b16 %v5064, %v5060
    %v5425 = vpack.c.b16 %v5065, %v5061
    %v5426 = vpack.c.b16 %v5070, %v5066
    %v5427 = vpack.c.b16 %v5071, %v5067
    %v5428 = vpack.c.b16 %v5072, %v5068
    %v5429 = vpack.c.b16 %v5073, %v5069
    %v5430 = vpack.c.b16 %v5078, %v5074
    %v5431 = vpack.c.b16 %v5079, %v5075
    %v5432 = vpack.c.b16 %v5080, %v5076
    %v5433 = vpack.c.b16 %v5081, %v5077
    %v5434 = vpack.c.b16 %v5086, %v5082
    %v5435 = vpack.c.b16 %v5087, %v5083
    %v5436 = vpack.c.b16 %v5088, %v5084
    %v5437 = vpack.c.b16 %v5089, %v5085
    %v5438 = vpack.c.b16 %v5094, %v5090
    %v5439 = vpack.c.b16 %v5095, %v5091
    %v5440 = vpack.c.b16 %v5096, %v5092
    %v5441 = vpack.c.b16 %v5097, %v5093
    %v5442 = vpack.c.b16 %v5102, %v5098
    %v5443 = vpack.c.b16 %v5103, %v5099
    %v5444 = vpack.c.b16 %v5104, %v5100
    %v5445 = vpack.c.b16 %v5105, %v5101
    %v5446 = vpack.c.b16 %v5110, %v5106
    %v5447 = vpack.c.b16 %v5111, %v5107
    %v5448 = vpack.c.b16 %v5112, %v5108
    %v5449 = vpack.c.b16 %v5113, %v5109
    %v5450 = vpack.c.b16 %v5118, %v5114
    %v5451 = vpack.c.b16 %v5119, %v5115
    %v5452 = vpack.c.b16 %v5120, %v5116
    %v5453 = vpack.c.b16 %v5121, %v5117
    %v5454 = vpack.c.b16 %v5126, %v5122
    %v5455 = vpack.c.b16 %v5127, %v5123
    %v5456 = vpack.c.b16 %v5128, %v5124
    %v5457 = vpack.c.b16 %v5129, %v5125
    %v5458 = vpack.c.b16 %v5134, %v5130
    %v5459 = vpack.c.b16 %v5135, %v5131
    %v5460 = vpack.c.b16 %v5136, %v5132
    %v5461 = vpack.c.b16 %v5137, %v5133
    %v5462 = vpack.c.b16 %v5142, %v5138
    %v5463 = vpack.c.b16 %v5143, %v5139
    %v5464 = vpack.c.b16 %v5144, %v5140
    %v5465 = vpack.c.b16 %v5145, %v5141
    %v5466 = vpack.c.b16 %v5150, %v5146
    %v5467 = vpack.c.b16 %v5151, %v5147
    %v5468 = vpack.c.b16 %v5152, %v5148
    %v5469 = vpack.c.b16 %v5153, %v5149
    %v5470 = vpack.c.b16 %v5158, %v5154
    %v5471 = vpack.c.b16 %v5159, %v5155
    %v5472 = vpack.c.b16 %v5160, %v5156
    %v5473 = vpack.c.b16 %v5161, %v5157
    %v5474 = vpack.c.b16 %v5166, %v5162
    %v5475 = vpack.c.b16 %v5167, %v5163
    %v5476 = vpack.c.b16 %v5168, %v5164
    %v5477 = vpack.c.b16 %v5169, %v5165
    %v5478 = vpack.c.b16 %v5174, %v5170
    %v5479 = vpack.c.b16 %v5175, %v5171
    %v5480 = vpack.c.b16 %v5176, %v5172
    %v5481 = vpack.c.b16 %v5177, %v5173
    %v5482 = vpack.c.b16 %v5182, %v5178
    %v5483 = vpack.c.b16 %v5183, %v5179
    %v5484 = vpack.c.b16 %v5184, %v5180
    %v5485 = vpack.c.b16 %v5185, %v5181
    %v5486 = vpack.c.b16 %v5190, %v5186
    %v5487 = vpack.c.b16 %v5191, %v5187
    %v5488 = vpack.c.b16 %v5192, %v5188
    %v5489 = vpack.c.b16 %v5193, %v5189
    %v5490 = vpack.c.b16 %v5198, %v5194
    %v5491 = vpack.c.b16 %v5199, %v5195
    %v5492 = vpack.c.b16 %v5200, %v5196
    %v5493 = vpack.c.b16 %v5201, %v5197
    %v5494 = vpack.c.b16 %v5206, %v5202
    %v5495 = vpack.c.b16 %v5207, %v5203
    %v5496 = vpack.c.b16 %v5208, %v5204
    %v5497 = vpack.c.b16 %v5209, %v5205
    %v5498 = vpack.c.b16 %v5214, %v5210
    %v5499 = vpack.c.b16 %v5215, %v5211
    %v5500 = vpack.c.b16 %v5216, %v5212
    %v5501 = vpack.c.b16 %v5217, %v5213
    %v5502 = vpack.c.b16 %v5222, %v5218
    %v5503 = vpack.c.b16 %v5223, %v5219
    %v5504 = vpack.c.b16 %v5224, %v5220
    %v5505 = vpack.c.b16 %v5225, %v5221
    %v5506 = vpack.c.b16 %v5230, %v5226
    %v5507 = vpack.c.b16 %v5231, %v5227
    %v5508 = vpack.c.b16 %v5232, %v5228
    %v5509 = vpack.c.b16 %v5233, %v5229
    %v5510 = vpack.c.b16 %v5238, %v5234
    %v5511 = vpack.c.b16 %v5239, %v5235
    %v5512 = vpack.c.b16 %v5240, %v5236
    %v5513 = vpack.c.b16 %v5241, %v5237
    %v5514 = vpack.c.b16 %v5246, %v5242
    %v5515 = vpack.c.b16 %v5247, %v5243
    %v5516 = vpack.c.b16 %v5248, %v5244
    %v5517 = vpack.c.b16 %v5249, %v5245
    %v5518 = vpack.c.b16 %v5254, %v5250
    %v5519 = vpack.c.b16 %v5255, %v5251
    %v5520 = vpack.c.b16 %v5256, %v5252
    %v5521 = vpack.c.b16 %v5257, %v5253
    %v5522 = vpack.c.b16 %v5262, %v5258
    %v5523 = vpack.c.b16 %v5263, %v5259
    %v5524 = vpack.c.b16 %v5264, %v5260
    %v5525 = vpack.c.b16 %v5265, %v5261
    %v5526 = vpack.c.b16 %v5270, %v5266
    %v5527 = vpack.c.b16 %v5271, %v5267
    %v5528 = vpack.c.b16 %v5272, %v5268
    %v5529 = vpack.c.b16 %v5273, %v5269
    %5786 = vmatprep.subr.bf16.mxu0 %v5275
    %5787 = vmatpush1.bf16.msra.mxu0 %v5274
    %5788 = vmatprep.subr.bf16.mxu0 %v5279
    %5789 = vmatpush1.bf16.msra.mxu0 %v5278
    %5790 = vmatprep.subr.bf16.mxu0 %v5283
    %5791 = vmatpush1.bf16.msra.mxu0 %v5282
    %5792 = vmatprep.subr.bf16.mxu0 %v5287
    %5793 = vmatpush1.bf16.msra.mxu0 %v5286
    %5794 = vmatprep.subr.bf16.mxu0 %v5291
    %5795 = vmatpush1.bf16.msra.mxu0 %v5290
    %5796 = vmatprep.subr.bf16.mxu0 %v5295
    %5797 = vmatpush1.bf16.msra.mxu0 %v5294
    %5798 = vmatprep.subr.bf16.mxu0 %v5299
    %5799 = vmatpush1.bf16.msra.mxu0 %v5298
    %5800 = vmatprep.subr.bf16.mxu0 %v5303
    %5801 = vmatpush1.bf16.msra.mxu0 %v5302
    %5802 = vmatprep.subr.bf16.mxu0 %v5307
    %5803 = vmatpush1.bf16.msra.mxu0 %v5306
    %5804 = vmatprep.subr.bf16.mxu0 %v5311
    %5805 = vmatpush1.bf16.msra.mxu0 %v5310
    %5806 = vmatprep.subr.bf16.mxu0 %v5315
    %5807 = vmatpush1.bf16.msra.mxu0 %v5314
    %5808 = vmatprep.subr.bf16.mxu0 %v5319
    %5809 = vmatpush1.bf16.msra.mxu0 %v5318
    %5810 = vmatprep.subr.bf16.mxu0 %v5323
    %5811 = vmatpush1.bf16.msra.mxu0 %v5322
    %5812 = vmatprep.subr.bf16.mxu0 %v5327
    %5813 = vmatpush1.bf16.msra.mxu0 %v5326
    %5814 = vmatprep.subr.bf16.mxu0 %v5331
    %5815 = vmatpush1.bf16.msra.mxu0 %v5330
    %5816 = vmatprep.subr.bf16.mxu0 %v5335
    %5817 = vmatpush1.bf16.msra.mxu0 %v5334
    %5818 = vmatprep.mubr.bf16.mxu0 %v4227
    %5819 = vmatmul.mubr.bf16.gmra.mrb[0].mxu0 %v4226
    %v5820 = vpop.f32.mrb[0].mxu0
    %v5821 = vadd.f32 %v4493, %v5820
    %v5822 = vpop.f32.mrb[0].mxu0
    %v5823 = vadd.f32 %v4497, %v5822
    %v5824 = vpop.f32.mrb[0].mxu0
    %v5825 = vpop.f32.mrb[0].mxu0
    %5826 = vdwg.mxu0
    %5827 = vmatprep.subr.bf16.mxu0 %v5339
    %5828 = vmatpush1.bf16.msra.mxu0 %v5338
    %5829 = vmatprep.subr.bf16.mxu0 %v5343
    %5830 = vmatpush1.bf16.msra.mxu0 %v5342
    %5831 = vmatprep.subr.bf16.mxu0 %v5347
    %5832 = vmatpush1.bf16.msra.mxu0 %v5346
    %5833 = vmatprep.subr.bf16.mxu0 %v5351
    %5834 = vmatpush1.bf16.msra.mxu0 %v5350
    %5835 = vmatprep.subr.bf16.mxu0 %v5355
    %5836 = vmatpush1.bf16.msra.mxu0 %v5354
    %5837 = vmatprep.subr.bf16.mxu0 %v5359
    %5838 = vmatpush1.bf16.msra.mxu0 %v5358
    %5839 = vmatprep.subr.bf16.mxu0 %v5363
    %5840 = vmatpush1.bf16.msra.mxu0 %v5362
    %5841 = vmatprep.subr.bf16.mxu0 %v5367
    %5842 = vmatpush1.bf16.msra.mxu0 %v5366
    %5843 = vmatprep.subr.bf16.mxu0 %v5371
    %5844 = vmatpush1.bf16.msra.mxu0 %v5370
    %5845 = vmatprep.subr.bf16.mxu0 %v5375
    %5846 = vmatpush1.bf16.msra.mxu0 %v5374
    %5847 = vmatprep.subr.bf16.mxu0 %v5379
    %5848 = vmatpush1.bf16.msra.mxu0 %v5378
    %5849 = vmatprep.subr.bf16.mxu0 %v5383
    %5850 = vmatpush1.bf16.msra.mxu0 %v5382
    %5851 = vmatprep.subr.bf16.mxu0 %v5387
    %5852 = vmatpush1.bf16.msra.mxu0 %v5386
    %5853 = vmatprep.subr.bf16.mxu0 %v5391
    %5854 = vmatpush1.bf16.msra.mxu0 %v5390
    %5855 = vmatprep.subr.bf16.mxu0 %v5395
    %5856 = vmatpush1.bf16.msra.mxu0 %v5394
    %5857 = vmatprep.subr.bf16.mxu0 %v5399
    %5858 = vmatpush1.bf16.msra.mxu0 %v5398
    %5859 = vmatprep.mubr.bf16.mxu0 %v4229
    %5860 = vmatmul.mubr.bf16.gmra.mrb[0].mxu0 %v4228
    %v5861 = vpop.f32.mrb[0].mxu0
    %v5862 = vadd.f32 %v5821, %v5861
    %v5863 = vpop.f32.mrb[0].mxu0
    %v5864 = vadd.f32 %v5823, %v5863
    %v5865 = vpop.f32.mrb[0].mxu0
    %v5866 = vpop.f32.mrb[0].mxu0
    %5867 = vdwg.mxu0
    %5868 = vmatprep.subr.bf16.mxu0 %v5403
    %5869 = vmatpush1.bf16.msra.mxu0 %v5402
    %5870 = vmatprep.subr.bf16.mxu0 %v5407
    %5871 = vmatpush1.bf16.msra.mxu0 %v5406
    %5872 = vmatprep.subr.bf16.mxu0 %v5411
    %5873 = vmatpush1.bf16.msra.mxu0 %v5410
    %5874 = vmatprep.subr.bf16.mxu0 %v5415
    %5875 = vmatpush1.bf16.msra.mxu0 %v5414
    %5876 = vmatprep.subr.bf16.mxu0 %v5419
    %5877 = vmatpush1.bf16.msra.mxu0 %v5418
    %5878 = vmatprep.subr.bf16.mxu0 %v5423
    %5879 = vmatpush1.bf16.msra.mxu0 %v5422
    %5880 = vmatprep.subr.bf16.mxu0 %v5427
    %5881 = vmatpush1.bf16.msra.mxu0 %v5426
    %5882 = vmatprep.subr.bf16.mxu0 %v5431
    %5883 = vmatpush1.bf16.msra.mxu0 %v5430
    %5884 = vmatprep.subr.bf16.mxu0 %v5435
    %5885 = vmatpush1.bf16.msra.mxu0 %v5434
    %5886 = vmatprep.subr.bf16.mxu0 %v5439
    %5887 = vmatpush1.bf16.msra.mxu0 %v5438
    %5888 = vmatprep.subr.bf16.mxu0 %v5443
    %5889 = vmatpush1.bf16.msra.mxu0 %v5442
    %5890 = vmatprep.subr.bf16.mxu0 %v5447
    %5891 = vmatpush1.bf16.msra.mxu0 %v5446
    %5892 = vmatprep.subr.bf16.mxu0 %v5451
    %5893 = vmatpush1.bf16.msra.mxu0 %v5450
    %5894 = vmatprep.subr.bf16.mxu0 %v5455
    %5895 = vmatpush1.bf16.msra.mxu0 %v5454
    %5896 = vmatprep.subr.bf16.mxu0 %v5459
    %5897 = vmatpush1.bf16.msra.mxu0 %v5458
    %5898 = vmatprep.subr.bf16.mxu0 %v5463
    %5899 = vmatpush1.bf16.msra.mxu0 %v5462
    %5900 = vmatprep.mubr.bf16.mxu0 %v4231
    %5901 = vmatmul.mubr.bf16.gmra.mrb[0].mxu0 %v4230
    %v5902 = vpop.f32.mrb[0].mxu0
    %v5903 = vadd.f32 %v5862, %v5902
    %v5904 = vpop.f32.mrb[0].mxu0
    %v5905 = vadd.f32 %v5864, %v5904
    %v5906 = vpop.f32.mrb[0].mxu0
    %v5907 = vpop.f32.mrb[0].mxu0
    %5908 = vdwg.mxu0
    %5909 = vmatprep.subr.bf16.mxu0 %v5467
    %5910 = vmatpush1.bf16.msra.mxu0 %v5466
    %5911 = vmatprep.subr.bf16.mxu0 %v5471
    %5912 = vmatpush1.bf16.msra.mxu0 %v5470
    %5913 = vmatprep.subr.bf16.mxu0 %v5475
    %5914 = vmatpush1.bf16.msra.mxu0 %v5474
    %5915 = vmatprep.subr.bf16.mxu0 %v5479
    %5916 = vmatpush1.bf16.msra.mxu0 %v5478
    %5917 = vmatprep.subr.bf16.mxu0 %v5483
    %5918 = vmatpush1.bf16.msra.mxu0 %v5482
    %5919 = vmatprep.subr.bf16.mxu0 %v5487
    %5920 = vmatpush1.bf16.msra.mxu0 %v5486
    %5921 = vmatprep.subr.bf16.mxu0 %v5491
    %5922 = vmatpush1.bf16.msra.mxu0 %v5490
    %5923 = vmatprep.subr.bf16.mxu0 %v5495
    %5924 = vmatpush1.bf16.msra.mxu0 %v5494
    %5925 = vmatprep.subr.bf16.mxu0 %v5499
    %5926 = vmatpush1.bf16.msra.mxu0 %v5498
    %5927 = vmatprep.subr.bf16.mxu0 %v5503
    %5928 = vmatpush1.bf16.msra.mxu0 %v5502
    %5929 = vmatprep.subr.bf16.mxu0 %v5507
    %5930 = vmatpush1.bf16.msra.mxu0 %v5506
    %5931 = vmatprep.subr.bf16.mxu0 %v5511
    %5932 = vmatpush1.bf16.msra.mxu0 %v5510
    %5933 = vmatprep.subr.bf16.mxu0 %v5515
    %5934 = vmatpush1.bf16.msra.mxu0 %v5514
    %5935 = vmatprep.subr.bf16.mxu0 %v5519
    %5936 = vmatpush1.bf16.msra.mxu0 %v5518
    %5937 = vmatprep.subr.bf16.mxu0 %v5523
    %5938 = vmatpush1.bf16.msra.mxu0 %v5522
    %5939 = vmatprep.subr.bf16.mxu0 %v5527
    %5940 = vmatpush1.bf16.msra.mxu0 %v5526
    %5941 = vmatprep.mubr.bf16.mxu0 %v4233
    %5942 = vmatmul.mubr.bf16.gmra.mrb[0].mxu0 %v4232
    %v5943 = vpop.f32.mrb[0].mxu0
    %v5944 = vadd.f32 %v5903, %v5943
    %v5945 = vpop.f32.mrb[0].mxu0
    %v5946 = vadd.f32 %v5905, %v5945
    %v5947 = vpop.f32.mrb[0].mxu0
    %v5948 = vpop.f32.mrb[0].mxu0
    %5949 = vdwg.mxu0
    %5950 = vmatprep.subr.bf16.mxu0 %v5277
    %5951 = vmatpush1.bf16.msra.mxu0 %v5276
    %5952 = vmatprep.subr.bf16.mxu0 %v5281
    %5953 = vmatpush1.bf16.msra.mxu0 %v5280
    %5954 = vmatprep.subr.bf16.mxu0 %v5285
    %5955 = vmatpush1.bf16.msra.mxu0 %v5284
    %5956 = vmatprep.subr.bf16.mxu0 %v5289
    %5957 = vmatpush1.bf16.msra.mxu0 %v5288
    %5958 = vmatprep.subr.bf16.mxu0 %v5293
    %5959 = vmatpush1.bf16.msra.mxu0 %v5292
    %5960 = vmatprep.subr.bf16.mxu0 %v5297
    %5961 = vmatpush1.bf16.msra.mxu0 %v5296
    %5962 = vmatprep.subr.bf16.mxu0 %v5301
    %5963 = vmatpush1.bf16.msra.mxu0 %v5300
    %5964 = vmatprep.subr.bf16.mxu0 %v5305
    %5965 = vmatpush1.bf16.msra.mxu0 %v5304
    %5966 = vmatprep.subr.bf16.mxu0 %v5309
    %5967 = vmatpush1.bf16.msra.mxu0 %v5308
    %5968 = vmatprep.subr.bf16.mxu0 %v5313
    %5969 = vmatpush1.bf16.msra.mxu0 %v5312
    %5970 = vmatprep.subr.bf16.mxu0 %v5317
    %5971 = vmatpush1.bf16.msra.mxu0 %v5316
    %5972 = vmatprep.subr.bf16.mxu0 %v5321
    %5973 = vmatpush1.bf16.msra.mxu0 %v5320
    %5974 = vmatprep.subr.bf16.mxu0 %v5325
    %5975 = vmatpush1.bf16.msra.mxu0 %v5324
    %5976 = vmatprep.subr.bf16.mxu0 %v5329
    %5977 = vmatpush1.bf16.msra.mxu0 %v5328
    %5978 = vmatprep.subr.bf16.mxu0 %v5333
    %5979 = vmatpush1.bf16.msra.mxu0 %v5332
    %5980 = vmatprep.subr.bf16.mxu0 %v5337
    %5981 = vmatpush1.bf16.msra.mxu0 %v5336
    %5982 = vmatprep.mubr.bf16.mxu0 %v4227
    %5983 = vmatmul.mubr.bf16.gmra.mrb[0].mxu0 %v4226
    %v5984 = vpop.f32.mrb[0].mxu0
    %v5985 = vadd.f32 %v4501, %v5984
    %v5986 = vpop.f32.mrb[0].mxu0
    %v5987 = vadd.f32 %v4505, %v5986
    %v5988 = vpop.f32.mrb[0].mxu0
    %v5989 = vpop.f32.mrb[0].mxu0
    %5990 = vdwg.mxu0
    %5991 = vmatprep.subr.bf16.mxu0 %v5341
    %5992 = vmatpush1.bf16.msra.mxu0 %v5340
    %5993 = vmatprep.subr.bf16.mxu0 %v5345
    %5994 = vmatpush1.bf16.msra.mxu0 %v5344
    %5995 = vmatprep.subr.bf16.mxu0 %v5349
    %5996 = vmatpush1.bf16.msra.mxu0 %v5348
    %5997 = vmatprep.subr.bf16.mxu0 %v5353
    %5998 = vmatpush1.bf16.msra.mxu0 %v5352
    %5999 = vmatprep.subr.bf16.mxu0 %v5357
    %6000 = vmatpush1.bf16.msra.mxu0 %v5356
    %6001 = vmatprep.subr.bf16.mxu0 %v5361
    %6002 = vmatpush1.bf16.msra.mxu0 %v5360
    %6003 = vmatprep.subr.bf16.mxu0 %v5365
    %6004 = vmatpush1.bf16.msra.mxu0 %v5364
    %6005 = vmatprep.subr.bf16.mxu0 %v5369
    %6006 = vmatpush1.bf16.msra.mxu0 %v5368
    %6007 = vmatprep.subr.bf16.mxu0 %v5373
    %6008 = vmatpush1.bf16.msra.mxu0 %v5372
    %6009 = vmatprep.subr.bf16.mxu0 %v5377
    %6010 = vmatpush1.bf16.msra.mxu0 %v5376
    %6011 = vmatprep.subr.bf16.mxu0 %v5381
    %6012 = vmatpush1.bf16.msra.mxu0 %v5380
    %6013 = vmatprep.subr.bf16.mxu0 %v5385
    %6014 = vmatpush1.bf16.msra.mxu0 %v5384
    %6015 = vmatprep.subr.bf16.mxu0 %v5389
    %6016 = vmatpush1.bf16.msra.mxu0 %v5388
    %6017 = vmatprep.subr.bf16.mxu0 %v5393
    %6018 = vmatpush1.bf16.msra.mxu0 %v5392
    %6019 = vmatprep.subr.bf16.mxu0 %v5397
    %6020 = vmatpush1.bf16.msra.mxu0 %v5396
    %6021 = vmatprep.subr.bf16.mxu0 %v5401
    %6022 = vmatpush1.bf16.msra.mxu0 %v5400
    %6023 = vmatprep.mubr.bf16.mxu0 %v4229
    %6024 = vmatmul.mubr.bf16.gmra.mrb[0].mxu0 %v4228
    %v6025 = vpop.f32.mrb[0].mxu0
    %v6026 = vadd.f32 %v5985, %v6025
    %v6027 = vpop.f32.mrb[0].mxu0
    %v6028 = vadd.f32 %v5987, %v6027
    %v6029 = vpop.f32.mrb[0].mxu0
    %v6030 = vpop.f32.mrb[0].mxu0
    %6031 = vdwg.mxu0
    %6032 = vmatprep.subr.bf16.mxu0 %v5405
    %6033 = vmatpush1.bf16.msra.mxu0 %v5404
    %6034 = vmatprep.subr.bf16.mxu0 %v5409
    %6035 = vmatpush1.bf16.msra.mxu0 %v5408
    %6036 = vmatprep.subr.bf16.mxu0 %v5413
    %6037 = vmatpush1.bf16.msra.mxu0 %v5412
    %6038 = vmatprep.subr.bf16.mxu0 %v5417
    %6039 = vmatpush1.bf16.msra.mxu0 %v5416
    %6040 = vmatprep.subr.bf16.mxu0 %v5421
    %6041 = vmatpush1.bf16.msra.mxu0 %v5420
    %6042 = vmatprep.subr.bf16.mxu0 %v5425
    %6043 = vmatpush1.bf16.msra.mxu0 %v5424
    %6044 = vmatprep.subr.bf16.mxu0 %v5429
    %6045 = vmatpush1.bf16.msra.mxu0 %v5428
    %6046 = vmatprep.subr.bf16.mxu0 %v5433
    %6047 = vmatpush1.bf16.msra.mxu0 %v5432
    %6048 = vmatprep.subr.bf16.mxu0 %v5437
    %6049 = vmatpush1.bf16.msra.mxu0 %v5436
    %6050 = vmatprep.subr.bf16.mxu0 %v5441
    %6051 = vmatpush1.bf16.msra.mxu0 %v5440
    %6052 = vmatprep.subr.bf16.mxu0 %v5445
    %6053 = vmatpush1.bf16.msra.mxu0 %v5444
    %6054 = vmatprep.subr.bf16.mxu0 %v5449
    %6055 = vmatpush1.bf16.msra.mxu0 %v5448
    %6056 = vmatprep.subr.bf16.mxu0 %v5453
    %6057 = vmatpush1.bf16.msra.mxu0 %v5452
    %6058 = vmatprep.subr.bf16.mxu0 %v5457
    %6059 = vmatpush1.bf16.msra.mxu0 %v5456
    %6060 = vmatprep.subr.bf16.mxu0 %v5461
    %6061 = vmatpush1.bf16.msra.mxu0 %v5460
    %6062 = vmatprep.subr.bf16.mxu0 %v5465
    %6063 = vmatpush1.bf16.msra.mxu0 %v5464
    %6064 = vmatprep.mubr.bf16.mxu0 %v4231
    %6065 = vmatmul.mubr.bf16.gmra.mrb[0].mxu0 %v4230
    %v6066 = vpop.f32.mrb[0].mxu0
    %v6067 = vadd.f32 %v6026, %v6066
    %v6068 = vpop.f32.mrb[0].mxu0
    %v6069 = vadd.f32 %v6028, %v6068
    %v6070 = vpop.f32.mrb[0].mxu0
    %v6071 = vpop.f32.mrb[0].mxu0
    %6072 = vdwg.mxu0
    %6073 = vmatprep.subr.bf16.mxu0 %v5469
    %6074 = vmatpush1.bf16.msra.mxu0 %v5468
    %6075 = vmatprep.subr.bf16.mxu0 %v5473
    %6076 = vmatpush1.bf16.msra.mxu0 %v5472
    %6077 = vmatprep.subr.bf16.mxu0 %v5477
    %6078 = vmatpush1.bf16.msra.mxu0 %v5476
    %6079 = vmatprep.subr.bf16.mxu0 %v5481
    %6080 = vmatpush1.bf16.msra.mxu0 %v5480
    %6081 = vmatprep.subr.bf16.mxu0 %v5485
    %6082 = vmatpush1.bf16.msra.mxu0 %v5484
    %6083 = vmatprep.subr.bf16.mxu0 %v5489
    %6084 = vmatpush1.bf16.msra.mxu0 %v5488
    %6085 = vmatprep.subr.bf16.mxu0 %v5493
    %6086 = vmatpush1.bf16.msra.mxu0 %v5492
    %6087 = vmatprep.subr.bf16.mxu0 %v5497
    %6088 = vmatpush1.bf16.msra.mxu0 %v5496
    %6089 = vmatprep.subr.bf16.mxu0 %v5501
    %6090 = vmatpush1.bf16.msra.mxu0 %v5500
    %6091 = vmatprep.subr.bf16.mxu0 %v5505
    %6092 = vmatpush1.bf16.msra.mxu0 %v5504
    %6093 = vmatprep.subr.bf16.mxu0 %v5509
    %6094 = vmatpush1.bf16.msra.mxu0 %v5508
    %6095 = vmatprep.subr.bf16.mxu0 %v5513
    %6096 = vmatpush1.bf16.msra.mxu0 %v5512
    %6097 = vmatprep.subr.bf16.mxu0 %v5517
    %6098 = vmatpush1.bf16.msra.mxu0 %v5516
    %6099 = vmatprep.subr.bf16.mxu0 %v5521
    %6100 = vmatpush1.bf16.msra.mxu0 %v5520
    %6101 = vmatprep.subr.bf16.mxu0 %v5525
    %6102 = vmatpush1.bf16.msra.mxu0 %v5524
    %6103 = vmatprep.subr.bf16.mxu0 %v5529
    %6104 = vmatpush1.bf16.msra.mxu0 %v5528
    %6105 = vmatprep.mubr.bf16.mxu0 %v4233
    %6106 = vmatmul.mubr.bf16.gmra.mrb[0].mxu0 %v4232
    %v6107 = vpop.f32.mrb[0].mxu0
    %v6108 = vadd.f32 %v6067, %v6107
    %v6109 = vpop.f32.mrb[0].mxu0
    %v6110 = vadd.f32 %v6069, %v6109
    %v6111 = vpop.f32.mrb[0].mxu0
    %v6112 = vpop.f32.mrb[0].mxu0
    %6113 = vdwg.mxu0
    %v6114 = vmax.f32 %v5944, 0.0
    %v6115 = vmax.f32 %v5946, 0.0
    %v6116 = vmax.f32 %v6108, 0.0
    %v6117 = vmax.f32 %v6110, 0.0
    %v6118 = vpack.c.bf16 %v6114, %v6114
    %v6119 = vpack.c.bf16 %v6115, %v6115
    %v6120 = vpack.c.bf16 %v6116, %v6116
    %v6121 = vpack.c.bf16 %v6117, %v6117
    %v6122 = vld [vmem:[#allocation10] sm:$0xff]
    %v6123 = vld [vmem:[#allocation10 + $0x8] sm:$0xff]
    %v6124 = vld [vmem:[#allocation10 + $0x10] sm:$0xff]
    %v6125 = vld [vmem:[#allocation10 + $0x18] sm:$0xff]
    %v6126 = vld [vmem:[#allocation10 + $0x20] sm:$0xff]
    %v6127 = vld [vmem:[#allocation10 + $0x28] sm:$0xff]
    %v6128 = vld [vmem:[#allocation10 + $0x30] sm:$0xff]
    %v6129 = vld [vmem:[#allocation10 + $0x38] sm:$0xff]
    %v6130 = vld [vmem:[#allocation10 + $0x40] sm:$0xff]
    %v6131 = vld [vmem:[#allocation10 + $0x48] sm:$0xff]
    %v6132 = vld [vmem:[#allocation10 + $0x50] sm:$0xff]
    %v6133 = vld [vmem:[#allocation10 + $0x58] sm:$0xff]
    %v6134 = vld [vmem:[#allocation10 + $0x60] sm:$0xff]
    %v6135 = vld [vmem:[#allocation10 + $0x68] sm:$0xff]
    %v6136 = vld [vmem:[#allocation10 + $0x70] sm:$0xff]
    %v6137 = vld [vmem:[#allocation10 + $0x78] sm:$0xff]
    %v6138 = vld [vmem:[#allocation10 + $0x80] sm:$0xff]
    %v6139 = vld [vmem:[#allocation10 + $0x88] sm:$0xff]
    %v6140 = vld [vmem:[#allocation10 + $0x90] sm:$0xff]
    %v6141 = vld [vmem:[#allocation10 + $0x98] sm:$0xff]
    %v6142 = vld [vmem:[#allocation10 + $0xa0] sm:$0xff]
    %v6143 = vld [vmem:[#allocation10 + $0xa8] sm:$0xff]
    %v6144 = vld [vmem:[#allocation10 + $0xb0] sm:$0xff]
    %v6145 = vld [vmem:[#allocation10 + $0xb8] sm:$0xff]
    %v6146 = vld [vmem:[#allocation10 + $0xc0] sm:$0xff]
    %v6147 = vld [vmem:[#allocation10 + $0xc8] sm:$0xff]
    %v6148 = vld [vmem:[#allocation10 + $0xd0] sm:$0xff]
    %v6149 = vld [vmem:[#allocation10 + $0xd8] sm:$0xff]
    %v6150 = vld [vmem:[#allocation10 + $0xe0] sm:$0xff]
    %v6151 = vld [vmem:[#allocation10 + $0xe8] sm:$0xff]
    %v6152 = vld [vmem:[#allocation10 + $0xf0] sm:$0xff]
    %v6153 = vld [vmem:[#allocation10 + $0xf8] sm:$0xff]
    %v6154 = vld [vmem:[#allocation10 + $0x100] sm:$0xff]
    %v6155 = vld [vmem:[#allocation10 + $0x108] sm:$0xff]
    %v6156 = vld [vmem:[#allocation10 + $0x110] sm:$0xff]
    %v6157 = vld [vmem:[#allocation10 + $0x118] sm:$0xff]
    %v6158 = vld [vmem:[#allocation10 + $0x120] sm:$0xff]
    %v6159 = vld [vmem:[#allocation10 + $0x128] sm:$0xff]
    %v6160 = vld [vmem:[#allocation10 + $0x130] sm:$0xff]
    %v6161 = vld [vmem:[#allocation10 + $0x138] sm:$0xff]
    %v6162 = vld [vmem:[#allocation10 + $0x140] sm:$0xff]
    %v6163 = vld [vmem:[#allocation10 + $0x148] sm:$0xff]
    %v6164 = vld [vmem:[#allocation10 + $0x150] sm:$0xff]
    %v6165 = vld [vmem:[#allocation10 + $0x158] sm:$0xff]
    %v6166 = vld [vmem:[#allocation10 + $0x160] sm:$0xff]
    %v6167 = vld [vmem:[#allocation10 + $0x168] sm:$0xff]
    %v6168 = vld [vmem:[#allocation10 + $0x170] sm:$0xff]
    %v6169 = vld [vmem:[#allocation10 + $0x178] sm:$0xff]
    %v6170 = vld [vmem:[#allocation10 + $0x180] sm:$0xff]
    %v6171 = vld [vmem:[#allocation10 + $0x188] sm:$0xff]
    %v6172 = vld [vmem:[#allocation10 + $0x190] sm:$0xff]
    %v6173 = vld [vmem:[#allocation10 + $0x198] sm:$0xff]
    %v6174 = vld [vmem:[#allocation10 + $0x1a0] sm:$0xff]
    %v6175 = vld [vmem:[#allocation10 + $0x1a8] sm:$0xff]
    %v6176 = vld [vmem:[#allocation10 + $0x1b0] sm:$0xff]
    %v6177 = vld [vmem:[#allocation10 + $0x1b8] sm:$0xff]
    %v6178 = vld [vmem:[#allocation10 + $0x1c0] sm:$0xff]
    %v6179 = vld [vmem:[#allocation10 + $0x1c8] sm:$0xff]
    %v6180 = vld [vmem:[#allocation10 + $0x1d0] sm:$0xff]
    %v6181 = vld [vmem:[#allocation10 + $0x1d8] sm:$0xff]
    %v6182 = vld [vmem:[#allocation10 + $0x1e0] sm:$0xff]
    %v6183 = vld [vmem:[#allocation10 + $0x1e8] sm:$0xff]
    %v6184 = vld [vmem:[#allocation10 + $0x1f0] sm:$0xff]
    %v6185 = vld [vmem:[#allocation10 + $0x1f8] sm:$0xff]
    %v6186 = vlaneseq
    %v6187 = vshrl.u32 %v6186, 7
    %v6188 = vsub.s32 3, %v6187
    %v6189 = vrot.slane %v137, %v6188
    %v6190 = vlaneseq
    %v6191 = vshrl.u32 %v6190, 7
    %v6192 = vsub.s32 3, %v6191
    %v6193 = vrot.slane %v138, %v6192
    %v6258 = vunpack.c.l.b16 %v6122
    %v6259 = vunpack.c.h.b16 %v6122
    %v6260 = vunpack.c.l.b16 %v6123
    %v6261 = vunpack.c.h.b16 %v6123
    %v6262 = vunpack.c.l.b16 %v6124
    %v6263 = vunpack.c.h.b16 %v6124
    %v6264 = vunpack.c.l.b16 %v6125
    %v6265 = vunpack.c.h.b16 %v6125
    %v6266 = vunpack.c.l.b16 %v6126
    %v6267 = vunpack.c.h.b16 %v6126
    %v6268 = vunpack.c.l.b16 %v6127
    %v6269 = vunpack.c.h.b16 %v6127
    %v6270 = vunpack.c.l.b16 %v6128
    %v6271 = vunpack.c.h.b16 %v6128
    %v6272 = vunpack.c.l.b16 %v6129
    %v6273 = vunpack.c.h.b16 %v6129
    %v6274 = vunpack.c.l.b16 %v6130
    %v6275 = vunpack.c.h.b16 %v6130
    %v6276 = vunpack.c.l.b16 %v6131
    %v6277 = vunpack.c.h.b16 %v6131
    %v6278 = vunpack.c.l.b16 %v6132
    %v6279 = vunpack.c.h.b16 %v6132
    %v6280 = vunpack.c.l.b16 %v6133
    %v6281 = vunpack.c.h.b16 %v6133
    %v6282 = vunpack.c.l.b16 %v6134
    %v6283 = vunpack.c.h.b16 %v6134
    %v6284 = vunpack.c.l.b16 %v6135
    %v6285 = vunpack.c.h.b16 %v6135
    %v6286 = vunpack.c.l.b16 %v6136
    %v6287 = vunpack.c.h.b16 %v6136
    %v6288 = vunpack.c.l.b16 %v6137
    %v6289 = vunpack.c.h.b16 %v6137
    %v6290 = vunpack.c.l.b16 %v6138
    %v6291 = vunpack.c.h.b16 %v6138
    %v6292 = vunpack.c.l.b16 %v6139
    %v6293 = vunpack.c.h.b16 %v6139
    %v6294 = vunpack.c.l.b16 %v6140
    %v6295 = vunpack.c.h.b16 %v6140
    %v6296 = vunpack.c.l.b16 %v6141
    %v6297 = vunpack.c.h.b16 %v6141
    %v6298 = vunpack.c.l.b16 %v6142
    %v6299 = vunpack.c.h.b16 %v6142
    %v6300 = vunpack.c.l.b16 %v6143
    %v6301 = vunpack.c.h.b16 %v6143
    %v6302 = vunpack.c.l.b16 %v6144
    %v6303 = vunpack.c.h.b16 %v6144
    %v6304 = vunpack.c.l.b16 %v6145
    %v6305 = vunpack.c.h.b16 %v6145
    %v6306 = vunpack.c.l.b16 %v6146
    %v6307 = vunpack.c.h.b16 %v6146
    %v6308 = vunpack.c.l.b16 %v6147
    %v6309 = vunpack.c.h.b16 %v6147
    %v6310 = vunpack.c.l.b16 %v6148
    %v6311 = vunpack.c.h.b16 %v6148
    %v6312 = vunpack.c.l.b16 %v6149
    %v6313 = vunpack.c.h.b16 %v6149
    %v6314 = vunpack.c.l.b16 %v6150
    %v6315 = vunpack.c.h.b16 %v6150
    %v6316 = vunpack.c.l.b16 %v6151
    %v6317 = vunpack.c.h.b16 %v6151
    %v6318 = vunpack.c.l.b16 %v6152
    %v6319 = vunpack.c.h.b16 %v6152
    %v6320 = vunpack.c.l.b16 %v6153
    %v6321 = vunpack.c.h.b16 %v6153
    %v6322 = vunpack.c.l.b16 %v6154
    %v6323 = vunpack.c.h.b16 %v6154
    %v6324 = vunpack.c.l.b16 %v6155
    %v6325 = vunpack.c.h.b16 %v6155
    %v6326 = vunpack.c.l.b16 %v6156
    %v6327 = vunpack.c.h.b16 %v6156
    %v6328 = vunpack.c.l.b16 %v6157
    %v6329 = vunpack.c.h.b16 %v6157
    %v6330 = vunpack.c.l.b16 %v6158
    %v6331 = vunpack.c.h.b16 %v6158
    %v6332 = vunpack.c.l.b16 %v6159
    %v6333 = vunpack.c.h.b16 %v6159
    %v6334 = vunpack.c.l.b16 %v6160
    %v6335 = vunpack.c.h.b16 %v6160
    %v6336 = vunpack.c.l.b16 %v6161
    %v6337 = vunpack.c.h.b16 %v6161
    %v6338 = vunpack.c.l.b16 %v6162
    %v6339 = vunpack.c.h.b16 %v6162
    %v6340 = vunpack.c.l.b16 %v6163
    %v6341 = vunpack.c.h.b16 %v6163
    %v6342 = vunpack.c.l.b16 %v6164
    %v6343 = vunpack.c.h.b16 %v6164
    %v6344 = vunpack.c.l.b16 %v6165
    %v6345 = vunpack.c.h.b16 %v6165
    %v6346 = vunpack.c.l.b16 %v6166
    %v6347 = vunpack.c.h.b16 %v6166
    %v6348 = vunpack.c.l.b16 %v6167
    %v6349 = vunpack.c.h.b16 %v6167
    %v6350 = vunpack.c.l.b16 %v6168
    %v6351 = vunpack.c.h.b16 %v6168
    %v6352 = vunpack.c.l.b16 %v6169
    %v6353 = vunpack.c.h.b16 %v6169
    %v6354 = vunpack.c.l.b16 %v6170
    %v6355 = vunpack.c.h.b16 %v6170
    %v6356 = vunpack.c.l.b16 %v6171
    %v6357 = vunpack.c.h.b16 %v6171
    %v6358 = vunpack.c.l.b16 %v6172
    %v6359 = vunpack.c.h.b16 %v6172
    %v6360 = vunpack.c.l.b16 %v6173
    %v6361 = vunpack.c.h.b16 %v6173
    %v6362 = vunpack.c.l.b16 %v6174
    %v6363 = vunpack.c.h.b16 %v6174
    %v6364 = vunpack.c.l.b16 %v6175
    %v6365 = vunpack.c.h.b16 %v6175
    %v6366 = vunpack.c.l.b16 %v6176
    %v6367 = vunpack.c.h.b16 %v6176
    %v6368 = vunpack.c.l.b16 %v6177
    %v6369 = vunpack.c.h.b16 %v6177
    %v6370 = vunpack.c.l.b16 %v6178
    %v6371 = vunpack.c.h.b16 %v6178
    %v6372 = vunpack.c.l.b16 %v6179
    %v6373 = vunpack.c.h.b16 %v6179
    %v6374 = vunpack.c.l.b16 %v6180
    %v6375 = vunpack.c.h.b16 %v6180
    %v6376 = vunpack.c.l.b16 %v6181
    %v6377 = vunpack.c.h.b16 %v6181
    %v6378 = vunpack.c.l.b16 %v6182
    %v6379 = vunpack.c.h.b16 %v6182
    %v6380 = vunpack.c.l.b16 %v6183
    %v6381 = vunpack.c.h.b16 %v6183
    %v6382 = vunpack.c.l.b16 %v6184
    %v6383 = vunpack.c.h.b16 %v6184
    %v6384 = vunpack.c.l.b16 %v6185
    %v6385 = vunpack.c.h.b16 %v6185
    %v6386 = vpack.c.b16 %v6260, %v6258
    %v6387 = vpack.c.b16 %v6261, %v6259
    %v6388 = vpack.c.b16 %v6264, %v6262
    %v6389 = vpack.c.b16 %v6265, %v6263
    %v6390 = vpack.c.b16 %v6268, %v6266
    %v6391 = vpack.c.b16 %v6269, %v6267
    %v6392 = vpack.c.b16 %v6272, %v6270
    %v6393 = vpack.c.b16 %v6273, %v6271
    %v6394 = vpack.c.b16 %v6276, %v6274
    %v6395 = vpack.c.b16 %v6277, %v6275
    %v6396 = vpack.c.b16 %v6280, %v6278
    %v6397 = vpack.c.b16 %v6281, %v6279
    %v6398 = vpack.c.b16 %v6284, %v6282
    %v6399 = vpack.c.b16 %v6285, %v6283
    %v6400 = vpack.c.b16 %v6288, %v6286
    %v6401 = vpack.c.b16 %v6289, %v6287
    %v6402 = vpack.c.b16 %v6292, %v6290
    %v6403 = vpack.c.b16 %v6293, %v6291
    %v6404 = vpack.c.b16 %v6296, %v6294
    %v6405 = vpack.c.b16 %v6297, %v6295
    %v6406 = vpack.c.b16 %v6300, %v6298
    %v6407 = vpack.c.b16 %v6301, %v6299
    %v6408 = vpack.c.b16 %v6304, %v6302
    %v6409 = vpack.c.b16 %v6305, %v6303
    %v6410 = vpack.c.b16 %v6308, %v6306
    %v6411 = vpack.c.b16 %v6309, %v6307
    %v6412 = vpack.c.b16 %v6312, %v6310
    %v6413 = vpack.c.b16 %v6313, %v6311
    %v6414 = vpack.c.b16 %v6316, %v6314
    %v6415 = vpack.c.b16 %v6317, %v6315
    %v6416 = vpack.c.b16 %v6320, %v6318
    %v6417 = vpack.c.b16 %v6321, %v6319
    %v6418 = vpack.c.b16 %v6324, %v6322
    %v6419 = vpack.c.b16 %v6325, %v6323
    %v6420 = vpack.c.b16 %v6328, %v6326
    %v6421 = vpack.c.b16 %v6329, %v6327
    %v6422 = vpack.c.b16 %v6332, %v6330
    %v6423 = vpack.c.b16 %v6333, %v6331
    %v6424 = vpack.c.b16 %v6336, %v6334
    %v6425 = vpack.c.b16 %v6337, %v6335
    %v6426 = vpack.c.b16 %v6340, %v6338
    %v6427 = vpack.c.b16 %v6341, %v6339
    %v6428 = vpack.c.b16 %v6344, %v6342
    %v6429 = vpack.c.b16 %v6345, %v6343
    %v6430 = vpack.c.b16 %v6348, %v6346
    %v6431 = vpack.c.b16 %v6349, %v6347
    %v6432 = vpack.c.b16 %v6352, %v6350
    %v6433 = vpack.c.b16 %v6353, %v6351
    %v6434 = vpack.c.b16 %v6356, %v6354
    %v6435 = vpack.c.b16 %v6357, %v6355
    %v6436 = vpack.c.b16 %v6360, %v6358
    %v6437 = vpack.c.b16 %v6361, %v6359
    %v6438 = vpack.c.b16 %v6364, %v6362
    %v6439 = vpack.c.b16 %v6365, %v6363
    %v6440 = vpack.c.b16 %v6368, %v6366
    %v6441 = vpack.c.b16 %v6369, %v6367
    %v6442 = vpack.c.b16 %v6372, %v6370
    %v6443 = vpack.c.b16 %v6373, %v6371
    %v6444 = vpack.c.b16 %v6376, %v6374
    %v6445 = vpack.c.b16 %v6377, %v6375
    %v6446 = vpack.c.b16 %v6380, %v6378
    %v6447 = vpack.c.b16 %v6381, %v6379
    %v6448 = vpack.c.b16 %v6384, %v6382
    %v6449 = vpack.c.b16 %v6385, %v6383
    %6514 = vmatprep.subr.bf16.mxu0 %v6387
    %6515 = vmatpush1.bf16.msra.mxu0 %v6386
    %6516 = vmatprep.subr.bf16.mxu0 %v6389
    %6517 = vmatpush1.bf16.msra.mxu0 %v6388
    %6518 = vmatprep.subr.bf16.mxu0 %v6391
    %6519 = vmatpush1.bf16.msra.mxu0 %v6390
    %6520 = vmatprep.subr.bf16.mxu0 %v6393
    %6521 = vmatpush1.bf16.msra.mxu0 %v6392
    %6522 = vmatprep.subr.bf16.mxu0 %v6395
    %6523 = vmatpush1.bf16.msra.mxu0 %v6394
    %6524 = vmatprep.subr.bf16.mxu0 %v6397
    %6525 = vmatpush1.bf16.msra.mxu0 %v6396
    %6526 = vmatprep.subr.bf16.mxu0 %v6399
    %6527 = vmatpush1.bf16.msra.mxu0 %v6398
    %6528 = vmatprep.subr.bf16.mxu0 %v6401
    %6529 = vmatpush1.bf16.msra.mxu0 %v6400
    %6530 = vmatprep.subr.bf16.mxu0 %v6403
    %6531 = vmatpush1.bf16.msra.mxu0 %v6402
    %6532 = vmatprep.subr.bf16.mxu0 %v6405
    %6533 = vmatpush1.bf16.msra.mxu0 %v6404
    %6534 = vmatprep.subr.bf16.mxu0 %v6407
    %6535 = vmatpush1.bf16.msra.mxu0 %v6406
    %6536 = vmatprep.subr.bf16.mxu0 %v6409
    %6537 = vmatpush1.bf16.msra.mxu0 %v6408
    %6538 = vmatprep.subr.bf16.mxu0 %v6411
    %6539 = vmatpush1.bf16.msra.mxu0 %v6410
    %6540 = vmatprep.subr.bf16.mxu0 %v6413
    %6541 = vmatpush1.bf16.msra.mxu0 %v6412
    %6542 = vmatprep.subr.bf16.mxu0 %v6415
    %6543 = vmatpush1.bf16.msra.mxu0 %v6414
    %6544 = vmatprep.subr.bf16.mxu0 %v6417
    %6545 = vmatpush1.bf16.msra.mxu0 %v6416
    %6546 = vmatprep.mubr.bf16.mxu0 %v6119
    %6547 = vmatmul.mubr.bf16.gmra.mrb[0].mxu0 %v6118
    %v6548 = vpop.f32.mrb[0].mxu0
    %v6549 = vadd.f32 %v6189, %v6548
    %v6550 = vpop.f32.mrb[0].mxu0
    %v6551 = vadd.f32 %v6193, %v6550
    %v6552 = vpop.f32.mrb[0].mxu0
    %v6553 = vpop.f32.mrb[0].mxu0
    %6554 = vdwg.mxu0
    %6555 = vmatprep.subr.bf16.mxu0 %v6419
    %6556 = vmatpush1.bf16.msra.mxu0 %v6418
    %6557 = vmatprep.subr.bf16.mxu0 %v6421
    %6558 = vmatpush1.bf16.msra.mxu0 %v6420
    %6559 = vmatprep.subr.bf16.mxu0 %v6423
    %6560 = vmatpush1.bf16.msra.mxu0 %v6422
    %6561 = vmatprep.subr.bf16.mxu0 %v6425
    %6562 = vmatpush1.bf16.msra.mxu0 %v6424
    %6563 = vmatprep.subr.bf16.mxu0 %v6427
    %6564 = vmatpush1.bf16.msra.mxu0 %v6426
    %6565 = vmatprep.subr.bf16.mxu0 %v6429
    %6566 = vmatpush1.bf16.msra.mxu0 %v6428
    %6567 = vmatprep.subr.bf16.mxu0 %v6431
    %6568 = vmatpush1.bf16.msra.mxu0 %v6430
    %6569 = vmatprep.subr.bf16.mxu0 %v6433
    %6570 = vmatpush1.bf16.msra.mxu0 %v6432
    %6571 = vmatprep.subr.bf16.mxu0 %v6435
    %6572 = vmatpush1.bf16.msra.mxu0 %v6434
    %6573 = vmatprep.subr.bf16.mxu0 %v6437
    %6574 = vmatpush1.bf16.msra.mxu0 %v6436
    %6575 = vmatprep.subr.bf16.mxu0 %v6439
    %6576 = vmatpush1.bf16.msra.mxu0 %v6438
    %6577 = vmatprep.subr.bf16.mxu0 %v6441
    %6578 = vmatpush1.bf16.msra.mxu0 %v6440
    %6579 = vmatprep.subr.bf16.mxu0 %v6443
    %6580 = vmatpush1.bf16.msra.mxu0 %v6442
    %6581 = vmatprep.subr.bf16.mxu0 %v6445
    %6582 = vmatpush1.bf16.msra.mxu0 %v6444
    %6583 = vmatprep.subr.bf16.mxu0 %v6447
    %6584 = vmatpush1.bf16.msra.mxu0 %v6446
    %6585 = vmatprep.subr.bf16.mxu0 %v6449
    %6586 = vmatpush1.bf16.msra.mxu0 %v6448
    %6587 = vmatprep.mubr.bf16.mxu0 %v6121
    %6588 = vmatmul.mubr.bf16.gmra.mrb[0].mxu0 %v6120
    %v6589 = vpop.f32.mrb[0].mxu0
    %v6590 = vadd.f32 %v6549, %v6589
    %v6591 = vpop.f32.mrb[0].mxu0
    %v6592 = vadd.f32 %v6551, %v6591
    %v6593 = vpop.f32.mrb[0].mxu0
    %v6594 = vpop.f32.mrb[0].mxu0
    %6595 = vdwg.mxu0
    %v6596 = vmax.f32 %v6590, 0.0
    %v6597 = vmax.f32 %v6592, 0.0
    %v6598 = vpack.c.bf16 %v6596, %v6596
    %v6599 = vpack.c.bf16 %v6597, %v6597
    %v6600 = vld [vmem:[#allocation11] sm:$0xf]
    %v6601 = vld [vmem:[#allocation11 + $0x4] sm:$0xf]
    %v6602 = vld [vmem:[#allocation11 + $0x8] sm:$0xf]
    %v6603 = vld [vmem:[#allocation11 + $0xc] sm:$0xf]
    %v6604 = vld [vmem:[#allocation11 + $0x10] sm:$0xf]
    %v6605 = vld [vmem:[#allocation11 + $0x14] sm:$0xf]
    %v6606 = vld [vmem:[#allocation11 + $0x18] sm:$0xf]
    %v6607 = vld [vmem:[#allocation11 + $0x1c] sm:$0xf]
    %v6608 = vld [vmem:[#allocation11 + $0x20] sm:$0xf]
    %v6609 = vld [vmem:[#allocation11 + $0x24] sm:$0xf]
    %v6610 = vld [vmem:[#allocation11 + $0x28] sm:$0xf]
    %v6611 = vld [vmem:[#allocation11 + $0x2c] sm:$0xf]
    %v6612 = vld [vmem:[#allocation11 + $0x30] sm:$0xf]
    %v6613 = vld [vmem:[#allocation11 + $0x34] sm:$0xf]
    %v6614 = vld [vmem:[#allocation11 + $0x38] sm:$0xf]
    %v6615 = vld [vmem:[#allocation11 + $0x3c] sm:$0xf]
    %v6616 = vld [vmem:[#allocation11 + $0x40] sm:$0xf]
    %v6617 = vld [vmem:[#allocation11 + $0x44] sm:$0xf]
    %v6618 = vld [vmem:[#allocation11 + $0x48] sm:$0xf]
    %v6619 = vld [vmem:[#allocation11 + $0x4c] sm:$0xf]
    %v6620 = vld [vmem:[#allocation11 + $0x50] sm:$0xf]
    %v6621 = vld [vmem:[#allocation11 + $0x54] sm:$0xf]
    %v6622 = vld [vmem:[#allocation11 + $0x58] sm:$0xf]
    %v6623 = vld [vmem:[#allocation11 + $0x5c] sm:$0xf]
    %v6624 = vld [vmem:[#allocation11 + $0x60] sm:$0xf]
    %v6625 = vld [vmem:[#allocation11 + $0x64] sm:$0xf]
    %v6626 = vld [vmem:[#allocation11 + $0x68] sm:$0xf]
    %v6627 = vld [vmem:[#allocation11 + $0x6c] sm:$0xf]
    %v6628 = vld [vmem:[#allocation11 + $0x70] sm:$0xf]
    %v6629 = vld [vmem:[#allocation11 + $0x74] sm:$0xf]
    %v6630 = vld [vmem:[#allocation11 + $0x78] sm:$0xf]
    %v6631 = vld [vmem:[#allocation11 + $0x7c] sm:$0xf]
    %v6632 = vlaneseq
    %v6633 = vshrl.u32 %v6632, 7
    %v6634 = vsub.s32 4, %v6633
    %v6635 = vrot.slane %v137, %v6634
    %v6668 = vunpack.c.l.b16 %v6600
    %v6669 = vunpack.c.l.b16 %v6601
    %v6670 = vunpack.c.l.b16 %v6602
    %v6671 = vunpack.c.l.b16 %v6603
    %v6672 = vunpack.c.l.b16 %v6604
    %v6673 = vunpack.c.l.b16 %v6605
    %v6674 = vunpack.c.l.b16 %v6606
    %v6675 = vunpack.c.l.b16 %v6607
    %v6676 = vunpack.c.l.b16 %v6608
    %v6677 = vunpack.c.l.b16 %v6609
    %v6678 = vunpack.c.l.b16 %v6610
    %v6679 = vunpack.c.l.b16 %v6611
    %v6680 = vunpack.c.l.b16 %v6612
    %v6681 = vunpack.c.l.b16 %v6613
    %v6682 = vunpack.c.l.b16 %v6614
    %v6683 = vunpack.c.l.b16 %v6615
    %v6684 = vunpack.c.l.b16 %v6616
    %v6685 = vunpack.c.l.b16 %v6617
    %v6686 = vunpack.c.l.b16 %v6618
    %v6687 = vunpack.c.l.b16 %v6619
    %v6688 = vunpack.c.l.b16 %v6620
    %v6689 = vunpack.c.l.b16 %v6621
    %v6690 = vunpack.c.l.b16 %v6622
    %v6691 = vunpack.c.l.b16 %v6623
    %v6692 = vunpack.c.l.b16 %v6624
    %v6693 = vunpack.c.l.b16 %v6625
    %v6694 = vunpack.c.l.b16 %v6626
    %v6695 = vunpack.c.l.b16 %v6627
    %v6696 = vunpack.c.l.b16 %v6628
    %v6697 = vunpack.c.l.b16 %v6629
    %v6698 = vunpack.c.l.b16 %v6630
    %v6699 = vunpack.c.l.b16 %v6631
    %v6700 = vpack.c.b16 %v6669, %v6668
    %v6701 = vpack.c.b16 %v6671, %v6670
    %v6702 = vpack.c.b16 %v6673, %v6672
    %v6703 = vpack.c.b16 %v6675, %v6674
    %v6704 = vpack.c.b16 %v6677, %v6676
    %v6705 = vpack.c.b16 %v6679, %v6678
    %v6706 = vpack.c.b16 %v6681, %v6680
    %v6707 = vpack.c.b16 %v6683, %v6682
    %v6708 = vpack.c.b16 %v6685, %v6684
    %v6709 = vpack.c.b16 %v6687, %v6686
    %v6710 = vpack.c.b16 %v6689, %v6688
    %v6711 = vpack.c.b16 %v6691, %v6690
    %v6712 = vpack.c.b16 %v6693, %v6692
    %v6713 = vpack.c.b16 %v6695, %v6694
    %v6714 = vpack.c.b16 %v6697, %v6696
    %v6715 = vpack.c.b16 %v6699, %v6698
    %6732 = vmatprep.subr.bf16.mxu0 0
    %6733 = vmatpush1.bf16.msra.mxu0 %v6700
    %6734 = vmatprep.subr.bf16.mxu0 0
    %6735 = vmatpush1.bf16.msra.mxu0 %v6701
    %6736 = vmatprep.subr.bf16.mxu0 0
    %6737 = vmatpush1.bf16.msra.mxu0 %v6702
    %6738 = vmatprep.subr.bf16.mxu0 0
    %6739 = vmatpush1.bf16.msra.mxu0 %v6703
    %6740 = vmatprep.subr.bf16.mxu0 0
    %6741 = vmatpush1.bf16.msra.mxu0 %v6704
    %6742 = vmatprep.subr.bf16.mxu0 0
    %6743 = vmatpush1.bf16.msra.mxu0 %v6705
    %6744 = vmatprep.subr.bf16.mxu0 0
    %6745 = vmatpush1.bf16.msra.mxu0 %v6706
    %6746 = vmatprep.subr.bf16.mxu0 0
    %6747 = vmatpush1.bf16.msra.mxu0 %v6707
    %6748 = vmatprep.subr.bf16.mxu0 0
    %6749 = vmatpush1.bf16.msra.mxu0 %v6708
    %6750 = vmatprep.subr.bf16.mxu0 0
    %6751 = vmatpush1.bf16.msra.mxu0 %v6709
    %6752 = vmatprep.subr.bf16.mxu0 0
    %6753 = vmatpush1.bf16.msra.mxu0 %v6710
    %6754 = vmatprep.subr.bf16.mxu0 0
    %6755 = vmatpush1.bf16.msra.mxu0 %v6711
    %6756 = vmatprep.subr.bf16.mxu0 0
    %6757 = vmatpush1.bf16.msra.mxu0 %v6712
    %6758 = vmatprep.subr.bf16.mxu0 0
    %6759 = vmatpush1.bf16.msra.mxu0 %v6713
    %6760 = vmatprep.subr.bf16.mxu0 0
    %6761 = vmatpush1.bf16.msra.mxu0 %v6714
    %6762 = vmatprep.subr.bf16.mxu0 0
    %6763 = vmatpush1.bf16.msra.mxu0 %v6715
    %6764 = vmatprep.mubr.bf16.mxu0 %v6599
    %6765 = vmatmul.mubr.bf16.gmra.mrb[0].mxu0 %v6598
    %v6766 = vpop.f32.mrb[0].mxu0
    %v6767 = vadd.f32 %v6635, %v6766
    %v6768 = vpop.f32.mrb[0].mxu0
    %v6769 = vpop.f32.mrb[0].mxu0
    %v6770 = vpop.f32.mrb[0].mxu0
    %6771 = vdwg.mxu0
    %v6772 = vmax.f32 %v6767, 0.0
    %v6773 = vpack.c.bf16 %v6772, %v6772
    %v6774 = vld [vmem:[#allocation13] sm:$0xf]
    %v6775 = vld [vmem:[#allocation13 + $0x4] sm:$0xf]
    %v6776 = vld [vmem:[#allocation13 + $0x8] sm:$0xf]
    %v6777 = vld [vmem:[#allocation13 + $0xc] sm:$0xf]
    %v6778 = vld [vmem:[#allocation13 + $0x10] sm:$0xf]
    %v6779 = vld [vmem:[#allocation13 + $0x14] sm:$0xf]
    %v6780 = vld [vmem:[#allocation13 + $0x18] sm:$0xf]
    %v6781 = vld [vmem:[#allocation13 + $0x1c] sm:$0xf]
    %v6782 = vld [vmem:[#allocation13 + $0x20] sm:$0xf]
    %v6783 = vld [vmem:[#allocation13 + $0x24] sm:$0xf]
    %v6784 = vld [vmem:[#allocation13 + $0x28] sm:$0xf]
    %v6785 = vld [vmem:[#allocation13 + $0x2c] sm:$0xf]
    %v6786 = vld [vmem:[#allocation13 + $0x30] sm:$0xf]
    %v6787 = vld [vmem:[#allocation13 + $0x34] sm:$0xf]
    %v6788 = vld [vmem:[#allocation13 + $0x38] sm:$0xf]
    %v6789 = vld [vmem:[#allocation13 + $0x3c] sm:$0xf]
    %v6790 = vlaneseq
    %v6791 = vshrl.u32 %v6790, 7
    %v6792 = vsub.s32 5, %v6791
    %v6793 = vrot.slane %v137, %v6792
    %v6810 = vunpack.c.l.b16 %v6774
    %v6811 = vunpack.c.l.b16 %v6775
    %v6812 = vunpack.c.l.b16 %v6776
    %v6813 = vunpack.c.l.b16 %v6777
    %v6814 = vunpack.c.l.b16 %v6778
    %v6815 = vunpack.c.l.b16 %v6779
    %v6816 = vunpack.c.l.b16 %v6780
    %v6817 = vunpack.c.l.b16 %v6781
    %v6818 = vunpack.c.l.b16 %v6782
    %v6819 = vunpack.c.l.b16 %v6783
    %v6820 = vunpack.c.l.b16 %v6784
    %v6821 = vunpack.c.l.b16 %v6785
    %v6822 = vunpack.c.l.b16 %v6786
    %v6823 = vunpack.c.l.b16 %v6787
    %v6824 = vunpack.c.l.b16 %v6788
    %v6825 = vunpack.c.l.b16 %v6789
    %v6826 = vpack.c.b16 %v6811, %v6810
    %v6827 = vpack.c.b16 %v6813, %v6812
    %v6828 = vpack.c.b16 %v6815, %v6814
    %v6829 = vpack.c.b16 %v6817, %v6816
    %v6830 = vpack.c.b16 %v6819, %v6818
    %v6831 = vpack.c.b16 %v6821, %v6820
    %v6832 = vpack.c.b16 %v6823, %v6822
    %v6833 = vpack.c.b16 %v6825, %v6824
    %6842 = vmatprep.subr.bf16.mxu0 0
    %6843 = vmatpush1.bf16.msra.mxu0 %v6826
    %6844 = vmatprep.subr.bf16.mxu0 0
    %6845 = vmatpush1.bf16.msra.mxu0 %v6827
    %6846 = vmatprep.subr.bf16.mxu0 0
    %6847 = vmatpush1.bf16.msra.mxu0 %v6828
    %6848 = vmatprep.subr.bf16.mxu0 0
    %6849 = vmatpush1.bf16.msra.mxu0 %v6829
    %6850 = vmatprep.subr.bf16.mxu0 0
    %6851 = vmatpush1.bf16.msra.mxu0 %v6830
    %6852 = vmatprep.subr.bf16.mxu0 0
    %6853 = vmatpush1.bf16.msra.mxu0 %v6831
    %6854 = vmatprep.subr.bf16.mxu0 0
    %6855 = vmatpush1.bf16.msra.mxu0 %v6832
    %6856 = vmatprep.subr.bf16.mxu0 0
    %6857 = vmatpush1.bf16.msra.mxu0 %v6833
    %6858 = vmatprep.subr.bf16.mxu0 0
    %6859 = vmatpush1.bf16.msra.mxu0 0
    %6860 = vmatprep.subr.bf16.mxu0 0
    %6861 = vmatpush1.bf16.msra.mxu0 0
    %6862 = vmatprep.subr.bf16.mxu0 0
    %6863 = vmatpush1.bf16.msra.mxu0 0
    %6864 = vmatprep.subr.bf16.mxu0 0
    %6865 = vmatpush1.bf16.msra.mxu0 0
    %6866 = vmatprep.subr.bf16.mxu0 0
    %6867 = vmatpush1.bf16.msra.mxu0 0
    %6868 = vmatprep.subr.bf16.mxu0 0
    %6869 = vmatpush1.bf16.msra.mxu0 0
    %6870 = vmatprep.subr.bf16.mxu0 0
    %6871 = vmatpush1.bf16.msra.mxu0 0
    %6872 = vmatprep.subr.bf16.mxu0 0
    %6873 = vmatpush1.bf16.msra.mxu0 0
    %6874 = vmatprep.mubr.bf16.mxu0 0
    %6875 = vmatmul.mubr.bf16.gmra.mrb[0].mxu0 %v6773
    %v6876 = vpop.f32.mrb[0].mxu0
    %v6877 = vadd.f32 %v6793, %v6876
    %v6878 = vpop.f32.mrb[0].mxu0
    %v6879 = vpop.f32.mrb[0].mxu0
    %v6880 = vpop.f32.mrb[0].mxu0
    %6881 = vdwg.mxu0
    %v6882 = vmax.f32 %v6877, 0.0
    %6883 = vst [vmem:[#allocation16] sm:$0xff] %v6882
    // Predicated region
    $region66: #{tpu_custom_call.1} parent=1 // pred_check
      _
    $region67: #{tpu_custom_call.1} parent=1 // pred_check_branch
      %6885 = sbr.rel (0) target = $region69
    $region68: #{tpu_custom_call.1} parent=1 // pred_region
      %s6887 = ssub.s32 128, 128
      %6888 = vsyncadd [#allocation4], %s6887
      %s6890 = sshll.u32 [#allocation16], 4
      %s6891 = int_to_ptr.vmem [resolvable:$true] %s6890
      %6893 = dma.vmem_to_hbm [thread:$0]  %s6891, 128, %s8, [#allocation4]
    $region69: #{tpu_custom_call.1} parent=1 // pred_fallthru
      _
    // Predicated region
    $region70: #{tpu_custom_call.1} parent=1 // pred_check
      _
    $region71: #{tpu_custom_call.1} parent=1 // pred_check_branch
      %6895 = sbr.rel (0) target = $region73
    $region72: #{tpu_custom_call.1} parent=1 // pred_region
      %6896 = dma.done [#allocation4], 128
    $region73: #{tpu_custom_call.1} parent=1 // pred_fallthru
      _
    %6897 = vsyncpa [#allocation3], 1
    %6898 = vsyncpa [#allocation6], 1
    %6899 = vsyncpa [#allocation9], 1
    %6900 = vsyncpa [#allocation12], 1
    %6901 = vsyncpa [#allocation15], 1
    %6902 = vsyncpa [#allocation4], 1

</llo_original>
